<compile_context>
chip_gen: v6e
topology: v6e:2x2x1
jax: 0.10.0
libtpu: 0.0.40
codegen_flags: <defaults>
</compile_context>

<pallas_src>
import jax
import jax.numpy as jnp
from jax import lax
from jax.experimental import pallas as pl
from jax.experimental.pallas import tpu as pltpu

NUM_GROUPS = 32
EPS = 1e-5


def resblock_kernel(x_ref, emb_ref, pavg_ref, w1_ref, we_ref, w2_ref, cols_ref,
                    out_ref):
    f32 = jnp.float32
    x = x_ref[...]                                   # (N*C, T)
    nc, t = x.shape
    ne = emb_ref.shape[0]

    pavg = pavg_ref[...]                             # (NC, NC) group averaging
    ones_tt = jnp.ones((t, t), f32)                  # time sum + broadcast

    cols = cols_ref[...]                             # (NC, 6) per-row params
    gn1_w, gn1_b = cols[:, 0:1], cols[:, 1:2]
    b1_c = cols[:, 2:3]                              # conv1 bias + Linear bias
    gn2_w, gn2_b = cols[:, 3:4], cols[:, 4:5]
    b2_c = cols[:, 5:6]

    def silu(v):
        return v * jax.nn.sigmoid(v)

    def group_norm(h, w_col, b_col):
        # Per-(sample, group) mean / biased var over (C/G channels) x (T steps).
        # pavg holds 1/(Cg*T) inside each block; ones_tt sums over time and
        # broadcasts the result back to all T columns.  Two-pass (centered) var.
        mean = jnp.dot(jnp.dot(pavg, h, preferred_element_type=f32), ones_tt,
                       preferred_element_type=f32)
        d = h - mean
        var = jnp.dot(jnp.dot(pavg, d * d, preferred_element_type=f32), ones_tt,
                      preferred_element_type=f32)
        return d * (lax.rsqrt(var + EPS) * w_col) + b_col

    # ---- in_layers: GroupNorm -> SiLU -> Conv1d(k=1)  (+ emb_layers bias) ----
    h = silu(group_norm(x, gn1_w, gn1_b))
    h = jnp.dot(w1_ref[...], h, preferred_element_type=f32)          # (NC, T)
    emb_b = jnp.broadcast_to(silu(emb_ref[...]), (ne, t))            # (NE, T)
    h = h + jnp.dot(we_ref[...], emb_b, preferred_element_type=f32) + b1_c

    # ---- out_layers: GroupNorm -> SiLU -> Dropout -> Conv1d(k=3, pad=1) ------
    h = silu(group_norm(h, gn2_w, gn2_b))
    # TODO(synk): Dropout is implemented as eval-mode identity only.

    # 3-tap conv: time shifts as MXU shift matrices (exact zero padding at the
    # t=0 / t=T-1 boundaries), channel mixing as block-diagonal weights, taps
    # accumulated -- no lane concat, no rolls, no masks.
    r = lax.broadcasted_iota(jnp.int32, (t, t), 0)
    c = lax.broadcasted_iota(jnp.int32, (t, t), 1)
    s_prev = jnp.where(r + 1 == c, 1.0, 0.0)         # column t picks h[:, t-1]
    s_next = jnp.where(r - 1 == c, 1.0, 0.0)         # column t picks h[:, t+1]
    h_prev = jnp.dot(h, s_prev, preferred_element_type=f32)
    h_next = jnp.dot(h, s_next, preferred_element_type=f32)
    acc = jnp.dot(w2_ref[0], h_prev, preferred_element_type=f32)
    acc = acc + jnp.dot(w2_ref[1], h, preferred_element_type=f32)
    acc = acc + jnp.dot(w2_ref[2], h_next, preferred_element_type=f32)

    # ---- residual (skip_connection is Identity: out_channels == channels) ----
    out_ref[...] = x + acc + b2_c


def resblock_forward(x_nct, emb, p):
    N, C, T = x_nct.shape
    Co, E = p["we"].shape
    assert Co == C, "Identity skip requires out_channels == channels"
    assert C % NUM_GROUPS == 0
    NC, NE = N * C, N * E
    Cg = C // NUM_GROUPS
    f32 = jnp.float32

    # --- parameter repacking (input-independent; hoistable / cacheable) ------
    eye_n = jnp.eye(N, dtype=f32)
    gid = jnp.arange(NC) // Cg                       # (sample, group) id per row
    pavg = (gid[:, None] == gid[None, :]).astype(f32) / float(Cg * T)
    w1l = jnp.kron(eye_n, p["w1"].astype(f32))                       # (NC, NC)
    wel = jnp.kron(eye_n, p["we"].astype(f32))                       # (NC, NE)
    w2l = jnp.stack([jnp.kron(eye_n, p["w2"][:, :, k].astype(f32))
                     for k in range(3)])                             # (3,NC,NC)
    tile = lambda v: jnp.tile(v.astype(f32), N)                      # (NC,)
    cols = jnp.stack([tile(p["gn1_w"]), tile(p["gn1_b"]),
                      tile(p["b1"] + p["be"]),
                      tile(p["gn2_w"]), tile(p["gn2_b"]),
                      tile(p["b2"])], axis=1)                        # (NC, 6)

    # --- data path: layout-preserving reshapes only (no transposes, no GEMM) --
    x_flat = x_nct.astype(f32).reshape(NC, T)
    emb_col = emb.astype(f32).reshape(NE, 1)

    full = lambda *s: pl.BlockSpec(s, lambda i: (0,) * len(s))

    out = pl.pallas_call(
        resblock_kernel,
        out_shape=jax.ShapeDtypeStruct((NC, T), f32),
        grid=(1,),            # whole (tiny) problem in one invocation;
                              # scale-up path: grid=(N,), "parallel" (v7x 2 TCs)
        in_specs=[
            full(NC, T),                   # x (aliased to the output)
            full(NE, 1),                   # emb, flattened column
            full(NC, NC),                  # group-averaging matrix P
            full(NC, NC),                  # block-diag conv1 (1x1) weight
            full(NC, NE),                  # block-diag emb Linear weight
            full(3, NC, NC),               # block-diag conv2 taps (t-1, t, t+1)
            full(NC, 6),                   # per-channel columns (gn w/b, biases)
        ],
        out_specs=full(NC, T),
        input_output_aliases={0: 0},       # donate x's HBM buffer to the output
        compiler_params=pltpu.CompilerParams(
            dimension_semantics=("arbitrary",)),
    )(x_flat, emb_col, pavg, w1l, wel, w2l, cols)

    return out.reshape(N, C, T)


# ----------------------------- pure-JAX reference ---------------------------
def ref_forward(x, emb, p):
    N, C, T = x.shape
    G = NUM_GROUPS

    def gn(h, w, b):
        n, cn, t = h.shape
        hg = h.reshape(n, G, cn // G, t)
        mean = hg.mean(axis=(2, 3), keepdims=True)
        var = hg.var(axis=(2, 3), keepdims=True)
        hg = (hg - mean) / jnp.sqrt(var + EPS)
        return hg.reshape(n, cn, t) * w[None, :, None] + b[None, :, None]

    silu = lambda v: v * jax.nn.sigmoid(v)

    h = silu(gn(x, p["gn1_w"], p["gn1_b"]))
    h = jnp.einsum("oc,nct->not", p["w1"], h) + p["b1"][None, :, None]
    eo = silu(emb) @ p["we"].T + p["be"]
    h = h + eo[:, :, None]
    h = silu(gn(h, p["gn2_w"], p["gn2_b"]))
    hp = jnp.pad(h, ((0, 0), (0, 0), (1, 1)))
    h2 = (jnp.einsum("oc,nct->not", p["w2"][:, :, 0], hp[:, :, 0:T])
          + jnp.einsum("oc,nct->not", p["w2"][:, :, 1], hp[:, :, 1:T + 1])
          + jnp.einsum("oc,nct->not", p["w2"][:, :, 2], hp[:, :, 2:T + 2])
          + p["b2"][None, :, None])
    return x + h2


if __name__ == "__main__":
    N, C, T, E = 2, 64, 16, 32
    Co = C                                          # out_channels = channels

    key = jax.random.PRNGKey(0)
    ks = jax.random.split(key, 12)
    p = {
        "gn1_w": 1.0 + 0.1 * jax.random.normal(ks[0], (C,), jnp.float32),
        "gn1_b": 0.1 * jax.random.normal(ks[1], (C,), jnp.float32),
        "w1":    0.05 * jax.random.normal(ks[2], (Co, C), jnp.float32),
        "b1":    0.05 * jax.random.normal(ks[3], (Co,), jnp.float32),
        "we":    0.05 * jax.random.normal(ks[4], (Co, E), jnp.float32),
        "be":    0.05 * jax.random.normal(ks[5], (Co,), jnp.float32),
        "gn2_w": 1.0 + 0.1 * jax.random.normal(ks[6], (Co,), jnp.float32),
        "gn2_b": 0.1 * jax.random.normal(ks[7], (Co,), jnp.float32),
        "w2":    0.05 * jax.random.normal(ks[8], (Co, Co, 3), jnp.float32),
        "b2":    0.05 * jax.random.normal(ks[9], (Co,), jnp.float32),
    }

    x = jax.random.normal(ks[10], (N, C, T), jnp.float32)
    emb = jax.random.normal(ks[11], (N, E), jnp.float32)

    out = jax.jit(resblock_forward)(x, emb, p)
    jax.block_until_ready(out)

    ref = ref_forward(x, emb, p)
    assert out.shape == (N, C, T)
    assert jnp.allclose(out, ref, rtol=1e-3, atol=1e-3), \
        f"max abs err {jnp.max(jnp.abs(out - ref))}"
    print("KERNEL_OK")
</pallas_src>

<mosaic_0001>
module attributes {stable_mosaic.version = 11 : i64} {
  func.func @resblock_kernel(%arg0: i32, %arg1: memref<128x16xf32, #tpu.memory_space<vmem>>, %arg2: memref<64x1xf32, #tpu.memory_space<vmem>>, %arg3: memref<128x128xf32, #tpu.memory_space<vmem>>, %arg4: memref<128x128xf32, #tpu.memory_space<vmem>>, %arg5: memref<128x64xf32, #tpu.memory_space<vmem>>, %arg6: memref<3x128x128xf32, #tpu.memory_space<vmem>>, %arg7: memref<128x6xf32, #tpu.memory_space<vmem>>, %arg8: memref<128x16xf32, #tpu.memory_space<vmem>>) attributes {dimension_semantics = [#tpu.dimension_semantics<arbitrary>], iteration_bounds = array<i64: 1>, scalar_prefetch = 0 : i64, scratch_operands = 0 : i64, tpu.core_type = #tpu.core_type<tc>, window_params = [{pipeline_mode = #tpu.pipeline_mode<synchronous>, transform_indices = @transform_0, window_bounds = array<i64: 128, 16>}, {pipeline_mode = #tpu.pipeline_mode<synchronous>, transform_indices = @transform_1, window_bounds = array<i64: 64, 1>}, {pipeline_mode = #tpu.pipeline_mode<synchronous>, transform_indices = @transform_2, window_bounds = array<i64: 128, 128>}, {pipeline_mode = #tpu.pipeline_mode<synchronous>, transform_indices = @transform_3, window_bounds = array<i64: 128, 128>}, {pipeline_mode = #tpu.pipeline_mode<synchronous>, transform_indices = @transform_4, window_bounds = array<i64: 128, 64>}, {pipeline_mode = #tpu.pipeline_mode<synchronous>, transform_indices = @transform_5, window_bounds = array<i64: 3, 128, 128>}, {pipeline_mode = #tpu.pipeline_mode<synchronous>, transform_indices = @transform_6, window_bounds = array<i64: 128, 6>}, {pipeline_mode = #tpu.pipeline_mode<synchronous>, transform_indices = @transform_7, window_bounds = array<i64: 128, 16>}]} {
    %c0 = arith.constant 0 : index
    %c0_0 = arith.constant 0 : index
    %0 = vector.load %arg1[%c0, %c0_0] : memref<128x16xf32, #tpu.memory_space<vmem>>, vector<128x16xf32>
    %c0_1 = arith.constant 0 : index
    %c0_2 = arith.constant 0 : index
    %1 = vector.load %arg3[%c0_1, %c0_2] : memref<128x128xf32, #tpu.memory_space<vmem>>, vector<128x128xf32>
    %cst = arith.constant 1.000000e+00 : f32
    %2 = vector.broadcast %cst : f32 to vector<16x16xf32>
    %c0_3 = arith.constant 0 : index
    %c0_4 = arith.constant 0 : index
    %3 = vector.load %arg7[%c0_3, %c0_4] : memref<128x6xf32, #tpu.memory_space<vmem>>, vector<128x6xf32>
    %4 = vector.extract_strided_slice %3 {offsets = [0, 0], sizes = [128, 1], strides = [1, 1]} : vector<128x6xf32> to vector<128x1xf32>
    %5 = vector.extract_strided_slice %3 {offsets = [0, 1], sizes = [128, 1], strides = [1, 1]} : vector<128x6xf32> to vector<128x1xf32>
    %6 = vector.extract_strided_slice %3 {offsets = [0, 2], sizes = [128, 1], strides = [1, 1]} : vector<128x6xf32> to vector<128x1xf32>
    %7 = vector.extract_strided_slice %3 {offsets = [0, 3], sizes = [128, 1], strides = [1, 1]} : vector<128x6xf32> to vector<128x1xf32>
    %8 = vector.extract_strided_slice %3 {offsets = [0, 4], sizes = [128, 1], strides = [1, 1]} : vector<128x6xf32> to vector<128x1xf32>
    %9 = vector.extract_strided_slice %3 {offsets = [0, 5], sizes = [128, 1], strides = [1, 1]} : vector<128x6xf32> to vector<128x1xf32>
    %cst_5 = arith.constant dense<0.000000e+00> : vector<128x16xf32>
    %10 = tpu.matmul %1, %0, %cst_5 {dimension_numbers = #tpu.dot_dimension_numbers<[1], [0], [0], [1], [0, 0, 1, 1], [], []>} : vector<128x128xf32>, vector<128x16xf32>, vector<128x16xf32> -> vector<128x16xf32>
    %cst_6 = arith.constant dense<0.000000e+00> : vector<128x16xf32>
    %11 = tpu.matmul %10, %2, %cst_6 {dimension_numbers = #tpu.dot_dimension_numbers<[1], [0], [0], [1], [0, 0, 1, 1], [], []>} : vector<128x16xf32>, vector<16x16xf32>, vector<128x16xf32> -> vector<128x16xf32>
    %12 = arith.subf %0, %11 : vector<128x16xf32>
    %13 = arith.mulf %12, %12 : vector<128x16xf32>
    %cst_7 = arith.constant dense<0.000000e+00> : vector<128x16xf32>
    %14 = tpu.matmul %1, %13, %cst_7 {dimension_numbers = #tpu.dot_dimension_numbers<[1], [0], [0], [1], [0, 0, 1, 1], [], []>} : vector<128x128xf32>, vector<128x16xf32>, vector<128x16xf32> -> vector<128x16xf32>
    %cst_8 = arith.constant dense<0.000000e+00> : vector<128x16xf32>
    %15 = tpu.matmul %14, %2, %cst_8 {dimension_numbers = #tpu.dot_dimension_numbers<[1], [0], [0], [1], [0, 0, 1, 1], [], []>} : vector<128x16xf32>, vector<16x16xf32>, vector<128x16xf32> -> vector<128x16xf32>
    %cst_9 = arith.constant 9.99999974E-6 : f32
    %16 = vector.broadcast %cst_9 : f32 to vector<128x16xf32>
    %17 = arith.addf %15, %16 : vector<128x16xf32>
    %18 = math.rsqrt %17 : vector<128x16xf32>
    %19 = vector.broadcast %4 : vector<128x1xf32> to vector<128x16xf32>
    %20 = arith.mulf %18, %19 : vector<128x16xf32>
    %21 = arith.mulf %12, %20 : vector<128x16xf32>
    %22 = vector.broadcast %5 : vector<128x1xf32> to vector<128x16xf32>
    %23 = arith.addf %21, %22 : vector<128x16xf32>
    %24 = arith.negf %23 : vector<128x16xf32>
    %25 = math.exp %24 : vector<128x16xf32>
    %cst_10 = arith.constant 1.000000e+00 : f32
    %26 = vector.broadcast %cst_10 : f32 to vector<128x16xf32>
    %27 = arith.addf %26, %25 : vector<128x16xf32>
    %28 = arith.divf %26, %27 : vector<128x16xf32>
    %29 = arith.mulf %23, %28 : vector<128x16xf32>
    %c0_11 = arith.constant 0 : index
    %c0_12 = arith.constant 0 : index
    %30 = vector.load %arg4[%c0_11, %c0_12] : memref<128x128xf32, #tpu.memory_space<vmem>>, vector<128x128xf32>
    %cst_13 = arith.constant dense<0.000000e+00> : vector<128x16xf32>
    %31 = tpu.matmul %30, %29, %cst_13 {dimension_numbers = #tpu.dot_dimension_numbers<[1], [0], [0], [1], [0, 0, 1, 1], [], []>} : vector<128x128xf32>, vector<128x16xf32>, vector<128x16xf32> -> vector<128x16xf32>
    %c0_14 = arith.constant 0 : index
    %c0_15 = arith.constant 0 : index
    %32 = vector.load %arg2[%c0_14, %c0_15] : memref<64x1xf32, #tpu.memory_space<vmem>>, vector<64x1xf32>
    %33 = arith.negf %32 : vector<64x1xf32>
    %34 = math.exp %33 : vector<64x1xf32>
    %cst_16 = arith.constant 1.000000e+00 : f32
    %35 = vector.broadcast %cst_16 : f32 to vector<64x1xf32>
    %36 = arith.addf %35, %34 : vector<64x1xf32>
    %37 = arith.divf %35, %36 : vector<64x1xf32>
    %38 = arith.mulf %32, %37 : vector<64x1xf32>
    %39 = vector.shape_cast %38 : vector<64x1xf32> to vector<64x1xf32>
    %40 = vector.broadcast %39 : vector<64x1xf32> to vector<64x16xf32>
    %c0_17 = arith.constant 0 : index
    %c0_18 = arith.constant 0 : index
    %41 = vector.load %arg5[%c0_17, %c0_18] : memref<128x64xf32, #tpu.memory_space<vmem>>, vector<128x64xf32>
    %cst_19 = arith.constant dense<0.000000e+00> : vector<128x16xf32>
    %42 = tpu.matmul %41, %40, %cst_19 {dimension_numbers = #tpu.dot_dimension_numbers<[1], [0], [0], [1], [0, 0, 1, 1], [], []>} : vector<128x64xf32>, vector<64x16xf32>, vector<128x16xf32> -> vector<128x16xf32>
    %43 = arith.addf %31, %42 : vector<128x16xf32>
    %44 = vector.broadcast %6 : vector<128x1xf32> to vector<128x16xf32>
    %45 = arith.addf %43, %44 : vector<128x16xf32>
    %cst_20 = arith.constant dense<0.000000e+00> : vector<128x16xf32>
    %46 = tpu.matmul %1, %45, %cst_20 {dimension_numbers = #tpu.dot_dimension_numbers<[1], [0], [0], [1], [0, 0, 1, 1], [], []>} : vector<128x128xf32>, vector<128x16xf32>, vector<128x16xf32> -> vector<128x16xf32>
    %cst_21 = arith.constant dense<0.000000e+00> : vector<128x16xf32>
    %47 = tpu.matmul %46, %2, %cst_21 {dimension_numbers = #tpu.dot_dimension_numbers<[1], [0], [0], [1], [0, 0, 1, 1], [], []>} : vector<128x16xf32>, vector<16x16xf32>, vector<128x16xf32> -> vector<128x16xf32>
    %48 = arith.subf %45, %47 : vector<128x16xf32>
    %49 = arith.mulf %48, %48 : vector<128x16xf32>
    %cst_22 = arith.constant dense<0.000000e+00> : vector<128x16xf32>
    %50 = tpu.matmul %1, %49, %cst_22 {dimension_numbers = #tpu.dot_dimension_numbers<[1], [0], [0], [1], [0, 0, 1, 1], [], []>} : vector<128x128xf32>, vector<128x16xf32>, vector<128x16xf32> -> vector<128x16xf32>
    %cst_23 = arith.constant dense<0.000000e+00> : vector<128x16xf32>
    %51 = tpu.matmul %50, %2, %cst_23 {dimension_numbers = #tpu.dot_dimension_numbers<[1], [0], [0], [1], [0, 0, 1, 1], [], []>} : vector<128x16xf32>, vector<16x16xf32>, vector<128x16xf32> -> vector<128x16xf32>
    %cst_24 = arith.constant 9.99999974E-6 : f32
    %52 = vector.broadcast %cst_24 : f32 to vector<128x16xf32>
    %53 = arith.addf %51, %52 : vector<128x16xf32>
    %54 = math.rsqrt %53 : vector<128x16xf32>
    %55 = vector.broadcast %7 : vector<128x1xf32> to vector<128x16xf32>
    %56 = arith.mulf %54, %55 : vector<128x16xf32>
    %57 = arith.mulf %48, %56 : vector<128x16xf32>
    %58 = vector.broadcast %8 : vector<128x1xf32> to vector<128x16xf32>
    %59 = arith.addf %57, %58 : vector<128x16xf32>
    %60 = arith.negf %59 : vector<128x16xf32>
    %61 = math.exp %60 : vector<128x16xf32>
    %cst_25 = arith.constant 1.000000e+00 : f32
    %62 = vector.broadcast %cst_25 : f32 to vector<128x16xf32>
    %63 = arith.addf %62, %61 : vector<128x16xf32>
    %64 = arith.divf %62, %63 : vector<128x16xf32>
    %65 = arith.mulf %59, %64 : vector<128x16xf32>
    %66 = tpu.iota {dimensions = array<i32: 0>} : vector<16x16xi32>
    %67 = tpu.iota {dimensions = array<i32: 1>} : vector<16x16xi32>
    %c1_i32 = arith.constant 1 : i32
    %68 = vector.broadcast %c1_i32 : i32 to vector<16x16xi32>
    %69 = arith.addi %66, %68 : vector<16x16xi32>
    %70 = arith.cmpi eq, %69, %67 : vector<16x16xi32>
    %cst_26 = arith.constant 1.000000e+00 : f32
    %cst_27 = arith.constant 0.000000e+00 : f32
    %71 = vector.broadcast %cst_26 : f32 to vector<16x16xf32>
    %72 = vector.broadcast %cst_27 : f32 to vector<16x16xf32>
    %73 = arith.select %70, %71, %72 : vector<16x16xi1>, vector<16x16xf32>
    %c1_i32_28 = arith.constant 1 : i32
    %74 = vector.broadcast %c1_i32_28 : i32 to vector<16x16xi32>
    %75 = arith.subi %66, %74 : vector<16x16xi32>
    %76 = arith.cmpi eq, %75, %67 : vector<16x16xi32>
    %cst_29 = arith.constant 1.000000e+00 : f32
    %cst_30 = arith.constant 0.000000e+00 : f32
    %77 = vector.broadcast %cst_29 : f32 to vector<16x16xf32>
    %78 = vector.broadcast %cst_30 : f32 to vector<16x16xf32>
    %79 = arith.select %76, %77, %78 : vector<16x16xi1>, vector<16x16xf32>
    %cst_31 = arith.constant dense<0.000000e+00> : vector<128x16xf32>
    %80 = tpu.matmul %65, %73, %cst_31 {dimension_numbers = #tpu.dot_dimension_numbers<[1], [0], [0], [1], [0, 0, 1, 1], [], []>} : vector<128x16xf32>, vector<16x16xf32>, vector<128x16xf32> -> vector<128x16xf32>
    %cst_32 = arith.constant dense<0.000000e+00> : vector<128x16xf32>
    %81 = tpu.matmul %65, %79, %cst_32 {dimension_numbers = #tpu.dot_dimension_numbers<[1], [0], [0], [1], [0, 0, 1, 1], [], []>} : vector<128x16xf32>, vector<16x16xf32>, vector<128x16xf32> -> vector<128x16xf32>
    %c0_33 = arith.constant 0 : index
    %c0_34 = arith.constant 0 : index
    %c0_35 = arith.constant 0 : index
    %82 = vector.load %arg6[%c0_33, %c0_34, %c0_35] : memref<3x128x128xf32, #tpu.memory_space<vmem>>, vector<1x128x128xf32>
    %83 = vector.shape_cast %82 : vector<1x128x128xf32> to vector<128x128xf32>
    %cst_36 = arith.constant dense<0.000000e+00> : vector<128x16xf32>
    %84 = tpu.matmul %83, %80, %cst_36 {dimension_numbers = #tpu.dot_dimension_numbers<[1], [0], [0], [1], [0, 0, 1, 1], [], []>} : vector<128x128xf32>, vector<128x16xf32>, vector<128x16xf32> -> vector<128x16xf32>
    %c1 = arith.constant 1 : index
    %c0_37 = arith.constant 0 : index
    %c0_38 = arith.constant 0 : index
    %85 = vector.load %arg6[%c1, %c0_37, %c0_38] : memref<3x128x128xf32, #tpu.memory_space<vmem>>, vector<1x128x128xf32>
    %86 = vector.shape_cast %85 : vector<1x128x128xf32> to vector<128x128xf32>
    %cst_39 = arith.constant dense<0.000000e+00> : vector<128x16xf32>
    %87 = tpu.matmul %86, %65, %cst_39 {dimension_numbers = #tpu.dot_dimension_numbers<[1], [0], [0], [1], [0, 0, 1, 1], [], []>} : vector<128x128xf32>, vector<128x16xf32>, vector<128x16xf32> -> vector<128x16xf32>
    %88 = arith.addf %84, %87 : vector<128x16xf32>
    %c2 = arith.constant 2 : index
    %c0_40 = arith.constant 0 : index
    %c0_41 = arith.constant 0 : index
    %89 = vector.load %arg6[%c2, %c0_40, %c0_41] : memref<3x128x128xf32, #tpu.memory_space<vmem>>, vector<1x128x128xf32>
    %90 = vector.shape_cast %89 : vector<1x128x128xf32> to vector<128x128xf32>
    %cst_42 = arith.constant dense<0.000000e+00> : vector<128x16xf32>
    %91 = tpu.matmul %90, %81, %cst_42 {dimension_numbers = #tpu.dot_dimension_numbers<[1], [0], [0], [1], [0, 0, 1, 1], [], []>} : vector<128x128xf32>, vector<128x16xf32>, vector<128x16xf32> -> vector<128x16xf32>
    %92 = arith.addf %88, %91 : vector<128x16xf32>
    %93 = arith.addf %0, %92 : vector<128x16xf32>
    %94 = vector.broadcast %9 : vector<128x1xf32> to vector<128x16xf32>
    %95 = arith.addf %93, %94 : vector<128x16xf32>
    %c0_43 = arith.constant 0 : index
    %c0_44 = arith.constant 0 : index
    %96 = vector.load %arg8[%c0_43, %c0_44] : memref<128x16xf32, #tpu.memory_space<vmem>>, vector<128x16xf32>
    tpu.vector_store %arg8[%c0_43, %c0_44], %95 {strides = array<i32>} : memref<128x16xf32, #tpu.memory_space<vmem>>, vector<128x16xf32>,
    return
  }
  func.func @transform_0(%arg0: i32) -> (i32, i32) {
    %c0_i32 = arith.constant 0 : i32
    %c0_i32_0 = arith.constant 0 : i32
    %c0_i32_1 = arith.constant 0 : i32
    return %c0_i32, %c0_i32_0 : i32, i32
  }
  func.func @transform_1(%arg0: i32) -> (i32, i32) {
    %c0_i32 = arith.constant 0 : i32
    %c0_i32_0 = arith.constant 0 : i32
    %c0_i32_1 = arith.constant 0 : i32
    return %c0_i32, %c0_i32_0 : i32, i32
  }
  func.func @transform_2(%arg0: i32) -> (i32, i32) {
    %c0_i32 = arith.constant 0 : i32
    %c0_i32_0 = arith.constant 0 : i32
    %c0_i32_1 = arith.constant 0 : i32
    return %c0_i32, %c0_i32_0 : i32, i32
  }
  func.func @transform_3(%arg0: i32) -> (i32, i32) {
    %c0_i32 = arith.constant 0 : i32
    %c0_i32_0 = arith.constant 0 : i32
    %c0_i32_1 = arith.constant 0 : i32
    return %c0_i32, %c0_i32_0 : i32, i32
  }
  func.func @transform_4(%arg0: i32) -> (i32, i32) {
    %c0_i32 = arith.constant 0 : i32
    %c0_i32_0 = arith.constant 0 : i32
    %c0_i32_1 = arith.constant 0 : i32
    return %c0_i32, %c0_i32_0 : i32, i32
  }
  func.func @transform_5(%arg0: i32) -> (i32, i32, i32) {
    %c0_i32 = arith.constant 0 : i32
    %c0_i32_0 = arith.constant 0 : i32
    %c0_i32_1 = arith.constant 0 : i32
    %c0_i32_2 = arith.constant 0 : i32
    return %c0_i32, %c0_i32_0, %c0_i32_1 : i32, i32, i32
  }
  func.func @transform_6(%arg0: i32) -> (i32, i32) {
    %c0_i32 = arith.constant 0 : i32
    %c0_i32_0 = arith.constant 0 : i32
    %c0_i32_1 = arith.constant 0 : i32
    return %c0_i32, %c0_i32_0 : i32, i32
  }
  func.func @transform_7(%arg0: i32) -> (i32, i32) {
    %c0_i32 = arith.constant 0 : i32
    %c0_i32_0 = arith.constant 0 : i32
    %c0_i32_1 = arith.constant 0 : i32
    return %c0_i32, %c0_i32_0 : i32, i32
  }
}

</mosaic_0001>

<llo_original>
// kernel: tile.41
$region0: #{tile.41}
  #allocation0 [shape = 's32[1]{0}', space=sflag, size = 0x4, scoped, tag = 'scoped memory for tile.41']
  %s0 = inlined_call_operand.vmem [shape: f32[64], index: 0, kind: input, shape index: {}]
  %s1 = inlined_call_operand.vmem [shape: f32[2,64], index: 1, kind: output, shape index: {}]
  // Predicated region
  $region2: #{tile.41} parent=0 // pred_check
    _
  $region3: #{tile.41} parent=0 // pred_check_branch
    %3 = sbr.rel (0) target = $region5
  $region4: #{tile.41} parent=0 // pred_region
    _
  $region5: #{tile.41} parent=0 // pred_fallthru
    _
  %v4 = vld [vmem:[%s0] ss:$0 sm:$0xff]
  %5 = vst [vmem:[%s1] sm:$0x3] %v4

// kernel: tile.56
$region0: #{tile.56}
  %s0 = inlined_call_operand.vmem [shape: f32[2,64], index: 0, kind: input, shape index: {}]
  %s1 = inlined_call_operand.vmem [shape: f32[128,1], index: 1, kind: output, shape index: {}]
  $region1: #{tile.56} parent=0
    #allocation0 [shape = 'u8[4096]{0}', space=vmem, size = 0x1000, scoped, tag = 'scoped mem for output reshape']
    #allocation1 [shape = 'u8[4096]{0}', space=vmem, size = 0x1000, scoped, tag = 'scoped mem for input reshape']
    %s3 = sshll.u32 1, 2
    %s4 = ssub.s32 %s3, 1
    %v5 = vld [vmem:[%s0] sm:%s4]
    %6 = vst [vmem:[#allocation1] sm:%s4] %v5
    %v7 = vld [vmem:[#allocation1] sm:$0x1]
    %vm8 = vcmask 523264
    %9 = vst.msk [vmem:[#allocation0] sm:$0x1] %vm8, %v7
    %s10 = scalar_lea.vmem [#allocation1], 1
    %v11 = vld [vmem:[%s10] sm:$0x1]
    %12 = vrot.lane.b32.xlu0 %v11, 64
    %v13 = vpop.permute.xlu0 %12
    %vm14 = vcmask 1048064
    %15 = vst.msk [vmem:[#allocation0] sm:$0x1] %vm14, %v13
    %s17 = sshll.u32 1, 1
    %s18 = ssub.s32 %s17, 1
    %v20 = vld [vmem:[#allocation0] sm:%s18]
    %s21 = sshll.u32 1, 1
    %s22 = ssub.s32 %s21, 1
    %23 = vst [vmem:[%s1] sm:%s22] %v20

// kernel: resblock_forward.1
$region0: #{resblock_forward.1}
  #allocation0 [shape = 'u32[]', space=smem, size = 0x4, offset = 0x4, fixed_abs, tag = 'smem constant byte address 0x4 - core index']
  #allocation1 [shape = 'u32[144,128]{1,0:T(1,128)}', space=vmem, size = 0x12000, scoped, tag = 'internal scratch']
  %s0 = inlined_call_operand.vmem [shape: f32[128,16], index: 0, kind: input, shape index: {}, may-alias: {0,7}]
  %s1 = inlined_call_operand.vmem [shape: f32[64,1], index: 1, kind: input, shape index: {}]
  %s2 = inlined_call_operand.vmem [shape: f32[128,128], index: 2, kind: input, shape index: {}]
  %s3 = inlined_call_operand.vmem [shape: f32[128,128], index: 3, kind: input, shape index: {}]
  %s4 = inlined_call_operand.vmem [shape: f32[128,64], index: 4, kind: input, shape index: {}]
  %s5 = inlined_call_operand.vmem [shape: f32[3,128,128], index: 5, kind: input, shape index: {}]
  %s6 = inlined_call_operand.vmem [shape: f32[128,6], index: 6, kind: input, shape index: {}]
  %s7 = inlined_call_operand.vmem [shape: f32[128,16], index: 7, kind: output, shape index: {}, may-alias: {0,7}]
  %s8 = sld [smem:[#allocation0]]
  $region38: #{resblock_forward.1} parent=0
    _
  %s10 = ssub.s32 1, %s8
  %s11 = scalar_select 0, %s10, %s8
  // Predicated region
  $region2: #{resblock_forward.1} parent=0 // pred_check
    _
  $region3: #{resblock_forward.1} parent=0 // pred_check_branch
    %13 = sbr.rel (0) target = $region5
  $region4: #{resblock_forward.1} parent=0 // pred_region
    _
  $region5: #{resblock_forward.1} parent=0 // pred_fallthru
    _
  // Predicated region
  $region6: #{resblock_forward.1} parent=0 // pred_check
    _
  $region7: #{resblock_forward.1} parent=0 // pred_check_branch
    %15 = sbr.rel (0) target = $region9
  $region8: #{resblock_forward.1} parent=0 // pred_region
    _
  $region9: #{resblock_forward.1} parent=0 // pred_fallthru
    _
  // Predicated region
  $region10: #{resblock_forward.1} parent=0 // pred_check
    _
  $region11: #{resblock_forward.1} parent=0 // pred_check_branch
    %17 = sbr.rel (0) target = $region13
  $region12: #{resblock_forward.1} parent=0 // pred_region
    _
  $region13: #{resblock_forward.1} parent=0 // pred_fallthru
    _
  // Predicated region
  $region14: #{resblock_forward.1} parent=0 // pred_check
    _
  $region15: #{resblock_forward.1} parent=0 // pred_check_branch
    %19 = sbr.rel (0) target = $region17
  $region16: #{resblock_forward.1} parent=0 // pred_region
    _
  $region17: #{resblock_forward.1} parent=0 // pred_fallthru
    _
  // Predicated region
  $region18: #{resblock_forward.1} parent=0 // pred_check
    _
  $region19: #{resblock_forward.1} parent=0 // pred_check_branch
    %21 = sbr.rel (0) target = $region21
  $region20: #{resblock_forward.1} parent=0 // pred_region
    _
  $region21: #{resblock_forward.1} parent=0 // pred_fallthru
    _
  // Predicated region
  $region22: #{resblock_forward.1} parent=0 // pred_check
    _
  $region23: #{resblock_forward.1} parent=0 // pred_check_branch
    %23 = sbr.rel (0) target = $region25
  $region24: #{resblock_forward.1} parent=0 // pred_region
    _
  $region25: #{resblock_forward.1} parent=0 // pred_fallthru
    _
  // Predicated region
  $region26: #{resblock_forward.1} parent=0 // pred_check
    _
  $region27: #{resblock_forward.1} parent=0 // pred_check_branch
    %25 = sbr.rel (0) target = $region29
  $region28: #{resblock_forward.1} parent=0 // pred_region
    _
  $region29: #{resblock_forward.1} parent=0 // pred_fallthru
    _
  %v26 = vld [vmem:[%s0] sm:$0xff]
  %v27 = vld [vmem:[%s0 + $0x8] sm:$0xff]
  %v28 = vld [vmem:[%s0 + $0x10] sm:$0xff]
  %v29 = vld [vmem:[%s0 + $0x18] sm:$0xff]
  %v30 = vld [vmem:[%s0 + $0x20] sm:$0xff]
  %v31 = vld [vmem:[%s0 + $0x28] sm:$0xff]
  %v32 = vld [vmem:[%s0 + $0x30] sm:$0xff]
  %v33 = vld [vmem:[%s0 + $0x38] sm:$0xff]
  %v34 = vld [vmem:[%s0 + $0x40] sm:$0xff]
  %v35 = vld [vmem:[%s0 + $0x48] sm:$0xff]
  %v36 = vld [vmem:[%s0 + $0x50] sm:$0xff]
  %v37 = vld [vmem:[%s0 + $0x58] sm:$0xff]
  %v38 = vld [vmem:[%s0 + $0x60] sm:$0xff]
  %v39 = vld [vmem:[%s0 + $0x68] sm:$0xff]
  %v40 = vld [vmem:[%s0 + $0x70] sm:$0xff]
  %v41 = vld [vmem:[%s0 + $0x78] sm:$0xff]
  %v42 = vld [vmem:[%s2] sm:$0xff]
  %v43 = vld [vmem:[%s2 + $0x8] sm:$0xff]
  %v44 = vld [vmem:[%s2 + $0x10] sm:$0xff]
  %v45 = vld [vmem:[%s2 + $0x18] sm:$0xff]
  %v46 = vld [vmem:[%s2 + $0x20] sm:$0xff]
  %v47 = vld [vmem:[%s2 + $0x28] sm:$0xff]
  %v48 = vld [vmem:[%s2 + $0x30] sm:$0xff]
  %v49 = vld [vmem:[%s2 + $0x38] sm:$0xff]
  %v50 = vld [vmem:[%s2 + $0x40] sm:$0xff]
  %v51 = vld [vmem:[%s2 + $0x48] sm:$0xff]
  %v52 = vld [vmem:[%s2 + $0x50] sm:$0xff]
  %v53 = vld [vmem:[%s2 + $0x58] sm:$0xff]
  %v54 = vld [vmem:[%s2 + $0x60] sm:$0xff]
  %v55 = vld [vmem:[%s2 + $0x68] sm:$0xff]
  %v56 = vld [vmem:[%s2 + $0x70] sm:$0xff]
  %v57 = vld [vmem:[%s2 + $0x78] sm:$0xff]
  %v58 = vld [vmem:[%s6] sm:$0xff]
  %v59 = vld [vmem:[%s6 + $0x8] sm:$0xff]
  %v60 = vld [vmem:[%s6 + $0x10] sm:$0xff]
  %v61 = vld [vmem:[%s6 + $0x18] sm:$0xff]
  %v62 = vld [vmem:[%s6 + $0x20] sm:$0xff]
  %v63 = vld [vmem:[%s6 + $0x28] sm:$0xff]
  %v64 = vld [vmem:[%s6 + $0x30] sm:$0xff]
  %v65 = vld [vmem:[%s6 + $0x38] sm:$0xff]
  %v66 = vld [vmem:[%s6 + $0x40] sm:$0xff]
  %v67 = vld [vmem:[%s6 + $0x48] sm:$0xff]
  %v68 = vld [vmem:[%s6 + $0x50] sm:$0xff]
  %v69 = vld [vmem:[%s6 + $0x58] sm:$0xff]
  %v70 = vld [vmem:[%s6 + $0x60] sm:$0xff]
  %v71 = vld [vmem:[%s6 + $0x68] sm:$0xff]
  %v72 = vld [vmem:[%s6 + $0x70] sm:$0xff]
  %v73 = vld [vmem:[%s6 + $0x78] sm:$0xff]
  %74 = vmatprep.subr.mxu0 0.0
  %75 = vmatpush1.msra.mxu0 %v41
  %76 = vmatprep.subr.mxu0 0.0
  %77 = vmatpush1.msra.mxu0 %v40
  %78 = vmatprep.subr.mxu0 0.0
  %79 = vmatpush1.msra.mxu0 %v39
  %80 = vmatprep.subr.mxu0 0.0
  %81 = vmatpush1.msra.mxu0 %v38
  %82 = vmatprep.subr.mxu0 0.0
  %83 = vmatpush1.msra.mxu0 %v37
  %84 = vmatprep.subr.mxu0 0.0
  %85 = vmatpush1.msra.mxu0 %v36
  %86 = vmatprep.subr.mxu0 0.0
  %87 = vmatpush1.msra.mxu0 %v35
  %88 = vmatprep.subr.mxu0 0.0
  %89 = vmatpush1.msra.mxu0 %v34
  %90 = vmatprep.subr.mxu0 0.0
  %91 = vmatpush1.msra.mxu0 %v33
  %92 = vmatprep.subr.mxu0 0.0
  %93 = vmatpush1.msra.mxu0 %v32
  %94 = vmatprep.subr.mxu0 0.0
  %95 = vmatpush1.msra.mxu0 %v31
  %96 = vmatprep.subr.mxu0 0.0
  %97 = vmatpush1.msra.mxu0 %v30
  %98 = vmatprep.subr.mxu0 0.0
  %99 = vmatpush1.msra.mxu0 %v29
  %100 = vmatprep.subr.mxu0 0.0
  %101 = vmatpush1.msra.mxu0 %v28
  %102 = vmatprep.subr.mxu0 0.0
  %103 = vmatpush1.msra.mxu0 %v27
  %104 = vmatprep.subr.mxu0 0.0
  %105 = vmatpush1.msra.mxu0 %v26
  %106 = vmatprep.subr.mxu0 0.0
  %107 = vmatpush2.msra.mxu0 0.0
  %108 = vmatprep.subr.mxu0 0.0
  %109 = vmatpush2.msra.mxu0 0.0
  %110 = vmatprep.subr.mxu0 0.0
  %111 = vmatpush2.msra.mxu0 0.0
  %112 = vmatprep.subr.mxu0 0.0
  %113 = vmatpush2.msra.mxu0 0.0
  %114 = vmatprep.subr.mxu0 0.0
  %115 = vmatpush2.msra.mxu0 0.0
  %116 = vmatprep.subr.mxu0 0.0
  %117 = vmatpush2.msra.mxu0 0.0
  %118 = vmatprep.subr.mxu0 0.0
  %119 = vmatpush2.msra.mxu0 0.0
  %120 = vmatprep.subr.mxu0 0.0
  %121 = vmatpush2.msra.mxu0 0.0
  %122 = vmatprep.subr.mxu0 0.0
  %123 = vmatpush2.msra.mxu0 0.0
  %124 = vmatprep.subr.mxu0 0.0
  %125 = vmatpush2.msra.mxu0 0.0
  %126 = vmatprep.subr.mxu0 0.0
  %127 = vmatpush2.msra.mxu0 0.0
  %128 = vmatprep.subr.mxu0 0.0
  %129 = vmatpush2.msra.mxu0 0.0
  %130 = vmatprep.subr.mxu0 0.0
  %131 = vmatpush2.msra.mxu0 0.0
  %132 = vmatprep.subr.mxu0 0.0
  %133 = vmatpush2.msra.mxu0 0.0
  %134 = vmatprep.subr.mxu0 0.0
  %135 = vmatpush2.msra.mxu0 0.0
  %136 = vmatprep.subr.mxu0 0.0
  %137 = vmatpush2.msra.mxu0 0.0
  %138 = vmatprep.mubr.f32.mxu0 0.0
  %139 = vmatmul.mubr.f32.gmra.mxu0 %v42
  %v140 = vpop.f32.mrf.mxu0
  %v141 = vadd.f32 0.0, %v140
  %v142 = vpop.f32.mrf.mxu0
  %143 = vmatprep.mubr.f32.mxu0 0.0
  %144 = vmatmul.mubr.f32.gmra.mxu0 %v43
  %v145 = vpop.f32.mrf.mxu0
  %v146 = vadd.f32 0.0, %v145
  %v147 = vpop.f32.mrf.mxu0
  %148 = vmatprep.mubr.f32.mxu0 0.0
  %149 = vmatmul.mubr.f32.gmra.mxu0 %v44
  %v150 = vpop.f32.mrf.mxu0
  %v151 = vadd.f32 0.0, %v150
  %v152 = vpop.f32.mrf.mxu0
  %153 = vmatprep.mubr.f32.mxu0 0.0
  %154 = vmatmul.mubr.f32.gmra.mxu0 %v45
  %v155 = vpop.f32.mrf.mxu0
  %v156 = vadd.f32 0.0, %v155
  %v157 = vpop.f32.mrf.mxu0
  %158 = vmatprep.mubr.f32.mxu0 0.0
  %159 = vmatmul.mubr.f32.gmra.mxu0 %v46
  %v160 = vpop.f32.mrf.mxu0
  %v161 = vadd.f32 0.0, %v160
  %v162 = vpop.f32.mrf.mxu0
  %163 = vmatprep.mubr.f32.mxu0 0.0
  %164 = vmatmul.mubr.f32.gmra.mxu0 %v47
  %v165 = vpop.f32.mrf.mxu0
  %v166 = vadd.f32 0.0, %v165
  %v167 = vpop.f32.mrf.mxu0
  %168 = vmatprep.mubr.f32.mxu0 0.0
  %169 = vmatmul.mubr.f32.gmra.mxu0 %v48
  %v170 = vpop.f32.mrf.mxu0
  %v171 = vadd.f32 0.0, %v170
  %v172 = vpop.f32.mrf.mxu0
  %173 = vmatprep.mubr.f32.mxu0 0.0
  %174 = vmatmul.mubr.f32.gmra.mxu0 %v49
  %v175 = vpop.f32.mrf.mxu0
  %v176 = vadd.f32 0.0, %v175
  %v177 = vpop.f32.mrf.mxu0
  %178 = vmatprep.mubr.f32.mxu0 0.0
  %179 = vmatmul.mubr.f32.gmra.mxu0 %v50
  %v180 = vpop.f32.mrf.mxu0
  %v181 = vadd.f32 0.0, %v180
  %v182 = vpop.f32.mrf.mxu0
  %183 = vmatprep.mubr.f32.mxu0 0.0
  %184 = vmatmul.mubr.f32.gmra.mxu0 %v51
  %v185 = vpop.f32.mrf.mxu0
  %v186 = vadd.f32 0.0, %v185
  %v187 = vpop.f32.mrf.mxu0
  %188 = vmatprep.mubr.f32.mxu0 0.0
  %189 = vmatmul.mubr.f32.gmra.mxu0 %v52
  %v190 = vpop.f32.mrf.mxu0
  %v191 = vadd.f32 0.0, %v190
  %v192 = vpop.f32.mrf.mxu0
  %193 = vmatprep.mubr.f32.mxu0 0.0
  %194 = vmatmul.mubr.f32.gmra.mxu0 %v53
  %v195 = vpop.f32.mrf.mxu0
  %v196 = vadd.f32 0.0, %v195
  %v197 = vpop.f32.mrf.mxu0
  %198 = vmatprep.mubr.f32.mxu0 0.0
  %199 = vmatmul.mubr.f32.gmra.mxu0 %v54
  %v200 = vpop.f32.mrf.mxu0
  %v201 = vadd.f32 0.0, %v200
  %v202 = vpop.f32.mrf.mxu0
  %203 = vmatprep.mubr.f32.mxu0 0.0
  %204 = vmatmul.mubr.f32.gmra.mxu0 %v55
  %v205 = vpop.f32.mrf.mxu0
  %v206 = vadd.f32 0.0, %v205
  %v207 = vpop.f32.mrf.mxu0
  %208 = vmatprep.mubr.f32.mxu0 0.0
  %209 = vmatmul.mubr.f32.gmra.mxu0 %v56
  %v210 = vpop.f32.mrf.mxu0
  %v211 = vadd.f32 0.0, %v210
  %v212 = vpop.f32.mrf.mxu0
  %213 = vmatprep.mubr.f32.mxu0 0.0
  %214 = vmatmul.mubr.f32.gmra.mxu0 %v57
  %v215 = vpop.f32.mrf.mxu0
  %v216 = vadd.f32 0.0, %v215
  %v217 = vpop.f32.mrf.mxu0
  %218 = vdwg.mxu0
  %vm219 = vcmask 130048
  %v221 = vsel %vm219, %v141, 0
  %v224 = vsel %vm219, %v146, 0
  %v227 = vsel %vm219, %v151, 0
  %v230 = vsel %vm219, %v156, 0
  %v233 = vsel %vm219, %v161, 0
  %v236 = vsel %vm219, %v166, 0
  %v239 = vsel %vm219, %v171, 0
  %v242 = vsel %vm219, %v176, 0
  %v245 = vsel %vm219, %v181, 0
  %v248 = vsel %vm219, %v186, 0
  %v251 = vsel %vm219, %v191, 0
  %v254 = vsel %vm219, %v196, 0
  %v257 = vsel %vm219, %v201, 0
  %v260 = vsel %vm219, %v206, 0
  %v263 = vsel %vm219, %v211, 0
  %v266 = vsel %vm219, %v216, 0
  %268 = vmatprep.subr.mxu0 0.0
  %269 = vmatpush1.msra.mxu0 0.0
  %270 = vmatprep.subr.mxu0 0.0
  %271 = vmatpush1.msra.mxu0 0.0
  %272 = vmatprep.subr.mxu0 0.0
  %273 = vmatpush1.msra.mxu0 0.0
  %274 = vmatprep.subr.mxu0 0.0
  %275 = vmatpush1.msra.mxu0 0.0
  %276 = vmatprep.subr.mxu0 0.0
  %277 = vmatpush1.msra.mxu0 0.0
  %278 = vmatprep.subr.mxu0 0.0
  %279 = vmatpush1.msra.mxu0 0.0
  %280 = vmatprep.subr.mxu0 0.0
  %281 = vmatpush1.msra.mxu0 0.0
  %282 = vmatprep.subr.mxu0 0.0
  %283 = vmatpush1.msra.mxu0 0.0
  %284 = vmatprep.subr.mxu0 0.0
  %285 = vmatpush1.msra.mxu0 0.0
  %286 = vmatprep.subr.mxu0 0.0
  %287 = vmatpush1.msra.mxu0 0.0
  %288 = vmatprep.subr.mxu0 0.0
  %289 = vmatpush1.msra.mxu0 0.0
  %290 = vmatprep.subr.mxu0 0.0
  %291 = vmatpush1.msra.mxu0 0.0
  %292 = vmatprep.subr.mxu0 0.0
  %293 = vmatpush1.msra.mxu0 0.0
  %294 = vmatprep.subr.mxu0 0.0
  %295 = vmatpush1.msra.mxu0 0.0
  %296 = vmatprep.subr.mxu0 0.0
  %297 = vmatpush1.msra.mxu0 1.0
  %298 = vmatprep.subr.mxu0 0.0
  %299 = vmatpush1.msra.mxu0 1.0
  %300 = vmatprep.subr.mxu0 0.0
  %301 = vmatpush2.msra.mxu0 0.0
  %302 = vmatprep.subr.mxu0 0.0
  %303 = vmatpush2.msra.mxu0 0.0
  %304 = vmatprep.subr.mxu0 0.0
  %305 = vmatpush2.msra.mxu0 0.0
  %306 = vmatprep.subr.mxu0 0.0
  %307 = vmatpush2.msra.mxu0 0.0
  %308 = vmatprep.subr.mxu0 0.0
  %309 = vmatpush2.msra.mxu0 0.0
  %310 = vmatprep.subr.mxu0 0.0
  %311 = vmatpush2.msra.mxu0 0.0
  %312 = vmatprep.subr.mxu0 0.0
  %313 = vmatpush2.msra.mxu0 0.0
  %314 = vmatprep.subr.mxu0 0.0
  %315 = vmatpush2.msra.mxu0 0.0
  %316 = vmatprep.subr.mxu0 0.0
  %317 = vmatpush2.msra.mxu0 0.0
  %318 = vmatprep.subr.mxu0 0.0
  %319 = vmatpush2.msra.mxu0 0.0
  %320 = vmatprep.subr.mxu0 0.0
  %321 = vmatpush2.msra.mxu0 0.0
  %322 = vmatprep.subr.mxu0 0.0
  %323 = vmatpush2.msra.mxu0 0.0
  %324 = vmatprep.subr.mxu0 0.0
  %325 = vmatpush2.msra.mxu0 0.0
  %326 = vmatprep.subr.mxu0 0.0
  %327 = vmatpush2.msra.mxu0 0.0
  %328 = vmatprep.subr.mxu0 0.0
  %329 = vmatpush2.msra.mxu0 0.0
  %330 = vmatprep.subr.mxu0 0.0
  %331 = vmatpush2.msra.mxu0 0.0
  %332 = vmatprep.mubr.f32.mxu0 0.0
  %333 = vmatmul.mubr.f32.gmra.mxu0 %v221
  %v334 = vpop.f32.mrf.mxu0
  %v335 = vadd.f32 0.0, %v334
  %v336 = vpop.f32.mrf.mxu0
  %337 = vmatprep.mubr.f32.mxu0 0.0
  %338 = vmatmul.mubr.f32.gmra.mxu0 %v224
  %v339 = vpop.f32.mrf.mxu0
  %v340 = vadd.f32 0.0, %v339
  %v341 = vpop.f32.mrf.mxu0
  %342 = vmatprep.mubr.f32.mxu0 0.0
  %343 = vmatmul.mubr.f32.gmra.mxu0 %v227
  %v344 = vpop.f32.mrf.mxu0
  %v345 = vadd.f32 0.0, %v344
  %v346 = vpop.f32.mrf.mxu0
  %347 = vmatprep.mubr.f32.mxu0 0.0
  %348 = vmatmul.mubr.f32.gmra.mxu0 %v230
  %v349 = vpop.f32.mrf.mxu0
  %v350 = vadd.f32 0.0, %v349
  %v351 = vpop.f32.mrf.mxu0
  %352 = vmatprep.mubr.f32.mxu0 0.0
  %353 = vmatmul.mubr.f32.gmra.mxu0 %v233
  %v354 = vpop.f32.mrf.mxu0
  %v355 = vadd.f32 0.0, %v354
  %v356 = vpop.f32.mrf.mxu0
  %357 = vmatprep.mubr.f32.mxu0 0.0
  %358 = vmatmul.mubr.f32.gmra.mxu0 %v236
  %v359 = vpop.f32.mrf.mxu0
  %v360 = vadd.f32 0.0, %v359
  %v361 = vpop.f32.mrf.mxu0
  %362 = vmatprep.mubr.f32.mxu0 0.0
  %363 = vmatmul.mubr.f32.gmra.mxu0 %v239
  %v364 = vpop.f32.mrf.mxu0
  %v365 = vadd.f32 0.0, %v364
  %v366 = vpop.f32.mrf.mxu0
  %367 = vmatprep.mubr.f32.mxu0 0.0
  %368 = vmatmul.mubr.f32.gmra.mxu0 %v242
  %v369 = vpop.f32.mrf.mxu0
  %v370 = vadd.f32 0.0, %v369
  %v371 = vpop.f32.mrf.mxu0
  %372 = vmatprep.mubr.f32.mxu0 0.0
  %373 = vmatmul.mubr.f32.gmra.mxu0 %v245
  %v374 = vpop.f32.mrf.mxu0
  %v375 = vadd.f32 0.0, %v374
  %v376 = vpop.f32.mrf.mxu0
  %377 = vmatprep.mubr.f32.mxu0 0.0
  %378 = vmatmul.mubr.f32.gmra.mxu0 %v248
  %v379 = vpop.f32.mrf.mxu0
  %v380 = vadd.f32 0.0, %v379
  %v381 = vpop.f32.mrf.mxu0
  %382 = vmatprep.mubr.f32.mxu0 0.0
  %383 = vmatmul.mubr.f32.gmra.mxu0 %v251
  %v384 = vpop.f32.mrf.mxu0
  %v385 = vadd.f32 0.0, %v384
  %v386 = vpop.f32.mrf.mxu0
  %387 = vmatprep.mubr.f32.mxu0 0.0
  %388 = vmatmul.mubr.f32.gmra.mxu0 %v254
  %v389 = vpop.f32.mrf.mxu0
  %v390 = vadd.f32 0.0, %v389
  %v391 = vpop.f32.mrf.mxu0
  %392 = vmatprep.mubr.f32.mxu0 0.0
  %393 = vmatmul.mubr.f32.gmra.mxu0 %v257
  %v394 = vpop.f32.mrf.mxu0
  %v395 = vadd.f32 0.0, %v394
  %v396 = vpop.f32.mrf.mxu0
  %397 = vmatprep.mubr.f32.mxu0 0.0
  %398 = vmatmul.mubr.f32.gmra.mxu0 %v260
  %v399 = vpop.f32.mrf.mxu0
  %v400 = vadd.f32 0.0, %v399
  %v401 = vpop.f32.mrf.mxu0
  %402 = vmatprep.mubr.f32.mxu0 0.0
  %403 = vmatmul.mubr.f32.gmra.mxu0 %v263
  %v404 = vpop.f32.mrf.mxu0
  %v405 = vadd.f32 0.0, %v404
  %v406 = vpop.f32.mrf.mxu0
  %407 = vmatprep.mubr.f32.mxu0 0.0
  %408 = vmatmul.mubr.f32.gmra.mxu0 %v266
  %v409 = vpop.f32.mrf.mxu0
  %v410 = vadd.f32 0.0, %v409
  %v411 = vpop.f32.mrf.mxu0
  %412 = vdwg.mxu0
  %v413 = vsub.f32 %v26, %v335
  %v414 = vsub.f32 %v27, %v340
  %v415 = vsub.f32 %v28, %v345
  %v416 = vsub.f32 %v29, %v350
  %v417 = vsub.f32 %v30, %v355
  %v418 = vsub.f32 %v31, %v360
  %v419 = vsub.f32 %v32, %v365
  %v420 = vsub.f32 %v33, %v370
  %v421 = vsub.f32 %v34, %v375
  %v422 = vsub.f32 %v35, %v380
  %v423 = vsub.f32 %v36, %v385
  %v424 = vsub.f32 %v37, %v390
  %v425 = vsub.f32 %v38, %v395
  %v426 = vsub.f32 %v39, %v400
  %v427 = vsub.f32 %v40, %v405
  %v428 = vsub.f32 %v41, %v410
  %v429 = vmul.f32 %v413, %v413
  %v430 = vmul.f32 %v414, %v414
  %v431 = vmul.f32 %v415, %v415
  %v432 = vmul.f32 %v416, %v416
  %v433 = vmul.f32 %v417, %v417
  %v434 = vmul.f32 %v418, %v418
  %v435 = vmul.f32 %v419, %v419
  %v436 = vmul.f32 %v420, %v420
  %v437 = vmul.f32 %v421, %v421
  %v438 = vmul.f32 %v422, %v422
  %v439 = vmul.f32 %v423, %v423
  %v440 = vmul.f32 %v424, %v424
  %v441 = vmul.f32 %v425, %v425
  %v442 = vmul.f32 %v426, %v426
  %v443 = vmul.f32 %v427, %v427
  %v444 = vmul.f32 %v428, %v428
  %445 = vmatprep.subr.mxu0 0.0
  %446 = vmatpush1.msra.mxu0 %v444
  %447 = vmatprep.subr.mxu0 0.0
  %448 = vmatpush1.msra.mxu0 %v443
  %449 = vmatprep.subr.mxu0 0.0
  %450 = vmatpush1.msra.mxu0 %v442
  %451 = vmatprep.subr.mxu0 0.0
  %452 = vmatpush1.msra.mxu0 %v441
  %453 = vmatprep.subr.mxu0 0.0
  %454 = vmatpush1.msra.mxu0 %v440
  %455 = vmatprep.subr.mxu0 0.0
  %456 = vmatpush1.msra.mxu0 %v439
  %457 = vmatprep.subr.mxu0 0.0
  %458 = vmatpush1.msra.mxu0 %v438
  %459 = vmatprep.subr.mxu0 0.0
  %460 = vmatpush1.msra.mxu0 %v437
  %461 = vmatprep.subr.mxu0 0.0
  %462 = vmatpush1.msra.mxu0 %v436
  %463 = vmatprep.subr.mxu0 0.0
  %464 = vmatpush1.msra.mxu0 %v435
  %465 = vmatprep.subr.mxu0 0.0
  %466 = vmatpush1.msra.mxu0 %v434
  %467 = vmatprep.subr.mxu0 0.0
  %468 = vmatpush1.msra.mxu0 %v433
  %469 = vmatprep.subr.mxu0 0.0
  %470 = vmatpush1.msra.mxu0 %v432
  %471 = vmatprep.subr.mxu0 0.0
  %472 = vmatpush1.msra.mxu0 %v431
  %473 = vmatprep.subr.mxu0 0.0
  %474 = vmatpush1.msra.mxu0 %v430
  %475 = vmatprep.subr.mxu0 0.0
  %476 = vmatpush1.msra.mxu0 %v429
  %477 = vmatprep.subr.mxu0 0.0
  %478 = vmatpush2.msra.mxu0 0.0
  %479 = vmatprep.subr.mxu0 0.0
  %480 = vmatpush2.msra.mxu0 0.0
  %481 = vmatprep.subr.mxu0 0.0
  %482 = vmatpush2.msra.mxu0 0.0
  %483 = vmatprep.subr.mxu0 0.0
  %484 = vmatpush2.msra.mxu0 0.0
  %485 = vmatprep.subr.mxu0 0.0
  %486 = vmatpush2.msra.mxu0 0.0
  %487 = vmatprep.subr.mxu0 0.0
  %488 = vmatpush2.msra.mxu0 0.0
  %489 = vmatprep.subr.mxu0 0.0
  %490 = vmatpush2.msra.mxu0 0.0
  %491 = vmatprep.subr.mxu0 0.0
  %492 = vmatpush2.msra.mxu0 0.0
  %493 = vmatprep.subr.mxu0 0.0
  %494 = vmatpush2.msra.mxu0 0.0
  %495 = vmatprep.subr.mxu0 0.0
  %496 = vmatpush2.msra.mxu0 0.0
  %497 = vmatprep.subr.mxu0 0.0
  %498 = vmatpush2.msra.mxu0 0.0
  %499 = vmatprep.subr.mxu0 0.0
  %500 = vmatpush2.msra.mxu0 0.0
  %501 = vmatprep.subr.mxu0 0.0
  %502 = vmatpush2.msra.mxu0 0.0
  %503 = vmatprep.subr.mxu0 0.0
  %504 = vmatpush2.msra.mxu0 0.0
  %505 = vmatprep.subr.mxu0 0.0
  %506 = vmatpush2.msra.mxu0 0.0
  %507 = vmatprep.subr.mxu0 0.0
  %508 = vmatpush2.msra.mxu0 0.0
  %509 = vmatprep.mubr.f32.mxu0 0.0
  %510 = vmatmul.mubr.f32.gmra.mxu0 %v42
  %v511 = vpop.f32.mrf.mxu0
  %v512 = vadd.f32 0.0, %v511
  %v513 = vpop.f32.mrf.mxu0
  %514 = vmatprep.mubr.f32.mxu0 0.0
  %515 = vmatmul.mubr.f32.gmra.mxu0 %v43
  %v516 = vpop.f32.mrf.mxu0
  %v517 = vadd.f32 0.0, %v516
  %v518 = vpop.f32.mrf.mxu0
  %519 = vmatprep.mubr.f32.mxu0 0.0
  %520 = vmatmul.mubr.f32.gmra.mxu0 %v44
  %v521 = vpop.f32.mrf.mxu0
  %v522 = vadd.f32 0.0, %v521
  %v523 = vpop.f32.mrf.mxu0
  %524 = vmatprep.mubr.f32.mxu0 0.0
  %525 = vmatmul.mubr.f32.gmra.mxu0 %v45
  %v526 = vpop.f32.mrf.mxu0
  %v527 = vadd.f32 0.0, %v526
  %v528 = vpop.f32.mrf.mxu0
  %529 = vmatprep.mubr.f32.mxu0 0.0
  %530 = vmatmul.mubr.f32.gmra.mxu0 %v46
  %v531 = vpop.f32.mrf.mxu0
  %v532 = vadd.f32 0.0, %v531
  %v533 = vpop.f32.mrf.mxu0
  %534 = vmatprep.mubr.f32.mxu0 0.0
  %535 = vmatmul.mubr.f32.gmra.mxu0 %v47
  %v536 = vpop.f32.mrf.mxu0
  %v537 = vadd.f32 0.0, %v536
  %v538 = vpop.f32.mrf.mxu0
  %539 = vmatprep.mubr.f32.mxu0 0.0
  %540 = vmatmul.mubr.f32.gmra.mxu0 %v48
  %v541 = vpop.f32.mrf.mxu0
  %v542 = vadd.f32 0.0, %v541
  %v543 = vpop.f32.mrf.mxu0
  %544 = vmatprep.mubr.f32.mxu0 0.0
  %545 = vmatmul.mubr.f32.gmra.mxu0 %v49
  %v546 = vpop.f32.mrf.mxu0
  %v547 = vadd.f32 0.0, %v546
  %v548 = vpop.f32.mrf.mxu0
  %549 = vmatprep.mubr.f32.mxu0 0.0
  %550 = vmatmul.mubr.f32.gmra.mxu0 %v50
  %v551 = vpop.f32.mrf.mxu0
  %v552 = vadd.f32 0.0, %v551
  %v553 = vpop.f32.mrf.mxu0
  %554 = vmatprep.mubr.f32.mxu0 0.0
  %555 = vmatmul.mubr.f32.gmra.mxu0 %v51
  %v556 = vpop.f32.mrf.mxu0
  %v557 = vadd.f32 0.0, %v556
  %v558 = vpop.f32.mrf.mxu0
  %559 = vmatprep.mubr.f32.mxu0 0.0
  %560 = vmatmul.mubr.f32.gmra.mxu0 %v52
  %v561 = vpop.f32.mrf.mxu0
  %v562 = vadd.f32 0.0, %v561
  %v563 = vpop.f32.mrf.mxu0
  %564 = vmatprep.mubr.f32.mxu0 0.0
  %565 = vmatmul.mubr.f32.gmra.mxu0 %v53
  %v566 = vpop.f32.mrf.mxu0
  %v567 = vadd.f32 0.0, %v566
  %v568 = vpop.f32.mrf.mxu0
  %569 = vmatprep.mubr.f32.mxu0 0.0
  %570 = vmatmul.mubr.f32.gmra.mxu0 %v54
  %v571 = vpop.f32.mrf.mxu0
  %v572 = vadd.f32 0.0, %v571
  %v573 = vpop.f32.mrf.mxu0
  %574 = vmatprep.mubr.f32.mxu0 0.0
  %575 = vmatmul.mubr.f32.gmra.mxu0 %v55
  %v576 = vpop.f32.mrf.mxu0
  %v577 = vadd.f32 0.0, %v576
  %v578 = vpop.f32.mrf.mxu0
  %579 = vmatprep.mubr.f32.mxu0 0.0
  %580 = vmatmul.mubr.f32.gmra.mxu0 %v56
  %v581 = vpop.f32.mrf.mxu0
  %v582 = vadd.f32 0.0, %v581
  %v583 = vpop.f32.mrf.mxu0
  %584 = vmatprep.mubr.f32.mxu0 0.0
  %585 = vmatmul.mubr.f32.gmra.mxu0 %v57
  %v586 = vpop.f32.mrf.mxu0
  %v587 = vadd.f32 0.0, %v586
  %v588 = vpop.f32.mrf.mxu0
  %589 = vdwg.mxu0
  %v591 = vsel %vm219, %v512, 0
  %v594 = vsel %vm219, %v517, 0
  %v597 = vsel %vm219, %v522, 0
  %v600 = vsel %vm219, %v527, 0
  %v603 = vsel %vm219, %v532, 0
  %v606 = vsel %vm219, %v537, 0
  %v609 = vsel %vm219, %v542, 0
  %v612 = vsel %vm219, %v547, 0
  %v615 = vsel %vm219, %v552, 0
  %v618 = vsel %vm219, %v557, 0
  %v621 = vsel %vm219, %v562, 0
  %v624 = vsel %vm219, %v567, 0
  %v627 = vsel %vm219, %v572, 0
  %v630 = vsel %vm219, %v577, 0
  %v633 = vsel %vm219, %v582, 0
  %v636 = vsel %vm219, %v587, 0
  %638 = vmatprep.subr.mxu0 0.0
  %639 = vmatpush1.msra.mxu0 0.0
  %640 = vmatprep.subr.mxu0 0.0
  %641 = vmatpush1.msra.mxu0 0.0
  %642 = vmatprep.subr.mxu0 0.0
  %643 = vmatpush1.msra.mxu0 0.0
  %644 = vmatprep.subr.mxu0 0.0
  %645 = vmatpush1.msra.mxu0 0.0
  %646 = vmatprep.subr.mxu0 0.0
  %647 = vmatpush1.msra.mxu0 0.0
  %648 = vmatprep.subr.mxu0 0.0
  %649 = vmatpush1.msra.mxu0 0.0
  %650 = vmatprep.subr.mxu0 0.0
  %651 = vmatpush1.msra.mxu0 0.0
  %652 = vmatprep.subr.mxu0 0.0
  %653 = vmatpush1.msra.mxu0 0.0
  %654 = vmatprep.subr.mxu0 0.0
  %655 = vmatpush1.msra.mxu0 0.0
  %656 = vmatprep.subr.mxu0 0.0
  %657 = vmatpush1.msra.mxu0 0.0
  %658 = vmatprep.subr.mxu0 0.0
  %659 = vmatpush1.msra.mxu0 0.0
  %660 = vmatprep.subr.mxu0 0.0
  %661 = vmatpush1.msra.mxu0 0.0
  %662 = vmatprep.subr.mxu0 0.0
  %663 = vmatpush1.msra.mxu0 0.0
  %664 = vmatprep.subr.mxu0 0.0
  %665 = vmatpush1.msra.mxu0 0.0
  %666 = vmatprep.subr.mxu0 0.0
  %667 = vmatpush1.msra.mxu0 1.0
  %668 = vmatprep.subr.mxu0 0.0
  %669 = vmatpush1.msra.mxu0 1.0
  %670 = vmatprep.subr.mxu0 0.0
  %671 = vmatpush2.msra.mxu0 0.0
  %672 = vmatprep.subr.mxu0 0.0
  %673 = vmatpush2.msra.mxu0 0.0
  %674 = vmatprep.subr.mxu0 0.0
  %675 = vmatpush2.msra.mxu0 0.0
  %676 = vmatprep.subr.mxu0 0.0
  %677 = vmatpush2.msra.mxu0 0.0
  %678 = vmatprep.subr.mxu0 0.0
  %679 = vmatpush2.msra.mxu0 0.0
  %680 = vmatprep.subr.mxu0 0.0
  %681 = vmatpush2.msra.mxu0 0.0
  %682 = vmatprep.subr.mxu0 0.0
  %683 = vmatpush2.msra.mxu0 0.0
  %684 = vmatprep.subr.mxu0 0.0
  %685 = vmatpush2.msra.mxu0 0.0
  %686 = vmatprep.subr.mxu0 0.0
  %687 = vmatpush2.msra.mxu0 0.0
  %688 = vmatprep.subr.mxu0 0.0
  %689 = vmatpush2.msra.mxu0 0.0
  %690 = vmatprep.subr.mxu0 0.0
  %691 = vmatpush2.msra.mxu0 0.0
  %692 = vmatprep.subr.mxu0 0.0
  %693 = vmatpush2.msra.mxu0 0.0
  %694 = vmatprep.subr.mxu0 0.0
  %695 = vmatpush2.msra.mxu0 0.0
  %696 = vmatprep.subr.mxu0 0.0
  %697 = vmatpush2.msra.mxu0 0.0
  %698 = vmatprep.subr.mxu0 0.0
  %699 = vmatpush2.msra.mxu0 0.0
  %700 = vmatprep.subr.mxu0 0.0
  %701 = vmatpush2.msra.mxu0 0.0
  %702 = vmatprep.mubr.f32.mxu0 0.0
  %703 = vmatmul.mubr.f32.gmra.mxu0 %v591
  %v704 = vpop.f32.mrf.mxu0
  %v705 = vadd.f32 1e-05, %v704
  %v706 = vpop.f32.mrf.mxu0
  %707 = vmatprep.mubr.f32.mxu0 0.0
  %708 = vmatmul.mubr.f32.gmra.mxu0 %v594
  %v709 = vpop.f32.mrf.mxu0
  %v710 = vadd.f32 1e-05, %v709
  %v711 = vpop.f32.mrf.mxu0
  %712 = vmatprep.mubr.f32.mxu0 0.0
  %713 = vmatmul.mubr.f32.gmra.mxu0 %v597
  %v714 = vpop.f32.mrf.mxu0
  %v715 = vadd.f32 1e-05, %v714
  %v716 = vpop.f32.mrf.mxu0
  %717 = vmatprep.mubr.f32.mxu0 0.0
  %718 = vmatmul.mubr.f32.gmra.mxu0 %v600
  %v719 = vpop.f32.mrf.mxu0
  %v720 = vadd.f32 1e-05, %v719
  %v721 = vpop.f32.mrf.mxu0
  %722 = vmatprep.mubr.f32.mxu0 0.0
  %723 = vmatmul.mubr.f32.gmra.mxu0 %v603
  %v724 = vpop.f32.mrf.mxu0
  %v725 = vadd.f32 1e-05, %v724
  %v726 = vpop.f32.mrf.mxu0
  %727 = vmatprep.mubr.f32.mxu0 0.0
  %728 = vmatmul.mubr.f32.gmra.mxu0 %v606
  %v729 = vpop.f32.mrf.mxu0
  %v730 = vadd.f32 1e-05, %v729
  %v731 = vpop.f32.mrf.mxu0
  %732 = vmatprep.mubr.f32.mxu0 0.0
  %733 = vmatmul.mubr.f32.gmra.mxu0 %v609
  %v734 = vpop.f32.mrf.mxu0
  %v735 = vadd.f32 1e-05, %v734
  %v736 = vpop.f32.mrf.mxu0
  %737 = vmatprep.mubr.f32.mxu0 0.0
  %738 = vmatmul.mubr.f32.gmra.mxu0 %v612
  %v739 = vpop.f32.mrf.mxu0
  %v740 = vadd.f32 1e-05, %v739
  %v741 = vpop.f32.mrf.mxu0
  %742 = vmatprep.mubr.f32.mxu0 0.0
  %743 = vmatmul.mubr.f32.gmra.mxu0 %v615
  %v744 = vpop.f32.mrf.mxu0
  %v745 = vadd.f32 1e-05, %v744
  %v746 = vpop.f32.mrf.mxu0
  %747 = vmatprep.mubr.f32.mxu0 0.0
  %748 = vmatmul.mubr.f32.gmra.mxu0 %v618
  %v749 = vpop.f32.mrf.mxu0
  %v750 = vadd.f32 1e-05, %v749
  %v751 = vpop.f32.mrf.mxu0
  %752 = vmatprep.mubr.f32.mxu0 0.0
  %753 = vmatmul.mubr.f32.gmra.mxu0 %v621
  %v754 = vpop.f32.mrf.mxu0
  %v755 = vadd.f32 1e-05, %v754
  %v756 = vpop.f32.mrf.mxu0
  %757 = vmatprep.mubr.f32.mxu0 0.0
  %758 = vmatmul.mubr.f32.gmra.mxu0 %v624
  %v759 = vpop.f32.mrf.mxu0
  %v760 = vadd.f32 1e-05, %v759
  %v761 = vpop.f32.mrf.mxu0
  %762 = vmatprep.mubr.f32.mxu0 0.0
  %763 = vmatmul.mubr.f32.gmra.mxu0 %v627
  %v764 = vpop.f32.mrf.mxu0
  %v765 = vadd.f32 1e-05, %v764
  %v766 = vpop.f32.mrf.mxu0
  %767 = vmatprep.mubr.f32.mxu0 0.0
  %768 = vmatmul.mubr.f32.gmra.mxu0 %v630
  %v769 = vpop.f32.mrf.mxu0
  %v770 = vadd.f32 1e-05, %v769
  %v771 = vpop.f32.mrf.mxu0
  %772 = vmatprep.mubr.f32.mxu0 0.0
  %773 = vmatmul.mubr.f32.gmra.mxu0 %v633
  %v774 = vpop.f32.mrf.mxu0
  %v775 = vadd.f32 1e-05, %v774
  %v776 = vpop.f32.mrf.mxu0
  %777 = vmatprep.mubr.f32.mxu0 0.0
  %778 = vmatmul.mubr.f32.gmra.mxu0 %v636
  %v779 = vpop.f32.mrf.mxu0
  %v780 = vadd.f32 1e-05, %v779
  %v781 = vpop.f32.mrf.mxu0
  %782 = vdwg.mxu0
  %v783 = vrsqrt.pop %v705
  %v784 = vrsqrt.pop %v710
  %v785 = vrsqrt.pop %v715
  %v786 = vrsqrt.pop %v720
  %v787 = vrsqrt.pop %v725
  %v788 = vrsqrt.pop %v730
  %v789 = vrsqrt.pop %v735
  %v790 = vrsqrt.pop %v740
  %v791 = vrsqrt.pop %v745
  %v792 = vrsqrt.pop %v750
  %v793 = vrsqrt.pop %v755
  %v794 = vrsqrt.pop %v760
  %v795 = vrsqrt.pop %v765
  %v796 = vrsqrt.pop %v770
  %v797 = vrsqrt.pop %v775
  %v798 = vrsqrt.pop %v780
  %800 = vset.pattern.permute.xlu0 0
  %801 = vperm.xlu0 %800, %v58
  %v802 = vpop.permute.xlu0 %801
  %805 = vset.pattern.permute.xlu0 0
  %806 = vperm.xlu0 %805, %v59
  %v807 = vpop.permute.xlu0 %806
  %810 = vset.pattern.permute.xlu0 0
  %811 = vperm.xlu0 %810, %v60
  %v812 = vpop.permute.xlu0 %811
  %815 = vset.pattern.permute.xlu0 0
  %816 = vperm.xlu0 %815, %v61
  %v817 = vpop.permute.xlu0 %816
  %820 = vset.pattern.permute.xlu0 0
  %821 = vperm.xlu0 %820, %v62
  %v822 = vpop.permute.xlu0 %821
  %825 = vset.pattern.permute.xlu0 0
  %826 = vperm.xlu0 %825, %v63
  %v827 = vpop.permute.xlu0 %826
  %830 = vset.pattern.permute.xlu0 0
  %831 = vperm.xlu0 %830, %v64
  %v832 = vpop.permute.xlu0 %831
  %835 = vset.pattern.permute.xlu0 0
  %836 = vperm.xlu0 %835, %v65
  %v837 = vpop.permute.xlu0 %836
  %840 = vset.pattern.permute.xlu0 0
  %841 = vperm.xlu0 %840, %v66
  %v842 = vpop.permute.xlu0 %841
  %845 = vset.pattern.permute.xlu0 0
  %846 = vperm.xlu0 %845, %v67
  %v847 = vpop.permute.xlu0 %846
  %850 = vset.pattern.permute.xlu0 0
  %851 = vperm.xlu0 %850, %v68
  %v852 = vpop.permute.xlu0 %851
  %855 = vset.pattern.permute.xlu0 0
  %856 = vperm.xlu0 %855, %v69
  %v857 = vpop.permute.xlu0 %856
  %860 = vset.pattern.permute.xlu0 0
  %861 = vperm.xlu0 %860, %v70
  %v862 = vpop.permute.xlu0 %861
  %865 = vset.pattern.permute.xlu0 0
  %866 = vperm.xlu0 %865, %v71
  %v867 = vpop.permute.xlu0 %866
  %870 = vset.pattern.permute.xlu0 0
  %871 = vperm.xlu0 %870, %v72
  %v872 = vpop.permute.xlu0 %871
  %875 = vset.pattern.permute.xlu0 0
  %876 = vperm.xlu0 %875, %v73
  %v877 = vpop.permute.xlu0 %876
  %v879 = vmul.f32 %v783, %v802
  %v880 = vmul.f32 %v784, %v807
  %v881 = vmul.f32 %v785, %v812
  %v882 = vmul.f32 %v786, %v817
  %v883 = vmul.f32 %v787, %v822
  %v884 = vmul.f32 %v788, %v827
  %v885 = vmul.f32 %v789, %v832
  %v886 = vmul.f32 %v790, %v837
  %v887 = vmul.f32 %v791, %v842
  %v888 = vmul.f32 %v792, %v847
  %v889 = vmul.f32 %v793, %v852
  %v890 = vmul.f32 %v794, %v857
  %v891 = vmul.f32 %v795, %v862
  %v892 = vmul.f32 %v796, %v867
  %v893 = vmul.f32 %v797, %v872
  %v894 = vmul.f32 %v798, %v877
  %v895 = vmul.f32 %v413, %v879
  %v896 = vmul.f32 %v414, %v880
  %v897 = vmul.f32 %v415, %v881
  %v898 = vmul.f32 %v416, %v882
  %v899 = vmul.f32 %v417, %v883
  %v900 = vmul.f32 %v418, %v884
  %v901 = vmul.f32 %v419, %v885
  %v902 = vmul.f32 %v420, %v886
  %v903 = vmul.f32 %v421, %v887
  %v904 = vmul.f32 %v422, %v888
  %v905 = vmul.f32 %v423, %v889
  %v906 = vmul.f32 %v424, %v890
  %v907 = vmul.f32 %v425, %v891
  %v908 = vmul.f32 %v426, %v892
  %v909 = vmul.f32 %v427, %v893
  %v910 = vmul.f32 %v428, %v894
  %911 = vset.pattern.permute.xlu0 1
  %912 = vperm.xlu0 %911, %v58
  %v913 = vpop.permute.xlu0 %912
  %915 = vset.pattern.permute.xlu0 1
  %916 = vperm.xlu0 %915, %v59
  %v917 = vpop.permute.xlu0 %916
  %919 = vset.pattern.permute.xlu0 1
  %920 = vperm.xlu0 %919, %v60
  %v921 = vpop.permute.xlu0 %920
  %923 = vset.pattern.permute.xlu0 1
  %924 = vperm.xlu0 %923, %v61
  %v925 = vpop.permute.xlu0 %924
  %927 = vset.pattern.permute.xlu0 1
  %928 = vperm.xlu0 %927, %v62
  %v929 = vpop.permute.xlu0 %928
  %931 = vset.pattern.permute.xlu0 1
  %932 = vperm.xlu0 %931, %v63
  %v933 = vpop.permute.xlu0 %932
  %935 = vset.pattern.permute.xlu0 1
  %936 = vperm.xlu0 %935, %v64
  %v937 = vpop.permute.xlu0 %936
  %939 = vset.pattern.permute.xlu0 1
  %940 = vperm.xlu0 %939, %v65
  %v941 = vpop.permute.xlu0 %940
  %943 = vset.pattern.permute.xlu0 1
  %944 = vperm.xlu0 %943, %v66
  %v945 = vpop.permute.xlu0 %944
  %947 = vset.pattern.permute.xlu0 1
  %948 = vperm.xlu0 %947, %v67
  %v949 = vpop.permute.xlu0 %948
  %951 = vset.pattern.permute.xlu0 1
  %952 = vperm.xlu0 %951, %v68
  %v953 = vpop.permute.xlu0 %952
  %955 = vset.pattern.permute.xlu0 1
  %956 = vperm.xlu0 %955, %v69
  %v957 = vpop.permute.xlu0 %956
  %959 = vset.pattern.permute.xlu0 1
  %960 = vperm.xlu0 %959, %v70
  %v961 = vpop.permute.xlu0 %960
  %963 = vset.pattern.permute.xlu0 1
  %964 = vperm.xlu0 %963, %v71
  %v965 = vpop.permute.xlu0 %964
  %967 = vset.pattern.permute.xlu0 1
  %968 = vperm.xlu0 %967, %v72
  %v969 = vpop.permute.xlu0 %968
  %971 = vset.pattern.permute.xlu0 1
  %972 = vperm.xlu0 %971, %v73
  %v973 = vpop.permute.xlu0 %972
  %v975 = vadd.f32 %v895, %v913
  %v976 = vadd.f32 %v896, %v917
  %v977 = vadd.f32 %v897, %v921
  %v978 = vadd.f32 %v898, %v925
  %v979 = vadd.f32 %v899, %v929
  %v980 = vadd.f32 %v900, %v933
  %v981 = vadd.f32 %v901, %v937
  %v982 = vadd.f32 %v902, %v941
  %v983 = vadd.f32 %v903, %v945
  %v984 = vadd.f32 %v904, %v949
  %v985 = vadd.f32 %v905, %v953
  %v986 = vadd.f32 %v906, %v957
  %v987 = vadd.f32 %v907, %v961
  %v988 = vadd.f32 %v908, %v965
  %v989 = vadd.f32 %v909, %v969
  %v990 = vadd.f32 %v910, %v973
  %v991 = vxor.u32 %v975, 2147483648
  %v992 = vxor.u32 %v976, 2147483648
  %v993 = vxor.u32 %v977, 2147483648
  %v994 = vxor.u32 %v978, 2147483648
  %v995 = vxor.u32 %v979, 2147483648
  %v996 = vxor.u32 %v980, 2147483648
  %v997 = vxor.u32 %v981, 2147483648
  %v998 = vxor.u32 %v982, 2147483648
  %v999 = vxor.u32 %v983, 2147483648
  %v1000 = vxor.u32 %v984, 2147483648
  %v1001 = vxor.u32 %v985, 2147483648
  %v1002 = vxor.u32 %v986, 2147483648
  %v1003 = vxor.u32 %v987, 2147483648
  %v1004 = vxor.u32 %v988, 2147483648
  %v1005 = vxor.u32 %v989, 2147483648
  %v1006 = vxor.u32 %v990, 2147483648
  %v1007 = vmul.f32 %v991, 1.442695
  %v1008 = vpow.pop %v1007
  %v1009 = vmul.f32 %v992, 1.442695
  %v1010 = vpow.pop %v1009
  %v1011 = vmul.f32 %v993, 1.442695
  %v1012 = vpow.pop %v1011
  %v1013 = vmul.f32 %v994, 1.442695
  %v1014 = vpow.pop %v1013
  %v1015 = vmul.f32 %v995, 1.442695
  %v1016 = vpow.pop %v1015
  %v1017 = vmul.f32 %v996, 1.442695
  %v1018 = vpow.pop %v1017
  %v1019 = vmul.f32 %v997, 1.442695
  %v1020 = vpow.pop %v1019
  %v1021 = vmul.f32 %v998, 1.442695
  %v1022 = vpow.pop %v1021
  %v1023 = vmul.f32 %v999, 1.442695
  %v1024 = vpow.pop %v1023
  %v1025 = vmul.f32 %v1000, 1.442695
  %v1026 = vpow.pop %v1025
  %v1027 = vmul.f32 %v1001, 1.442695
  %v1028 = vpow.pop %v1027
  %v1029 = vmul.f32 %v1002, 1.442695
  %v1030 = vpow.pop %v1029
  %v1031 = vmul.f32 %v1003, 1.442695
  %v1032 = vpow.pop %v1031
  %v1033 = vmul.f32 %v1004, 1.442695
  %v1034 = vpow.pop %v1033
  %v1035 = vmul.f32 %v1005, 1.442695
  %v1036 = vpow.pop %v1035
  %v1037 = vmul.f32 %v1006, 1.442695
  %v1038 = vpow.pop %v1037
  %v1039 = vadd.f32 %v1008, 1.0
  %v1040 = vadd.f32 %v1010, 1.0
  %v1041 = vadd.f32 %v1012, 1.0
  %v1042 = vadd.f32 %v1014, 1.0
  %v1043 = vadd.f32 %v1016, 1.0
  %v1044 = vadd.f32 %v1018, 1.0
  %v1045 = vadd.f32 %v1020, 1.0
  %v1046 = vadd.f32 %v1022, 1.0
  %v1047 = vadd.f32 %v1024, 1.0
  %v1048 = vadd.f32 %v1026, 1.0
  %v1049 = vadd.f32 %v1028, 1.0
  %v1050 = vadd.f32 %v1030, 1.0
  %v1051 = vadd.f32 %v1032, 1.0
  %v1052 = vadd.f32 %v1034, 1.0
  %v1053 = vadd.f32 %v1036, 1.0
  %v1054 = vadd.f32 %v1038, 1.0
  %v1055 = vrcp.pop %v1039
  %v1056 = vmul.f32 1.0, %v1055
  %v1057 = vrcp.pop %v1040
  %v1058 = vmul.f32 1.0, %v1057
  %v1059 = vrcp.pop %v1041
  %v1060 = vmul.f32 1.0, %v1059
  %v1061 = vrcp.pop %v1042
  %v1062 = vmul.f32 1.0, %v1061
  %v1063 = vrcp.pop %v1043
  %v1064 = vmul.f32 1.0, %v1063
  %v1065 = vrcp.pop %v1044
  %v1066 = vmul.f32 1.0, %v1065
  %v1067 = vrcp.pop %v1045
  %v1068 = vmul.f32 1.0, %v1067
  %v1069 = vrcp.pop %v1046
  %v1070 = vmul.f32 1.0, %v1069
  %v1071 = vrcp.pop %v1047
  %v1072 = vmul.f32 1.0, %v1071
  %v1073 = vrcp.pop %v1048
  %v1074 = vmul.f32 1.0, %v1073
  %v1075 = vrcp.pop %v1049
  %v1076 = vmul.f32 1.0, %v1075
  %v1077 = vrcp.pop %v1050
  %v1078 = vmul.f32 1.0, %v1077
  %v1079 = vrcp.pop %v1051
  %v1080 = vmul.f32 1.0, %v1079
  %v1081 = vrcp.pop %v1052
  %v1082 = vmul.f32 1.0, %v1081
  %v1083 = vrcp.pop %v1053
  %v1084 = vmul.f32 1.0, %v1083
  %v1085 = vrcp.pop %v1054
  %v1086 = vmul.f32 1.0, %v1085
  %v1087 = vmul.f32 %v975, %v1056
  %v1088 = vmul.f32 %v976, %v1058
  %v1089 = vmul.f32 %v977, %v1060
  %v1090 = vmul.f32 %v978, %v1062
  %v1091 = vmul.f32 %v979, %v1064
  %v1092 = vmul.f32 %v980, %v1066
  %v1093 = vmul.f32 %v981, %v1068
  %v1094 = vmul.f32 %v982, %v1070
  %v1095 = vmul.f32 %v983, %v1072
  %v1096 = vmul.f32 %v984, %v1074
  %v1097 = vmul.f32 %v985, %v1076
  %v1098 = vmul.f32 %v986, %v1078
  %v1099 = vmul.f32 %v987, %v1080
  %v1100 = vmul.f32 %v988, %v1082
  %v1101 = vmul.f32 %v989, %v1084
  %v1102 = vmul.f32 %v990, %v1086
  %v1103 = vld [vmem:[%s3] sm:$0xff]
  %v1104 = vld [vmem:[%s3 + $0x8] sm:$0xff]
  %v1105 = vld [vmem:[%s3 + $0x10] sm:$0xff]
  %v1106 = vld [vmem:[%s3 + $0x18] sm:$0xff]
  %v1107 = vld [vmem:[%s3 + $0x20] sm:$0xff]
  %v1108 = vld [vmem:[%s3 + $0x28] sm:$0xff]
  %v1109 = vld [vmem:[%s3 + $0x30] sm:$0xff]
  %v1110 = vld [vmem:[%s3 + $0x38] sm:$0xff]
  %v1111 = vld [vmem:[%s3 + $0x40] sm:$0xff]
  %v1112 = vld [vmem:[%s3 + $0x48] sm:$0xff]
  %v1113 = vld [vmem:[%s3 + $0x50] sm:$0xff]
  %v1114 = vld [vmem:[%s3 + $0x58] sm:$0xff]
  %v1115 = vld [vmem:[%s3 + $0x60] sm:$0xff]
  %v1116 = vld [vmem:[%s3 + $0x68] sm:$0xff]
  %v1117 = vld [vmem:[%s3 + $0x70] sm:$0xff]
  %v1118 = vld [vmem:[%s3 + $0x78] sm:$0xff]
  %v1119 = vld [vmem:[%s1] sm:$0xff]
  %v1120 = vld [vmem:[%s1 + $0x8] sm:$0xff]
  %v1121 = vld [vmem:[%s1 + $0x10] sm:$0xff]
  %v1122 = vld [vmem:[%s1 + $0x18] sm:$0xff]
  %v1123 = vld [vmem:[%s1 + $0x20] sm:$0xff]
  %v1124 = vld [vmem:[%s1 + $0x28] sm:$0xff]
  %v1125 = vld [vmem:[%s1 + $0x30] sm:$0xff]
  %v1126 = vld [vmem:[%s1 + $0x38] sm:$0xff]
  %v1127 = vxor.u32 %v1119, 2147483648
  %v1128 = vxor.u32 %v1120, 2147483648
  %v1129 = vxor.u32 %v1121, 2147483648
  %v1130 = vxor.u32 %v1122, 2147483648
  %v1131 = vxor.u32 %v1123, 2147483648
  %v1132 = vxor.u32 %v1124, 2147483648
  %v1133 = vxor.u32 %v1125, 2147483648
  %v1134 = vxor.u32 %v1126, 2147483648
  %v1135 = vmul.f32 %v1127, 1.442695
  %v1136 = vpow.pop %v1135
  %v1137 = vmul.f32 %v1128, 1.442695
  %v1138 = vpow.pop %v1137
  %v1139 = vmul.f32 %v1129, 1.442695
  %v1140 = vpow.pop %v1139
  %v1141 = vmul.f32 %v1130, 1.442695
  %v1142 = vpow.pop %v1141
  %v1143 = vmul.f32 %v1131, 1.442695
  %v1144 = vpow.pop %v1143
  %v1145 = vmul.f32 %v1132, 1.442695
  %v1146 = vpow.pop %v1145
  %v1147 = vmul.f32 %v1133, 1.442695
  %v1148 = vpow.pop %v1147
  %v1149 = vmul.f32 %v1134, 1.442695
  %v1150 = vpow.pop %v1149
  %v1151 = vadd.f32 %v1136, 1.0
  %v1152 = vadd.f32 %v1138, 1.0
  %v1153 = vadd.f32 %v1140, 1.0
  %v1154 = vadd.f32 %v1142, 1.0
  %v1155 = vadd.f32 %v1144, 1.0
  %v1156 = vadd.f32 %v1146, 1.0
  %v1157 = vadd.f32 %v1148, 1.0
  %v1158 = vadd.f32 %v1150, 1.0
  %v1159 = vrcp.pop %v1151
  %v1160 = vmul.f32 1.0, %v1159
  %v1161 = vrcp.pop %v1152
  %v1162 = vmul.f32 1.0, %v1161
  %v1163 = vrcp.pop %v1153
  %v1164 = vmul.f32 1.0, %v1163
  %v1165 = vrcp.pop %v1154
  %v1166 = vmul.f32 1.0, %v1165
  %v1167 = vrcp.pop %v1155
  %v1168 = vmul.f32 1.0, %v1167
  %v1169 = vrcp.pop %v1156
  %v1170 = vmul.f32 1.0, %v1169
  %v1171 = vrcp.pop %v1157
  %v1172 = vmul.f32 1.0, %v1171
  %v1173 = vrcp.pop %v1158
  %v1174 = vmul.f32 1.0, %v1173
  %v1175 = vmul.f32 %v1119, %v1160
  %v1176 = vmul.f32 %v1120, %v1162
  %v1177 = vmul.f32 %v1121, %v1164
  %v1178 = vmul.f32 %v1122, %v1166
  %v1179 = vmul.f32 %v1123, %v1168
  %v1180 = vmul.f32 %v1124, %v1170
  %v1181 = vmul.f32 %v1125, %v1172
  %v1182 = vmul.f32 %v1126, %v1174
  %1184 = vset.pattern.permute.xlu0 0
  %1185 = vperm.xlu0 %1184, %v1175
  %v1186 = vpop.permute.xlu0 %1185
  %1189 = vset.pattern.permute.xlu0 0
  %1190 = vperm.xlu0 %1189, %v1176
  %v1191 = vpop.permute.xlu0 %1190
  %1194 = vset.pattern.permute.xlu0 0
  %1195 = vperm.xlu0 %1194, %v1177
  %v1196 = vpop.permute.xlu0 %1195
  %1199 = vset.pattern.permute.xlu0 0
  %1200 = vperm.xlu0 %1199, %v1178
  %v1201 = vpop.permute.xlu0 %1200
  %1204 = vset.pattern.permute.xlu0 0
  %1205 = vperm.xlu0 %1204, %v1179
  %v1206 = vpop.permute.xlu0 %1205
  %1209 = vset.pattern.permute.xlu0 0
  %1210 = vperm.xlu0 %1209, %v1180
  %v1211 = vpop.permute.xlu0 %1210
  %1214 = vset.pattern.permute.xlu0 0
  %1215 = vperm.xlu0 %1214, %v1181
  %v1216 = vpop.permute.xlu0 %1215
  %1219 = vset.pattern.permute.xlu0 0
  %1220 = vperm.xlu0 %1219, %v1182
  %v1221 = vpop.permute.xlu0 %1220
  %v1223 = vld [vmem:[%s4] sm:$0xff]
  %v1224 = vld [vmem:[%s4 + $0x8] sm:$0xff]
  %v1225 = vld [vmem:[%s4 + $0x10] sm:$0xff]
  %v1226 = vld [vmem:[%s4 + $0x18] sm:$0xff]
  %v1227 = vld [vmem:[%s4 + $0x20] sm:$0xff]
  %v1228 = vld [vmem:[%s4 + $0x28] sm:$0xff]
  %v1229 = vld [vmem:[%s4 + $0x30] sm:$0xff]
  %v1230 = vld [vmem:[%s4 + $0x38] sm:$0xff]
  %v1231 = vld [vmem:[%s4 + $0x40] sm:$0xff]
  %v1232 = vld [vmem:[%s4 + $0x48] sm:$0xff]
  %v1233 = vld [vmem:[%s4 + $0x50] sm:$0xff]
  %v1234 = vld [vmem:[%s4 + $0x58] sm:$0xff]
  %v1235 = vld [vmem:[%s4 + $0x60] sm:$0xff]
  %v1236 = vld [vmem:[%s4 + $0x68] sm:$0xff]
  %v1237 = vld [vmem:[%s4 + $0x70] sm:$0xff]
  %v1238 = vld [vmem:[%s4 + $0x78] sm:$0xff]
  %vm1239 = vcmask 523264
  %v1241 = vsel %vm1239, %v1223, 0
  %v1244 = vsel %vm1239, %v1224, 0
  %v1247 = vsel %vm1239, %v1225, 0
  %v1250 = vsel %vm1239, %v1226, 0
  %v1253 = vsel %vm1239, %v1227, 0
  %v1256 = vsel %vm1239, %v1228, 0
  %v1259 = vsel %vm1239, %v1229, 0
  %v1262 = vsel %vm1239, %v1230, 0
  %v1265 = vsel %vm1239, %v1231, 0
  %v1268 = vsel %vm1239, %v1232, 0
  %v1271 = vsel %vm1239, %v1233, 0
  %v1274 = vsel %vm1239, %v1234, 0
  %v1277 = vsel %vm1239, %v1235, 0
  %v1280 = vsel %vm1239, %v1236, 0
  %v1283 = vsel %vm1239, %v1237, 0
  %v1286 = vsel %vm1239, %v1238, 0
  %1288 = vmatprep.subr.mxu0 0.0
  %1289 = vmatpush1.msra.mxu0 0.0
  %1290 = vmatprep.subr.mxu0 0.0
  %1291 = vmatpush1.msra.mxu0 0.0
  %1292 = vmatprep.subr.mxu0 0.0
  %1293 = vmatpush1.msra.mxu0 0.0
  %1294 = vmatprep.subr.mxu0 0.0
  %1295 = vmatpush1.msra.mxu0 0.0
  %1296 = vmatprep.subr.mxu0 0.0
  %1297 = vmatpush1.msra.mxu0 0.0
  %1298 = vmatprep.subr.mxu0 0.0
  %1299 = vmatpush1.msra.mxu0 0.0
  %1300 = vmatprep.subr.mxu0 0.0
  %1301 = vmatpush1.msra.mxu0 0.0
  %1302 = vmatprep.subr.mxu0 0.0
  %1303 = vmatpush1.msra.mxu0 0.0
  %1304 = vmatprep.subr.mxu0 0.0
  %1305 = vmatpush1.msra.mxu0 %v1221
  %1306 = vmatprep.subr.mxu0 0.0
  %1307 = vmatpush1.msra.mxu0 %v1216
  %1308 = vmatprep.subr.mxu0 0.0
  %1309 = vmatpush1.msra.mxu0 %v1211
  %1310 = vmatprep.subr.mxu0 0.0
  %1311 = vmatpush1.msra.mxu0 %v1206
  %1312 = vmatprep.subr.mxu0 0.0
  %1313 = vmatpush1.msra.mxu0 %v1201
  %1314 = vmatprep.subr.mxu0 0.0
  %1315 = vmatpush1.msra.mxu0 %v1196
  %1316 = vmatprep.subr.mxu0 0.0
  %1317 = vmatpush1.msra.mxu0 %v1191
  %1318 = vmatprep.subr.mxu0 0.0
  %1319 = vmatpush1.msra.mxu0 %v1186
  %1320 = vmatprep.subr.mxu0 0.0
  %1321 = vmatpush2.msra.mxu0 0.0
  %1322 = vmatprep.subr.mxu0 0.0
  %1323 = vmatpush2.msra.mxu0 0.0
  %1324 = vmatprep.subr.mxu0 0.0
  %1325 = vmatpush2.msra.mxu0 0.0
  %1326 = vmatprep.subr.mxu0 0.0
  %1327 = vmatpush2.msra.mxu0 0.0
  %1328 = vmatprep.subr.mxu0 0.0
  %1329 = vmatpush2.msra.mxu0 0.0
  %1330 = vmatprep.subr.mxu0 0.0
  %1331 = vmatpush2.msra.mxu0 0.0
  %1332 = vmatprep.subr.mxu0 0.0
  %1333 = vmatpush2.msra.mxu0 0.0
  %1334 = vmatprep.subr.mxu0 0.0
  %1335 = vmatpush2.msra.mxu0 0.0
  %1336 = vmatprep.subr.mxu0 0.0
  %1337 = vmatpush2.msra.mxu0 0.0
  %1338 = vmatprep.subr.mxu0 0.0
  %1339 = vmatpush2.msra.mxu0 0.0
  %1340 = vmatprep.subr.mxu0 0.0
  %1341 = vmatpush2.msra.mxu0 0.0
  %1342 = vmatprep.subr.mxu0 0.0
  %1343 = vmatpush2.msra.mxu0 0.0
  %1344 = vmatprep.subr.mxu0 0.0
  %1345 = vmatpush2.msra.mxu0 0.0
  %1346 = vmatprep.subr.mxu0 0.0
  %1347 = vmatpush2.msra.mxu0 0.0
  %1348 = vmatprep.subr.mxu0 0.0
  %1349 = vmatpush2.msra.mxu0 0.0
  %1350 = vmatprep.subr.mxu0 0.0
  %1351 = vmatpush2.msra.mxu0 0.0
  %1352 = vmatprep.mubr.f32.mxu0 0.0
  %1353 = vmatmul.mubr.f32.gmra.mxu0 %v1241
  %v1354 = vpop.f32.mrf.mxu0
  %v1355 = vadd.f32 0.0, %v1354
  %v1356 = vpop.f32.mrf.mxu0
  %1357 = vmatprep.mubr.f32.mxu0 0.0
  %1358 = vmatmul.mubr.f32.gmra.mxu0 %v1244
  %v1359 = vpop.f32.mrf.mxu0
  %v1360 = vadd.f32 0.0, %v1359
  %v1361 = vpop.f32.mrf.mxu0
  %1362 = vmatprep.mubr.f32.mxu0 0.0
  %1363 = vmatmul.mubr.f32.gmra.mxu0 %v1247
  %v1364 = vpop.f32.mrf.mxu0
  %v1365 = vadd.f32 0.0, %v1364
  %v1366 = vpop.f32.mrf.mxu0
  %1367 = vmatprep.mubr.f32.mxu0 0.0
  %1368 = vmatmul.mubr.f32.gmra.mxu0 %v1250
  %v1369 = vpop.f32.mrf.mxu0
  %v1370 = vadd.f32 0.0, %v1369
  %v1371 = vpop.f32.mrf.mxu0
  %1372 = vmatprep.mubr.f32.mxu0 0.0
  %1373 = vmatmul.mubr.f32.gmra.mxu0 %v1253
  %v1374 = vpop.f32.mrf.mxu0
  %v1375 = vadd.f32 0.0, %v1374
  %v1376 = vpop.f32.mrf.mxu0
  %1377 = vmatprep.mubr.f32.mxu0 0.0
  %1378 = vmatmul.mubr.f32.gmra.mxu0 %v1256
  %v1379 = vpop.f32.mrf.mxu0
  %v1380 = vadd.f32 0.0, %v1379
  %v1381 = vpop.f32.mrf.mxu0
  %1382 = vmatprep.mubr.f32.mxu0 0.0
  %1383 = vmatmul.mubr.f32.gmra.mxu0 %v1259
  %v1384 = vpop.f32.mrf.mxu0
  %v1385 = vadd.f32 0.0, %v1384
  %v1386 = vpop.f32.mrf.mxu0
  %1387 = vmatprep.mubr.f32.mxu0 0.0
  %1388 = vmatmul.mubr.f32.gmra.mxu0 %v1262
  %v1389 = vpop.f32.mrf.mxu0
  %v1390 = vadd.f32 0.0, %v1389
  %v1391 = vpop.f32.mrf.mxu0
  %1392 = vmatprep.mubr.f32.mxu0 0.0
  %1393 = vmatmul.mubr.f32.gmra.mxu0 %v1265
  %v1394 = vpop.f32.mrf.mxu0
  %v1395 = vadd.f32 0.0, %v1394
  %v1396 = vpop.f32.mrf.mxu0
  %1397 = vmatprep.mubr.f32.mxu0 0.0
  %1398 = vmatmul.mubr.f32.gmra.mxu0 %v1268
  %v1399 = vpop.f32.mrf.mxu0
  %v1400 = vadd.f32 0.0, %v1399
  %v1401 = vpop.f32.mrf.mxu0
  %1402 = vmatprep.mubr.f32.mxu0 0.0
  %1403 = vmatmul.mubr.f32.gmra.mxu0 %v1271
  %v1404 = vpop.f32.mrf.mxu0
  %v1405 = vadd.f32 0.0, %v1404
  %v1406 = vpop.f32.mrf.mxu0
  %1407 = vmatprep.mubr.f32.mxu0 0.0
  %1408 = vmatmul.mubr.f32.gmra.mxu0 %v1274
  %v1409 = vpop.f32.mrf.mxu0
  %v1410 = vadd.f32 0.0, %v1409
  %v1411 = vpop.f32.mrf.mxu0
  %1412 = vmatprep.mubr.f32.mxu0 0.0
  %1413 = vmatmul.mubr.f32.gmra.mxu0 %v1277
  %v1414 = vpop.f32.mrf.mxu0
  %v1415 = vadd.f32 0.0, %v1414
  %v1416 = vpop.f32.mrf.mxu0
  %1417 = vmatprep.mubr.f32.mxu0 0.0
  %1418 = vmatmul.mubr.f32.gmra.mxu0 %v1280
  %v1419 = vpop.f32.mrf.mxu0
  %v1420 = vadd.f32 0.0, %v1419
  %v1421 = vpop.f32.mrf.mxu0
  %1422 = vmatprep.mubr.f32.mxu0 0.0
  %1423 = vmatmul.mubr.f32.gmra.mxu0 %v1283
  %v1424 = vpop.f32.mrf.mxu0
  %v1425 = vadd.f32 0.0, %v1424
  %v1426 = vpop.f32.mrf.mxu0
  %1427 = vmatprep.mubr.f32.mxu0 0.0
  %1428 = vmatmul.mubr.f32.gmra.mxu0 %v1286
  %v1429 = vpop.f32.mrf.mxu0
  %v1430 = vadd.f32 0.0, %v1429
  %v1431 = vpop.f32.mrf.mxu0
  %1432 = vdwg.mxu0
  %1433 = vmatprep.subr.mxu0 0.0
  %1434 = vmatpush1.msra.mxu0 %v1102
  %1435 = vmatprep.subr.mxu0 0.0
  %1436 = vmatpush1.msra.mxu0 %v1101
  %1437 = vmatprep.subr.mxu0 0.0
  %1438 = vmatpush1.msra.mxu0 %v1100
  %1439 = vmatprep.subr.mxu0 0.0
  %1440 = vmatpush1.msra.mxu0 %v1099
  %1441 = vmatprep.subr.mxu0 0.0
  %1442 = vmatpush1.msra.mxu0 %v1098
  %1443 = vmatprep.subr.mxu0 0.0
  %1444 = vmatpush1.msra.mxu0 %v1097
  %1445 = vmatprep.subr.mxu0 0.0
  %1446 = vmatpush1.msra.mxu0 %v1096
  %1447 = vmatprep.subr.mxu0 0.0
  %1448 = vmatpush1.msra.mxu0 %v1095
  %1449 = vmatprep.subr.mxu0 0.0
  %1450 = vmatpush1.msra.mxu0 %v1094
  %1451 = vmatprep.subr.mxu0 0.0
  %1452 = vmatpush1.msra.mxu0 %v1093
  %1453 = vmatprep.subr.mxu0 0.0
  %1454 = vmatpush1.msra.mxu0 %v1092
  %1455 = vmatprep.subr.mxu0 0.0
  %1456 = vmatpush1.msra.mxu0 %v1091
  %1457 = vmatprep.subr.mxu0 0.0
  %1458 = vmatpush1.msra.mxu0 %v1090
  %1459 = vmatprep.subr.mxu0 0.0
  %1460 = vmatpush1.msra.mxu0 %v1089
  %1461 = vmatprep.subr.mxu0 0.0
  %1462 = vmatpush1.msra.mxu0 %v1088
  %1463 = vmatprep.subr.mxu0 0.0
  %1464 = vmatpush1.msra.mxu0 %v1087
  %1465 = vmatprep.subr.mxu0 0.0
  %1466 = vmatpush2.msra.mxu0 0.0
  %1467 = vmatprep.subr.mxu0 0.0
  %1468 = vmatpush2.msra.mxu0 0.0
  %1469 = vmatprep.subr.mxu0 0.0
  %1470 = vmatpush2.msra.mxu0 0.0
  %1471 = vmatprep.subr.mxu0 0.0
  %1472 = vmatpush2.msra.mxu0 0.0
  %1473 = vmatprep.subr.mxu0 0.0
  %1474 = vmatpush2.msra.mxu0 0.0
  %1475 = vmatprep.subr.mxu0 0.0
  %1476 = vmatpush2.msra.mxu0 0.0
  %1477 = vmatprep.subr.mxu0 0.0
  %1478 = vmatpush2.msra.mxu0 0.0
  %1479 = vmatprep.subr.mxu0 0.0
  %1480 = vmatpush2.msra.mxu0 0.0
  %1481 = vmatprep.subr.mxu0 0.0
  %1482 = vmatpush2.msra.mxu0 0.0
  %1483 = vmatprep.subr.mxu0 0.0
  %1484 = vmatpush2.msra.mxu0 0.0
  %1485 = vmatprep.subr.mxu0 0.0
  %1486 = vmatpush2.msra.mxu0 0.0
  %1487 = vmatprep.subr.mxu0 0.0
  %1488 = vmatpush2.msra.mxu0 0.0
  %1489 = vmatprep.subr.mxu0 0.0
  %1490 = vmatpush2.msra.mxu0 0.0
  %1491 = vmatprep.subr.mxu0 0.0
  %1492 = vmatpush2.msra.mxu0 0.0
  %1493 = vmatprep.subr.mxu0 0.0
  %1494 = vmatpush2.msra.mxu0 0.0
  %1495 = vmatprep.subr.mxu0 0.0
  %1496 = vmatpush2.msra.mxu0 0.0
  %1497 = vmatprep.mubr.f32.mxu0 0.0
  %1498 = vmatmul.mubr.f32.gmra.mxu0 %v1103
  %v1499 = vpop.f32.mrf.mxu0
  %v1500 = vadd.f32 %v1355, %v1499
  %v1501 = vpop.f32.mrf.mxu0
  %1502 = vmatprep.mubr.f32.mxu0 0.0
  %1503 = vmatmul.mubr.f32.gmra.mxu0 %v1104
  %v1504 = vpop.f32.mrf.mxu0
  %v1505 = vadd.f32 %v1360, %v1504
  %v1506 = vpop.f32.mrf.mxu0
  %1507 = vmatprep.mubr.f32.mxu0 0.0
  %1508 = vmatmul.mubr.f32.gmra.mxu0 %v1105
  %v1509 = vpop.f32.mrf.mxu0
  %v1510 = vadd.f32 %v1365, %v1509
  %v1511 = vpop.f32.mrf.mxu0
  %1512 = vmatprep.mubr.f32.mxu0 0.0
  %1513 = vmatmul.mubr.f32.gmra.mxu0 %v1106
  %v1514 = vpop.f32.mrf.mxu0
  %v1515 = vadd.f32 %v1370, %v1514
  %v1516 = vpop.f32.mrf.mxu0
  %1517 = vmatprep.mubr.f32.mxu0 0.0
  %1518 = vmatmul.mubr.f32.gmra.mxu0 %v1107
  %v1519 = vpop.f32.mrf.mxu0
  %v1520 = vadd.f32 %v1375, %v1519
  %v1521 = vpop.f32.mrf.mxu0
  %1522 = vmatprep.mubr.f32.mxu0 0.0
  %1523 = vmatmul.mubr.f32.gmra.mxu0 %v1108
  %v1524 = vpop.f32.mrf.mxu0
  %v1525 = vadd.f32 %v1380, %v1524
  %v1526 = vpop.f32.mrf.mxu0
  %1527 = vmatprep.mubr.f32.mxu0 0.0
  %1528 = vmatmul.mubr.f32.gmra.mxu0 %v1109
  %v1529 = vpop.f32.mrf.mxu0
  %v1530 = vadd.f32 %v1385, %v1529
  %v1531 = vpop.f32.mrf.mxu0
  %1532 = vmatprep.mubr.f32.mxu0 0.0
  %1533 = vmatmul.mubr.f32.gmra.mxu0 %v1110
  %v1534 = vpop.f32.mrf.mxu0
  %v1535 = vadd.f32 %v1390, %v1534
  %v1536 = vpop.f32.mrf.mxu0
  %1537 = vmatprep.mubr.f32.mxu0 0.0
  %1538 = vmatmul.mubr.f32.gmra.mxu0 %v1111
  %v1539 = vpop.f32.mrf.mxu0
  %v1540 = vadd.f32 %v1395, %v1539
  %v1541 = vpop.f32.mrf.mxu0
  %1542 = vmatprep.mubr.f32.mxu0 0.0
  %1543 = vmatmul.mubr.f32.gmra.mxu0 %v1112
  %v1544 = vpop.f32.mrf.mxu0
  %v1545 = vadd.f32 %v1400, %v1544
  %v1546 = vpop.f32.mrf.mxu0
  %1547 = vmatprep.mubr.f32.mxu0 0.0
  %1548 = vmatmul.mubr.f32.gmra.mxu0 %v1113
  %v1549 = vpop.f32.mrf.mxu0
  %v1550 = vadd.f32 %v1405, %v1549
  %v1551 = vpop.f32.mrf.mxu0
  %1552 = vmatprep.mubr.f32.mxu0 0.0
  %1553 = vmatmul.mubr.f32.gmra.mxu0 %v1114
  %v1554 = vpop.f32.mrf.mxu0
  %v1555 = vadd.f32 %v1410, %v1554
  %v1556 = vpop.f32.mrf.mxu0
  %1557 = vmatprep.mubr.f32.mxu0 0.0
  %1558 = vmatmul.mubr.f32.gmra.mxu0 %v1115
  %v1559 = vpop.f32.mrf.mxu0
  %v1560 = vadd.f32 %v1415, %v1559
  %v1561 = vpop.f32.mrf.mxu0
  %1562 = vmatprep.mubr.f32.mxu0 0.0
  %1563 = vmatmul.mubr.f32.gmra.mxu0 %v1116
  %v1564 = vpop.f32.mrf.mxu0
  %v1565 = vadd.f32 %v1420, %v1564
  %v1566 = vpop.f32.mrf.mxu0
  %1567 = vmatprep.mubr.f32.mxu0 0.0
  %1568 = vmatmul.mubr.f32.gmra.mxu0 %v1117
  %v1569 = vpop.f32.mrf.mxu0
  %v1570 = vadd.f32 %v1425, %v1569
  %v1571 = vpop.f32.mrf.mxu0
  %1572 = vmatprep.mubr.f32.mxu0 0.0
  %1573 = vmatmul.mubr.f32.gmra.mxu0 %v1118
  %v1574 = vpop.f32.mrf.mxu0
  %v1575 = vadd.f32 %v1430, %v1574
  %v1576 = vpop.f32.mrf.mxu0
  %1577 = vdwg.mxu0
  %1578 = vset.pattern.permute.xlu0 2
  %1579 = vperm.xlu0 %1578, %v58
  %v1580 = vpop.permute.xlu0 %1579
  %1582 = vset.pattern.permute.xlu0 2
  %1583 = vperm.xlu0 %1582, %v59
  %v1584 = vpop.permute.xlu0 %1583
  %1586 = vset.pattern.permute.xlu0 2
  %1587 = vperm.xlu0 %1586, %v60
  %v1588 = vpop.permute.xlu0 %1587
  %1590 = vset.pattern.permute.xlu0 2
  %1591 = vperm.xlu0 %1590, %v61
  %v1592 = vpop.permute.xlu0 %1591
  %1594 = vset.pattern.permute.xlu0 2
  %1595 = vperm.xlu0 %1594, %v62
  %v1596 = vpop.permute.xlu0 %1595
  %1598 = vset.pattern.permute.xlu0 2
  %1599 = vperm.xlu0 %1598, %v63
  %v1600 = vpop.permute.xlu0 %1599
  %1602 = vset.pattern.permute.xlu0 2
  %1603 = vperm.xlu0 %1602, %v64
  %v1604 = vpop.permute.xlu0 %1603
  %1606 = vset.pattern.permute.xlu0 2
  %1607 = vperm.xlu0 %1606, %v65
  %v1608 = vpop.permute.xlu0 %1607
  %1610 = vset.pattern.permute.xlu0 2
  %1611 = vperm.xlu0 %1610, %v66
  %v1612 = vpop.permute.xlu0 %1611
  %1614 = vset.pattern.permute.xlu0 2
  %1615 = vperm.xlu0 %1614, %v67
  %v1616 = vpop.permute.xlu0 %1615
  %1618 = vset.pattern.permute.xlu0 2
  %1619 = vperm.xlu0 %1618, %v68
  %v1620 = vpop.permute.xlu0 %1619
  %1622 = vset.pattern.permute.xlu0 2
  %1623 = vperm.xlu0 %1622, %v69
  %v1624 = vpop.permute.xlu0 %1623
  %1626 = vset.pattern.permute.xlu0 2
  %1627 = vperm.xlu0 %1626, %v70
  %v1628 = vpop.permute.xlu0 %1627
  %1630 = vset.pattern.permute.xlu0 2
  %1631 = vperm.xlu0 %1630, %v71
  %v1632 = vpop.permute.xlu0 %1631
  %1634 = vset.pattern.permute.xlu0 2
  %1635 = vperm.xlu0 %1634, %v72
  %v1636 = vpop.permute.xlu0 %1635
  %1638 = vset.pattern.permute.xlu0 2
  %1639 = vperm.xlu0 %1638, %v73
  %v1640 = vpop.permute.xlu0 %1639
  %v1642 = vadd.f32 %v1500, %v1580
  %v1643 = vadd.f32 %v1505, %v1584
  %v1644 = vadd.f32 %v1510, %v1588
  %v1645 = vadd.f32 %v1515, %v1592
  %v1646 = vadd.f32 %v1520, %v1596
  %v1647 = vadd.f32 %v1525, %v1600
  %v1648 = vadd.f32 %v1530, %v1604
  %v1649 = vadd.f32 %v1535, %v1608
  %v1650 = vadd.f32 %v1540, %v1612
  %v1651 = vadd.f32 %v1545, %v1616
  %v1652 = vadd.f32 %v1550, %v1620
  %v1653 = vadd.f32 %v1555, %v1624
  %v1654 = vadd.f32 %v1560, %v1628
  %v1655 = vadd.f32 %v1565, %v1632
  %v1656 = vadd.f32 %v1570, %v1636
  %v1657 = vadd.f32 %v1575, %v1640
  %1658 = vmatprep.subr.mxu0 0.0
  %1659 = vmatpush1.msra.mxu0 %v1657
  %1660 = vmatprep.subr.mxu0 0.0
  %1661 = vmatpush1.msra.mxu0 %v1656
  %1662 = vmatprep.subr.mxu0 0.0
  %1663 = vmatpush1.msra.mxu0 %v1655
  %1664 = vmatprep.subr.mxu0 0.0
  %1665 = vmatpush1.msra.mxu0 %v1654
  %1666 = vmatprep.subr.mxu0 0.0
  %1667 = vmatpush1.msra.mxu0 %v1653
  %1668 = vmatprep.subr.mxu0 0.0
  %1669 = vmatpush1.msra.mxu0 %v1652
  %1670 = vmatprep.subr.mxu0 0.0
  %1671 = vmatpush1.msra.mxu0 %v1651
  %1672 = vmatprep.subr.mxu0 0.0
  %1673 = vmatpush1.msra.mxu0 %v1650
  %1674 = vmatprep.subr.mxu0 0.0
  %1675 = vmatpush1.msra.mxu0 %v1649
  %1676 = vmatprep.subr.mxu0 0.0
  %1677 = vmatpush1.msra.mxu0 %v1648
  %1678 = vmatprep.subr.mxu0 0.0
  %1679 = vmatpush1.msra.mxu0 %v1647
  %1680 = vmatprep.subr.mxu0 0.0
  %1681 = vmatpush1.msra.mxu0 %v1646
  %1682 = vmatprep.subr.mxu0 0.0
  %1683 = vmatpush1.msra.mxu0 %v1645
  %1684 = vmatprep.subr.mxu0 0.0
  %1685 = vmatpush1.msra.mxu0 %v1644
  %1686 = vmatprep.subr.mxu0 0.0
  %1687 = vmatpush1.msra.mxu0 %v1643
  %1688 = vmatprep.subr.mxu0 0.0
  %1689 = vmatpush1.msra.mxu0 %v1642
  %1690 = vmatprep.subr.mxu0 0.0
  %1691 = vmatpush2.msra.mxu0 0.0
  %1692 = vmatprep.subr.mxu0 0.0
  %1693 = vmatpush2.msra.mxu0 0.0
  %1694 = vmatprep.subr.mxu0 0.0
  %1695 = vmatpush2.msra.mxu0 0.0
  %1696 = vmatprep.subr.mxu0 0.0
  %1697 = vmatpush2.msra.mxu0 0.0
  %1698 = vmatprep.subr.mxu0 0.0
  %1699 = vmatpush2.msra.mxu0 0.0
  %1700 = vmatprep.subr.mxu0 0.0
  %1701 = vmatpush2.msra.mxu0 0.0
  %1702 = vmatprep.subr.mxu0 0.0
  %1703 = vmatpush2.msra.mxu0 0.0
  %1704 = vmatprep.subr.mxu0 0.0
  %1705 = vmatpush2.msra.mxu0 0.0
  %1706 = vmatprep.subr.mxu0 0.0
  %1707 = vmatpush2.msra.mxu0 0.0
  %1708 = vmatprep.subr.mxu0 0.0
  %1709 = vmatpush2.msra.mxu0 0.0
  %1710 = vmatprep.subr.mxu0 0.0
  %1711 = vmatpush2.msra.mxu0 0.0
  %1712 = vmatprep.subr.mxu0 0.0
  %1713 = vmatpush2.msra.mxu0 0.0
  %1714 = vmatprep.subr.mxu0 0.0
  %1715 = vmatpush2.msra.mxu0 0.0
  %1716 = vmatprep.subr.mxu0 0.0
  %1717 = vmatpush2.msra.mxu0 0.0
  %1718 = vmatprep.subr.mxu0 0.0
  %1719 = vmatpush2.msra.mxu0 0.0
  %1720 = vmatprep.subr.mxu0 0.0
  %1721 = vmatpush2.msra.mxu0 0.0
  %1722 = vmatprep.mubr.f32.mxu0 0.0
  %1723 = vmatmul.mubr.f32.gmra.mxu0 %v42
  %v1724 = vpop.f32.mrf.mxu0
  %v1725 = vadd.f32 0.0, %v1724
  %v1726 = vpop.f32.mrf.mxu0
  %1727 = vmatprep.mubr.f32.mxu0 0.0
  %1728 = vmatmul.mubr.f32.gmra.mxu0 %v43
  %v1729 = vpop.f32.mrf.mxu0
  %v1730 = vadd.f32 0.0, %v1729
  %v1731 = vpop.f32.mrf.mxu0
  %1732 = vmatprep.mubr.f32.mxu0 0.0
  %1733 = vmatmul.mubr.f32.gmra.mxu0 %v44
  %v1734 = vpop.f32.mrf.mxu0
  %v1735 = vadd.f32 0.0, %v1734
  %v1736 = vpop.f32.mrf.mxu0
  %1737 = vmatprep.mubr.f32.mxu0 0.0
  %1738 = vmatmul.mubr.f32.gmra.mxu0 %v45
  %v1739 = vpop.f32.mrf.mxu0
  %v1740 = vadd.f32 0.0, %v1739
  %v1741 = vpop.f32.mrf.mxu0
  %1742 = vmatprep.mubr.f32.mxu0 0.0
  %1743 = vmatmul.mubr.f32.gmra.mxu0 %v46
  %v1744 = vpop.f32.mrf.mxu0
  %v1745 = vadd.f32 0.0, %v1744
  %v1746 = vpop.f32.mrf.mxu0
  %1747 = vmatprep.mubr.f32.mxu0 0.0
  %1748 = vmatmul.mubr.f32.gmra.mxu0 %v47
  %v1749 = vpop.f32.mrf.mxu0
  %v1750 = vadd.f32 0.0, %v1749
  %v1751 = vpop.f32.mrf.mxu0
  %1752 = vmatprep.mubr.f32.mxu0 0.0
  %1753 = vmatmul.mubr.f32.gmra.mxu0 %v48
  %v1754 = vpop.f32.mrf.mxu0
  %v1755 = vadd.f32 0.0, %v1754
  %v1756 = vpop.f32.mrf.mxu0
  %1757 = vmatprep.mubr.f32.mxu0 0.0
  %1758 = vmatmul.mubr.f32.gmra.mxu0 %v49
  %v1759 = vpop.f32.mrf.mxu0
  %v1760 = vadd.f32 0.0, %v1759
  %v1761 = vpop.f32.mrf.mxu0
  %1762 = vmatprep.mubr.f32.mxu0 0.0
  %1763 = vmatmul.mubr.f32.gmra.mxu0 %v50
  %v1764 = vpop.f32.mrf.mxu0
  %v1765 = vadd.f32 0.0, %v1764
  %v1766 = vpop.f32.mrf.mxu0
  %1767 = vmatprep.mubr.f32.mxu0 0.0
  %1768 = vmatmul.mubr.f32.gmra.mxu0 %v51
  %v1769 = vpop.f32.mrf.mxu0
  %v1770 = vadd.f32 0.0, %v1769
  %v1771 = vpop.f32.mrf.mxu0
  %1772 = vmatprep.mubr.f32.mxu0 0.0
  %1773 = vmatmul.mubr.f32.gmra.mxu0 %v52
  %v1774 = vpop.f32.mrf.mxu0
  %v1775 = vadd.f32 0.0, %v1774
  %v1776 = vpop.f32.mrf.mxu0
  %1777 = vmatprep.mubr.f32.mxu0 0.0
  %1778 = vmatmul.mubr.f32.gmra.mxu0 %v53
  %v1779 = vpop.f32.mrf.mxu0
  %v1780 = vadd.f32 0.0, %v1779
  %v1781 = vpop.f32.mrf.mxu0
  %1782 = vmatprep.mubr.f32.mxu0 0.0
  %1783 = vmatmul.mubr.f32.gmra.mxu0 %v54
  %v1784 = vpop.f32.mrf.mxu0
  %v1785 = vadd.f32 0.0, %v1784
  %v1786 = vpop.f32.mrf.mxu0
  %1787 = vmatprep.mubr.f32.mxu0 0.0
  %1788 = vmatmul.mubr.f32.gmra.mxu0 %v55
  %v1789 = vpop.f32.mrf.mxu0
  %v1790 = vadd.f32 0.0, %v1789
  %v1791 = vpop.f32.mrf.mxu0
  %1792 = vmatprep.mubr.f32.mxu0 0.0
  %1793 = vmatmul.mubr.f32.gmra.mxu0 %v56
  %v1794 = vpop.f32.mrf.mxu0
  %v1795 = vadd.f32 0.0, %v1794
  %v1796 = vpop.f32.mrf.mxu0
  %1797 = vmatprep.mubr.f32.mxu0 0.0
  %1798 = vmatmul.mubr.f32.gmra.mxu0 %v57
  %v1799 = vpop.f32.mrf.mxu0
  %v1800 = vadd.f32 0.0, %v1799
  %v1801 = vpop.f32.mrf.mxu0
  %1802 = vdwg.mxu0
  %v1804 = vsel %vm219, %v1725, 0
  %v1807 = vsel %vm219, %v1730, 0
  %v1810 = vsel %vm219, %v1735, 0
  %v1813 = vsel %vm219, %v1740, 0
  %v1816 = vsel %vm219, %v1745, 0
  %v1819 = vsel %vm219, %v1750, 0
  %v1822 = vsel %vm219, %v1755, 0
  %v1825 = vsel %vm219, %v1760, 0
  %v1828 = vsel %vm219, %v1765, 0
  %v1831 = vsel %vm219, %v1770, 0
  %v1834 = vsel %vm219, %v1775, 0
  %v1837 = vsel %vm219, %v1780, 0
  %v1840 = vsel %vm219, %v1785, 0
  %v1843 = vsel %vm219, %v1790, 0
  %v1846 = vsel %vm219, %v1795, 0
  %v1849 = vsel %vm219, %v1800, 0
  %1851 = vmatprep.subr.mxu0 0.0
  %1852 = vmatpush1.msra.mxu0 0.0
  %1853 = vmatprep.subr.mxu0 0.0
  %1854 = vmatpush1.msra.mxu0 0.0
  %1855 = vmatprep.subr.mxu0 0.0
  %1856 = vmatpush1.msra.mxu0 0.0
  %1857 = vmatprep.subr.mxu0 0.0
  %1858 = vmatpush1.msra.mxu0 0.0
  %1859 = vmatprep.subr.mxu0 0.0
  %1860 = vmatpush1.msra.mxu0 0.0
  %1861 = vmatprep.subr.mxu0 0.0
  %1862 = vmatpush1.msra.mxu0 0.0
  %1863 = vmatprep.subr.mxu0 0.0
  %1864 = vmatpush1.msra.mxu0 0.0
  %1865 = vmatprep.subr.mxu0 0.0
  %1866 = vmatpush1.msra.mxu0 0.0
  %1867 = vmatprep.subr.mxu0 0.0
  %1868 = vmatpush1.msra.mxu0 0.0
  %1869 = vmatprep.subr.mxu0 0.0
  %1870 = vmatpush1.msra.mxu0 0.0
  %1871 = vmatprep.subr.mxu0 0.0
  %1872 = vmatpush1.msra.mxu0 0.0
  %1873 = vmatprep.subr.mxu0 0.0
  %1874 = vmatpush1.msra.mxu0 0.0
  %1875 = vmatprep.subr.mxu0 0.0
  %1876 = vmatpush1.msra.mxu0 0.0
  %1877 = vmatprep.subr.mxu0 0.0
  %1878 = vmatpush1.msra.mxu0 0.0
  %1879 = vmatprep.subr.mxu0 0.0
  %1880 = vmatpush1.msra.mxu0 1.0
  %1881 = vmatprep.subr.mxu0 0.0
  %1882 = vmatpush1.msra.mxu0 1.0
  %1883 = vmatprep.subr.mxu0 0.0
  %1884 = vmatpush2.msra.mxu0 0.0
  %1885 = vmatprep.subr.mxu0 0.0
  %1886 = vmatpush2.msra.mxu0 0.0
  %1887 = vmatprep.subr.mxu0 0.0
  %1888 = vmatpush2.msra.mxu0 0.0
  %1889 = vmatprep.subr.mxu0 0.0
  %1890 = vmatpush2.msra.mxu0 0.0
  %1891 = vmatprep.subr.mxu0 0.0
  %1892 = vmatpush2.msra.mxu0 0.0
  %1893 = vmatprep.subr.mxu0 0.0
  %1894 = vmatpush2.msra.mxu0 0.0
  %1895 = vmatprep.subr.mxu0 0.0
  %1896 = vmatpush2.msra.mxu0 0.0
  %1897 = vmatprep.subr.mxu0 0.0
  %1898 = vmatpush2.msra.mxu0 0.0
  %1899 = vmatprep.subr.mxu0 0.0
  %1900 = vmatpush2.msra.mxu0 0.0
  %1901 = vmatprep.subr.mxu0 0.0
  %1902 = vmatpush2.msra.mxu0 0.0
  %1903 = vmatprep.subr.mxu0 0.0
  %1904 = vmatpush2.msra.mxu0 0.0
  %1905 = vmatprep.subr.mxu0 0.0
  %1906 = vmatpush2.msra.mxu0 0.0
  %1907 = vmatprep.subr.mxu0 0.0
  %1908 = vmatpush2.msra.mxu0 0.0
  %1909 = vmatprep.subr.mxu0 0.0
  %1910 = vmatpush2.msra.mxu0 0.0
  %1911 = vmatprep.subr.mxu0 0.0
  %1912 = vmatpush2.msra.mxu0 0.0
  %1913 = vmatprep.subr.mxu0 0.0
  %1914 = vmatpush2.msra.mxu0 0.0
  %1915 = vmatprep.mubr.f32.mxu0 0.0
  %1916 = vmatmul.mubr.f32.gmra.mxu0 %v1804
  %v1917 = vpop.f32.mrf.mxu0
  %v1918 = vadd.f32 0.0, %v1917
  %v1919 = vpop.f32.mrf.mxu0
  %1920 = vmatprep.mubr.f32.mxu0 0.0
  %1921 = vmatmul.mubr.f32.gmra.mxu0 %v1807
  %v1922 = vpop.f32.mrf.mxu0
  %v1923 = vadd.f32 0.0, %v1922
  %v1924 = vpop.f32.mrf.mxu0
  %1925 = vmatprep.mubr.f32.mxu0 0.0
  %1926 = vmatmul.mubr.f32.gmra.mxu0 %v1810
  %v1927 = vpop.f32.mrf.mxu0
  %v1928 = vadd.f32 0.0, %v1927
  %v1929 = vpop.f32.mrf.mxu0
  %1930 = vmatprep.mubr.f32.mxu0 0.0
  %1931 = vmatmul.mubr.f32.gmra.mxu0 %v1813
  %v1932 = vpop.f32.mrf.mxu0
  %v1933 = vadd.f32 0.0, %v1932
  %v1934 = vpop.f32.mrf.mxu0
  %1935 = vmatprep.mubr.f32.mxu0 0.0
  %1936 = vmatmul.mubr.f32.gmra.mxu0 %v1816
  %v1937 = vpop.f32.mrf.mxu0
  %v1938 = vadd.f32 0.0, %v1937
  %v1939 = vpop.f32.mrf.mxu0
  %1940 = vmatprep.mubr.f32.mxu0 0.0
  %1941 = vmatmul.mubr.f32.gmra.mxu0 %v1819
  %v1942 = vpop.f32.mrf.mxu0
  %v1943 = vadd.f32 0.0, %v1942
  %v1944 = vpop.f32.mrf.mxu0
  %1945 = vmatprep.mubr.f32.mxu0 0.0
  %1946 = vmatmul.mubr.f32.gmra.mxu0 %v1822
  %v1947 = vpop.f32.mrf.mxu0
  %v1948 = vadd.f32 0.0, %v1947
  %v1949 = vpop.f32.mrf.mxu0
  %1950 = vmatprep.mubr.f32.mxu0 0.0
  %1951 = vmatmul.mubr.f32.gmra.mxu0 %v1825
  %v1952 = vpop.f32.mrf.mxu0
  %v1953 = vadd.f32 0.0, %v1952
  %v1954 = vpop.f32.mrf.mxu0
  %1955 = vmatprep.mubr.f32.mxu0 0.0
  %1956 = vmatmul.mubr.f32.gmra.mxu0 %v1828
  %v1957 = vpop.f32.mrf.mxu0
  %v1958 = vadd.f32 0.0, %v1957
  %v1959 = vpop.f32.mrf.mxu0
  %1960 = vmatprep.mubr.f32.mxu0 0.0
  %1961 = vmatmul.mubr.f32.gmra.mxu0 %v1831
  %v1962 = vpop.f32.mrf.mxu0
  %v1963 = vadd.f32 0.0, %v1962
  %v1964 = vpop.f32.mrf.mxu0
  %1965 = vmatprep.mubr.f32.mxu0 0.0
  %1966 = vmatmul.mubr.f32.gmra.mxu0 %v1834
  %v1967 = vpop.f32.mrf.mxu0
  %v1968 = vadd.f32 0.0, %v1967
  %v1969 = vpop.f32.mrf.mxu0
  %1970 = vmatprep.mubr.f32.mxu0 0.0
  %1971 = vmatmul.mubr.f32.gmra.mxu0 %v1837
  %v1972 = vpop.f32.mrf.mxu0
  %v1973 = vadd.f32 0.0, %v1972
  %v1974 = vpop.f32.mrf.mxu0
  %1975 = vmatprep.mubr.f32.mxu0 0.0
  %1976 = vmatmul.mubr.f32.gmra.mxu0 %v1840
  %v1977 = vpop.f32.mrf.mxu0
  %v1978 = vadd.f32 0.0, %v1977
  %v1979 = vpop.f32.mrf.mxu0
  %1980 = vmatprep.mubr.f32.mxu0 0.0
  %1981 = vmatmul.mubr.f32.gmra.mxu0 %v1843
  %v1982 = vpop.f32.mrf.mxu0
  %v1983 = vadd.f32 0.0, %v1982
  %v1984 = vpop.f32.mrf.mxu0
  %1985 = vmatprep.mubr.f32.mxu0 0.0
  %1986 = vmatmul.mubr.f32.gmra.mxu0 %v1846
  %v1987 = vpop.f32.mrf.mxu0
  %v1988 = vadd.f32 0.0, %v1987
  %v1989 = vpop.f32.mrf.mxu0
  %1990 = vmatprep.mubr.f32.mxu0 0.0
  %1991 = vmatmul.mubr.f32.gmra.mxu0 %v1849
  %v1992 = vpop.f32.mrf.mxu0
  %v1993 = vadd.f32 0.0, %v1992
  %v1994 = vpop.f32.mrf.mxu0
  %1995 = vdwg.mxu0
  %v1996 = vsub.f32 %v1642, %v1918
  %v1997 = vsub.f32 %v1643, %v1923
  %v1998 = vsub.f32 %v1644, %v1928
  %v1999 = vsub.f32 %v1645, %v1933
  %v2000 = vsub.f32 %v1646, %v1938
  %v2001 = vsub.f32 %v1647, %v1943
  %v2002 = vsub.f32 %v1648, %v1948
  %v2003 = vsub.f32 %v1649, %v1953
  %v2004 = vsub.f32 %v1650, %v1958
  %v2005 = vsub.f32 %v1651, %v1963
  %v2006 = vsub.f32 %v1652, %v1968
  %v2007 = vsub.f32 %v1653, %v1973
  %v2008 = vsub.f32 %v1654, %v1978
  %v2009 = vsub.f32 %v1655, %v1983
  %v2010 = vsub.f32 %v1656, %v1988
  %v2011 = vsub.f32 %v1657, %v1993
  %v2012 = vmul.f32 %v1996, %v1996
  %v2013 = vmul.f32 %v1997, %v1997
  %v2014 = vmul.f32 %v1998, %v1998
  %v2015 = vmul.f32 %v1999, %v1999
  %v2016 = vmul.f32 %v2000, %v2000
  %v2017 = vmul.f32 %v2001, %v2001
  %v2018 = vmul.f32 %v2002, %v2002
  %v2019 = vmul.f32 %v2003, %v2003
  %v2020 = vmul.f32 %v2004, %v2004
  %v2021 = vmul.f32 %v2005, %v2005
  %v2022 = vmul.f32 %v2006, %v2006
  %v2023 = vmul.f32 %v2007, %v2007
  %v2024 = vmul.f32 %v2008, %v2008
  %v2025 = vmul.f32 %v2009, %v2009
  %v2026 = vmul.f32 %v2010, %v2010
  %v2027 = vmul.f32 %v2011, %v2011
  %2028 = vmatprep.subr.mxu0 0.0
  %2029 = vmatpush1.msra.mxu0 %v2027
  %2030 = vmatprep.subr.mxu0 0.0
  %2031 = vmatpush1.msra.mxu0 %v2026
  %2032 = vmatprep.subr.mxu0 0.0
  %2033 = vmatpush1.msra.mxu0 %v2025
  %2034 = vmatprep.subr.mxu0 0.0
  %2035 = vmatpush1.msra.mxu0 %v2024
  %2036 = vmatprep.subr.mxu0 0.0
  %2037 = vmatpush1.msra.mxu0 %v2023
  %2038 = vmatprep.subr.mxu0 0.0
  %2039 = vmatpush1.msra.mxu0 %v2022
  %2040 = vmatprep.subr.mxu0 0.0
  %2041 = vmatpush1.msra.mxu0 %v2021
  %2042 = vmatprep.subr.mxu0 0.0
  %2043 = vmatpush1.msra.mxu0 %v2020
  %2044 = vmatprep.subr.mxu0 0.0
  %2045 = vmatpush1.msra.mxu0 %v2019
  %2046 = vmatprep.subr.mxu0 0.0
  %2047 = vmatpush1.msra.mxu0 %v2018
  %2048 = vmatprep.subr.mxu0 0.0
  %2049 = vmatpush1.msra.mxu0 %v2017
  %2050 = vmatprep.subr.mxu0 0.0
  %2051 = vmatpush1.msra.mxu0 %v2016
  %2052 = vmatprep.subr.mxu0 0.0
  %2053 = vmatpush1.msra.mxu0 %v2015
  %2054 = vmatprep.subr.mxu0 0.0
  %2055 = vmatpush1.msra.mxu0 %v2014
  %2056 = vmatprep.subr.mxu0 0.0
  %2057 = vmatpush1.msra.mxu0 %v2013
  %2058 = vmatprep.subr.mxu0 0.0
  %2059 = vmatpush1.msra.mxu0 %v2012
  %2060 = vmatprep.subr.mxu0 0.0
  %2061 = vmatpush2.msra.mxu0 0.0
  %2062 = vmatprep.subr.mxu0 0.0
  %2063 = vmatpush2.msra.mxu0 0.0
  %2064 = vmatprep.subr.mxu0 0.0
  %2065 = vmatpush2.msra.mxu0 0.0
  %2066 = vmatprep.subr.mxu0 0.0
  %2067 = vmatpush2.msra.mxu0 0.0
  %2068 = vmatprep.subr.mxu0 0.0
  %2069 = vmatpush2.msra.mxu0 0.0
  %2070 = vmatprep.subr.mxu0 0.0
  %2071 = vmatpush2.msra.mxu0 0.0
  %2072 = vmatprep.subr.mxu0 0.0
  %2073 = vmatpush2.msra.mxu0 0.0
  %2074 = vmatprep.subr.mxu0 0.0
  %2075 = vmatpush2.msra.mxu0 0.0
  %2076 = vmatprep.subr.mxu0 0.0
  %2077 = vmatpush2.msra.mxu0 0.0
  %2078 = vmatprep.subr.mxu0 0.0
  %2079 = vmatpush2.msra.mxu0 0.0
  %2080 = vmatprep.subr.mxu0 0.0
  %2081 = vmatpush2.msra.mxu0 0.0
  %2082 = vmatprep.subr.mxu0 0.0
  %2083 = vmatpush2.msra.mxu0 0.0
  %2084 = vmatprep.subr.mxu0 0.0
  %2085 = vmatpush2.msra.mxu0 0.0
  %2086 = vmatprep.subr.mxu0 0.0
  %2087 = vmatpush2.msra.mxu0 0.0
  %2088 = vmatprep.subr.mxu0 0.0
  %2089 = vmatpush2.msra.mxu0 0.0
  %2090 = vmatprep.subr.mxu0 0.0
  %2091 = vmatpush2.msra.mxu0 0.0
  %2092 = vmatprep.mubr.f32.mxu0 0.0
  %2093 = vmatmul.mubr.f32.gmra.mxu0 %v42
  %v2094 = vpop.f32.mrf.mxu0
  %v2095 = vadd.f32 0.0, %v2094
  %v2096 = vpop.f32.mrf.mxu0
  %2097 = vmatprep.mubr.f32.mxu0 0.0
  %2098 = vmatmul.mubr.f32.gmra.mxu0 %v43
  %v2099 = vpop.f32.mrf.mxu0
  %v2100 = vadd.f32 0.0, %v2099
  %v2101 = vpop.f32.mrf.mxu0
  %2102 = vmatprep.mubr.f32.mxu0 0.0
  %2103 = vmatmul.mubr.f32.gmra.mxu0 %v44
  %v2104 = vpop.f32.mrf.mxu0
  %v2105 = vadd.f32 0.0, %v2104
  %v2106 = vpop.f32.mrf.mxu0
  %2107 = vmatprep.mubr.f32.mxu0 0.0
  %2108 = vmatmul.mubr.f32.gmra.mxu0 %v45
  %v2109 = vpop.f32.mrf.mxu0
  %v2110 = vadd.f32 0.0, %v2109
  %v2111 = vpop.f32.mrf.mxu0
  %2112 = vmatprep.mubr.f32.mxu0 0.0
  %2113 = vmatmul.mubr.f32.gmra.mxu0 %v46
  %v2114 = vpop.f32.mrf.mxu0
  %v2115 = vadd.f32 0.0, %v2114
  %v2116 = vpop.f32.mrf.mxu0
  %2117 = vmatprep.mubr.f32.mxu0 0.0
  %2118 = vmatmul.mubr.f32.gmra.mxu0 %v47
  %v2119 = vpop.f32.mrf.mxu0
  %v2120 = vadd.f32 0.0, %v2119
  %v2121 = vpop.f32.mrf.mxu0
  %2122 = vmatprep.mubr.f32.mxu0 0.0
  %2123 = vmatmul.mubr.f32.gmra.mxu0 %v48
  %v2124 = vpop.f32.mrf.mxu0
  %v2125 = vadd.f32 0.0, %v2124
  %v2126 = vpop.f32.mrf.mxu0
  %2127 = vmatprep.mubr.f32.mxu0 0.0
  %2128 = vmatmul.mubr.f32.gmra.mxu0 %v49
  %v2129 = vpop.f32.mrf.mxu0
  %v2130 = vadd.f32 0.0, %v2129
  %v2131 = vpop.f32.mrf.mxu0
  %2132 = vmatprep.mubr.f32.mxu0 0.0
  %2133 = vmatmul.mubr.f32.gmra.mxu0 %v50
  %v2134 = vpop.f32.mrf.mxu0
  %v2135 = vadd.f32 0.0, %v2134
  %v2136 = vpop.f32.mrf.mxu0
  %2137 = vmatprep.mubr.f32.mxu0 0.0
  %2138 = vmatmul.mubr.f32.gmra.mxu0 %v51
  %v2139 = vpop.f32.mrf.mxu0
  %v2140 = vadd.f32 0.0, %v2139
  %v2141 = vpop.f32.mrf.mxu0
  %2142 = vmatprep.mubr.f32.mxu0 0.0
  %2143 = vmatmul.mubr.f32.gmra.mxu0 %v52
  %v2144 = vpop.f32.mrf.mxu0
  %v2145 = vadd.f32 0.0, %v2144
  %v2146 = vpop.f32.mrf.mxu0
  %2147 = vmatprep.mubr.f32.mxu0 0.0
  %2148 = vmatmul.mubr.f32.gmra.mxu0 %v53
  %v2149 = vpop.f32.mrf.mxu0
  %v2150 = vadd.f32 0.0, %v2149
  %v2151 = vpop.f32.mrf.mxu0
  %2152 = vmatprep.mubr.f32.mxu0 0.0
  %2153 = vmatmul.mubr.f32.gmra.mxu0 %v54
  %v2154 = vpop.f32.mrf.mxu0
  %v2155 = vadd.f32 0.0, %v2154
  %v2156 = vpop.f32.mrf.mxu0
  %2157 = vmatprep.mubr.f32.mxu0 0.0
  %2158 = vmatmul.mubr.f32.gmra.mxu0 %v55
  %v2159 = vpop.f32.mrf.mxu0
  %v2160 = vadd.f32 0.0, %v2159
  %v2161 = vpop.f32.mrf.mxu0
  %2162 = vmatprep.mubr.f32.mxu0 0.0
  %2163 = vmatmul.mubr.f32.gmra.mxu0 %v56
  %v2164 = vpop.f32.mrf.mxu0
  %v2165 = vadd.f32 0.0, %v2164
  %v2166 = vpop.f32.mrf.mxu0
  %2167 = vmatprep.mubr.f32.mxu0 0.0
  %2168 = vmatmul.mubr.f32.gmra.mxu0 %v57
  %v2169 = vpop.f32.mrf.mxu0
  %v2170 = vadd.f32 0.0, %v2169
  %v2171 = vpop.f32.mrf.mxu0
  %2172 = vdwg.mxu0
  %v2174 = vsel %vm219, %v2095, 0
  %v2177 = vsel %vm219, %v2100, 0
  %v2180 = vsel %vm219, %v2105, 0
  %v2183 = vsel %vm219, %v2110, 0
  %v2186 = vsel %vm219, %v2115, 0
  %v2189 = vsel %vm219, %v2120, 0
  %v2192 = vsel %vm219, %v2125, 0
  %v2195 = vsel %vm219, %v2130, 0
  %v2198 = vsel %vm219, %v2135, 0
  %v2201 = vsel %vm219, %v2140, 0
  %v2204 = vsel %vm219, %v2145, 0
  %v2207 = vsel %vm219, %v2150, 0
  %v2210 = vsel %vm219, %v2155, 0
  %v2213 = vsel %vm219, %v2160, 0
  %v2216 = vsel %vm219, %v2165, 0
  %v2219 = vsel %vm219, %v2170, 0
  %2221 = vmatprep.subr.mxu0 0.0
  %2222 = vmatpush1.msra.mxu0 0.0
  %2223 = vmatprep.subr.mxu0 0.0
  %2224 = vmatpush1.msra.mxu0 0.0
  %2225 = vmatprep.subr.mxu0 0.0
  %2226 = vmatpush1.msra.mxu0 0.0
  %2227 = vmatprep.subr.mxu0 0.0
  %2228 = vmatpush1.msra.mxu0 0.0
  %2229 = vmatprep.subr.mxu0 0.0
  %2230 = vmatpush1.msra.mxu0 0.0
  %2231 = vmatprep.subr.mxu0 0.0
  %2232 = vmatpush1.msra.mxu0 0.0
  %2233 = vmatprep.subr.mxu0 0.0
  %2234 = vmatpush1.msra.mxu0 0.0
  %2235 = vmatprep.subr.mxu0 0.0
  %2236 = vmatpush1.msra.mxu0 0.0
  %2237 = vmatprep.subr.mxu0 0.0
  %2238 = vmatpush1.msra.mxu0 0.0
  %2239 = vmatprep.subr.mxu0 0.0
  %2240 = vmatpush1.msra.mxu0 0.0
  %2241 = vmatprep.subr.mxu0 0.0
  %2242 = vmatpush1.msra.mxu0 0.0
  %2243 = vmatprep.subr.mxu0 0.0
  %2244 = vmatpush1.msra.mxu0 0.0
  %2245 = vmatprep.subr.mxu0 0.0
  %2246 = vmatpush1.msra.mxu0 0.0
  %2247 = vmatprep.subr.mxu0 0.0
  %2248 = vmatpush1.msra.mxu0 0.0
  %2249 = vmatprep.subr.mxu0 0.0
  %2250 = vmatpush1.msra.mxu0 1.0
  %2251 = vmatprep.subr.mxu0 0.0
  %2252 = vmatpush1.msra.mxu0 1.0
  %2253 = vmatprep.subr.mxu0 0.0
  %2254 = vmatpush2.msra.mxu0 0.0
  %2255 = vmatprep.subr.mxu0 0.0
  %2256 = vmatpush2.msra.mxu0 0.0
  %2257 = vmatprep.subr.mxu0 0.0
  %2258 = vmatpush2.msra.mxu0 0.0
  %2259 = vmatprep.subr.mxu0 0.0
  %2260 = vmatpush2.msra.mxu0 0.0
  %2261 = vmatprep.subr.mxu0 0.0
  %2262 = vmatpush2.msra.mxu0 0.0
  %2263 = vmatprep.subr.mxu0 0.0
  %2264 = vmatpush2.msra.mxu0 0.0
  %2265 = vmatprep.subr.mxu0 0.0
  %2266 = vmatpush2.msra.mxu0 0.0
  %2267 = vmatprep.subr.mxu0 0.0
  %2268 = vmatpush2.msra.mxu0 0.0
  %2269 = vmatprep.subr.mxu0 0.0
  %2270 = vmatpush2.msra.mxu0 0.0
  %2271 = vmatprep.subr.mxu0 0.0
  %2272 = vmatpush2.msra.mxu0 0.0
  %2273 = vmatprep.subr.mxu0 0.0
  %2274 = vmatpush2.msra.mxu0 0.0
  %2275 = vmatprep.subr.mxu0 0.0
  %2276 = vmatpush2.msra.mxu0 0.0
  %2277 = vmatprep.subr.mxu0 0.0
  %2278 = vmatpush2.msra.mxu0 0.0
  %2279 = vmatprep.subr.mxu0 0.0
  %2280 = vmatpush2.msra.mxu0 0.0
  %2281 = vmatprep.subr.mxu0 0.0
  %2282 = vmatpush2.msra.mxu0 0.0
  %2283 = vmatprep.subr.mxu0 0.0
  %2284 = vmatpush2.msra.mxu0 0.0
  %2285 = vmatprep.mubr.f32.mxu0 0.0
  %2286 = vmatmul.mubr.f32.gmra.mxu0 %v2174
  %v2287 = vpop.f32.mrf.mxu0
  %v2288 = vadd.f32 1e-05, %v2287
  %v2289 = vpop.f32.mrf.mxu0
  %2290 = vmatprep.mubr.f32.mxu0 0.0
  %2291 = vmatmul.mubr.f32.gmra.mxu0 %v2177
  %v2292 = vpop.f32.mrf.mxu0
  %v2293 = vadd.f32 1e-05, %v2292
  %v2294 = vpop.f32.mrf.mxu0
  %2295 = vmatprep.mubr.f32.mxu0 0.0
  %2296 = vmatmul.mubr.f32.gmra.mxu0 %v2180
  %v2297 = vpop.f32.mrf.mxu0
  %v2298 = vadd.f32 1e-05, %v2297
  %v2299 = vpop.f32.mrf.mxu0
  %2300 = vmatprep.mubr.f32.mxu0 0.0
  %2301 = vmatmul.mubr.f32.gmra.mxu0 %v2183
  %v2302 = vpop.f32.mrf.mxu0
  %v2303 = vadd.f32 1e-05, %v2302
  %v2304 = vpop.f32.mrf.mxu0
  %2305 = vmatprep.mubr.f32.mxu0 0.0
  %2306 = vmatmul.mubr.f32.gmra.mxu0 %v2186
  %v2307 = vpop.f32.mrf.mxu0
  %v2308 = vadd.f32 1e-05, %v2307
  %v2309 = vpop.f32.mrf.mxu0
  %2310 = vmatprep.mubr.f32.mxu0 0.0
  %2311 = vmatmul.mubr.f32.gmra.mxu0 %v2189
  %v2312 = vpop.f32.mrf.mxu0
  %v2313 = vadd.f32 1e-05, %v2312
  %v2314 = vpop.f32.mrf.mxu0
  %2315 = vmatprep.mubr.f32.mxu0 0.0
  %2316 = vmatmul.mubr.f32.gmra.mxu0 %v2192
  %v2317 = vpop.f32.mrf.mxu0
  %v2318 = vadd.f32 1e-05, %v2317
  %v2319 = vpop.f32.mrf.mxu0
  %2320 = vmatprep.mubr.f32.mxu0 0.0
  %2321 = vmatmul.mubr.f32.gmra.mxu0 %v2195
  %v2322 = vpop.f32.mrf.mxu0
  %v2323 = vadd.f32 1e-05, %v2322
  %v2324 = vpop.f32.mrf.mxu0
  %2325 = vmatprep.mubr.f32.mxu0 0.0
  %2326 = vmatmul.mubr.f32.gmra.mxu0 %v2198
  %v2327 = vpop.f32.mrf.mxu0
  %v2328 = vadd.f32 1e-05, %v2327
  %v2329 = vpop.f32.mrf.mxu0
  %2330 = vmatprep.mubr.f32.mxu0 0.0
  %2331 = vmatmul.mubr.f32.gmra.mxu0 %v2201
  %v2332 = vpop.f32.mrf.mxu0
  %v2333 = vadd.f32 1e-05, %v2332
  %v2334 = vpop.f32.mrf.mxu0
  %2335 = vmatprep.mubr.f32.mxu0 0.0
  %2336 = vmatmul.mubr.f32.gmra.mxu0 %v2204
  %v2337 = vpop.f32.mrf.mxu0
  %v2338 = vadd.f32 1e-05, %v2337
  %v2339 = vpop.f32.mrf.mxu0
  %2340 = vmatprep.mubr.f32.mxu0 0.0
  %2341 = vmatmul.mubr.f32.gmra.mxu0 %v2207
  %v2342 = vpop.f32.mrf.mxu0
  %v2343 = vadd.f32 1e-05, %v2342
  %v2344 = vpop.f32.mrf.mxu0
  %2345 = vmatprep.mubr.f32.mxu0 0.0
  %2346 = vmatmul.mubr.f32.gmra.mxu0 %v2210
  %v2347 = vpop.f32.mrf.mxu0
  %v2348 = vadd.f32 1e-05, %v2347
  %v2349 = vpop.f32.mrf.mxu0
  %2350 = vmatprep.mubr.f32.mxu0 0.0
  %2351 = vmatmul.mubr.f32.gmra.mxu0 %v2213
  %v2352 = vpop.f32.mrf.mxu0
  %v2353 = vadd.f32 1e-05, %v2352
  %v2354 = vpop.f32.mrf.mxu0
  %2355 = vmatprep.mubr.f32.mxu0 0.0
  %2356 = vmatmul.mubr.f32.gmra.mxu0 %v2216
  %v2357 = vpop.f32.mrf.mxu0
  %v2358 = vadd.f32 1e-05, %v2357
  %v2359 = vpop.f32.mrf.mxu0
  %2360 = vmatprep.mubr.f32.mxu0 0.0
  %2361 = vmatmul.mubr.f32.gmra.mxu0 %v2219
  %v2362 = vpop.f32.mrf.mxu0
  %v2363 = vadd.f32 1e-05, %v2362
  %v2364 = vpop.f32.mrf.mxu0
  %2365 = vdwg.mxu0
  %v2366 = vrsqrt.pop %v2288
  %v2367 = vrsqrt.pop %v2293
  %v2368 = vrsqrt.pop %v2298
  %v2369 = vrsqrt.pop %v2303
  %v2370 = vrsqrt.pop %v2308
  %v2371 = vrsqrt.pop %v2313
  %v2372 = vrsqrt.pop %v2318
  %v2373 = vrsqrt.pop %v2323
  %v2374 = vrsqrt.pop %v2328
  %v2375 = vrsqrt.pop %v2333
  %v2376 = vrsqrt.pop %v2338
  %v2377 = vrsqrt.pop %v2343
  %v2378 = vrsqrt.pop %v2348
  %v2379 = vrsqrt.pop %v2353
  %v2380 = vrsqrt.pop %v2358
  %v2381 = vrsqrt.pop %v2363
  %2382 = vset.pattern.permute.xlu0 3
  %2383 = vperm.xlu0 %2382, %v58
  %v2384 = vpop.permute.xlu0 %2383
  %2386 = vset.pattern.permute.xlu0 3
  %2387 = vperm.xlu0 %2386, %v59
  %v2388 = vpop.permute.xlu0 %2387
  %2390 = vset.pattern.permute.xlu0 3
  %2391 = vperm.xlu0 %2390, %v60
  %v2392 = vpop.permute.xlu0 %2391
  %2394 = vset.pattern.permute.xlu0 3
  %2395 = vperm.xlu0 %2394, %v61
  %v2396 = vpop.permute.xlu0 %2395
  %2398 = vset.pattern.permute.xlu0 3
  %2399 = vperm.xlu0 %2398, %v62
  %v2400 = vpop.permute.xlu0 %2399
  %2402 = vset.pattern.permute.xlu0 3
  %2403 = vperm.xlu0 %2402, %v63
  %v2404 = vpop.permute.xlu0 %2403
  %2406 = vset.pattern.permute.xlu0 3
  %2407 = vperm.xlu0 %2406, %v64
  %v2408 = vpop.permute.xlu0 %2407
  %2410 = vset.pattern.permute.xlu0 3
  %2411 = vperm.xlu0 %2410, %v65
  %v2412 = vpop.permute.xlu0 %2411
  %2414 = vset.pattern.permute.xlu0 3
  %2415 = vperm.xlu0 %2414, %v66
  %v2416 = vpop.permute.xlu0 %2415
  %2418 = vset.pattern.permute.xlu0 3
  %2419 = vperm.xlu0 %2418, %v67
  %v2420 = vpop.permute.xlu0 %2419
  %2422 = vset.pattern.permute.xlu0 3
  %2423 = vperm.xlu0 %2422, %v68
  %v2424 = vpop.permute.xlu0 %2423
  %2426 = vset.pattern.permute.xlu0 3
  %2427 = vperm.xlu0 %2426, %v69
  %v2428 = vpop.permute.xlu0 %2427
  %2430 = vset.pattern.permute.xlu0 3
  %2431 = vperm.xlu0 %2430, %v70
  %v2432 = vpop.permute.xlu0 %2431
  %2434 = vset.pattern.permute.xlu0 3
  %2435 = vperm.xlu0 %2434, %v71
  %v2436 = vpop.permute.xlu0 %2435
  %2438 = vset.pattern.permute.xlu0 3
  %2439 = vperm.xlu0 %2438, %v72
  %v2440 = vpop.permute.xlu0 %2439
  %2442 = vset.pattern.permute.xlu0 3
  %2443 = vperm.xlu0 %2442, %v73
  %v2444 = vpop.permute.xlu0 %2443
  %v2446 = vmul.f32 %v2366, %v2384
  %v2447 = vmul.f32 %v2367, %v2388
  %v2448 = vmul.f32 %v2368, %v2392
  %v2449 = vmul.f32 %v2369, %v2396
  %v2450 = vmul.f32 %v2370, %v2400
  %v2451 = vmul.f32 %v2371, %v2404
  %v2452 = vmul.f32 %v2372, %v2408
  %v2453 = vmul.f32 %v2373, %v2412
  %v2454 = vmul.f32 %v2374, %v2416
  %v2455 = vmul.f32 %v2375, %v2420
  %v2456 = vmul.f32 %v2376, %v2424
  %v2457 = vmul.f32 %v2377, %v2428
  %v2458 = vmul.f32 %v2378, %v2432
  %v2459 = vmul.f32 %v2379, %v2436
  %v2460 = vmul.f32 %v2380, %v2440
  %v2461 = vmul.f32 %v2381, %v2444
  %v2462 = vmul.f32 %v1996, %v2446
  %v2463 = vmul.f32 %v1997, %v2447
  %v2464 = vmul.f32 %v1998, %v2448
  %v2465 = vmul.f32 %v1999, %v2449
  %v2466 = vmul.f32 %v2000, %v2450
  %v2467 = vmul.f32 %v2001, %v2451
  %v2468 = vmul.f32 %v2002, %v2452
  %v2469 = vmul.f32 %v2003, %v2453
  %v2470 = vmul.f32 %v2004, %v2454
  %v2471 = vmul.f32 %v2005, %v2455
  %v2472 = vmul.f32 %v2006, %v2456
  %v2473 = vmul.f32 %v2007, %v2457
  %v2474 = vmul.f32 %v2008, %v2458
  %v2475 = vmul.f32 %v2009, %v2459
  %v2476 = vmul.f32 %v2010, %v2460
  %v2477 = vmul.f32 %v2011, %v2461
  %2478 = vset.pattern.permute.xlu0 4
  %2479 = vperm.xlu0 %2478, %v58
  %v2480 = vpop.permute.xlu0 %2479
  %2482 = vset.pattern.permute.xlu0 4
  %2483 = vperm.xlu0 %2482, %v59
  %v2484 = vpop.permute.xlu0 %2483
  %2486 = vset.pattern.permute.xlu0 4
  %2487 = vperm.xlu0 %2486, %v60
  %v2488 = vpop.permute.xlu0 %2487
  %2490 = vset.pattern.permute.xlu0 4
  %2491 = vperm.xlu0 %2490, %v61
  %v2492 = vpop.permute.xlu0 %2491
  %2494 = vset.pattern.permute.xlu0 4
  %2495 = vperm.xlu0 %2494, %v62
  %v2496 = vpop.permute.xlu0 %2495
  %2498 = vset.pattern.permute.xlu0 4
  %2499 = vperm.xlu0 %2498, %v63
  %v2500 = vpop.permute.xlu0 %2499
  %2502 = vset.pattern.permute.xlu0 4
  %2503 = vperm.xlu0 %2502, %v64
  %v2504 = vpop.permute.xlu0 %2503
  %2506 = vset.pattern.permute.xlu0 4
  %2507 = vperm.xlu0 %2506, %v65
  %v2508 = vpop.permute.xlu0 %2507
  %2510 = vset.pattern.permute.xlu0 4
  %2511 = vperm.xlu0 %2510, %v66
  %v2512 = vpop.permute.xlu0 %2511
  %2514 = vset.pattern.permute.xlu0 4
  %2515 = vperm.xlu0 %2514, %v67
  %v2516 = vpop.permute.xlu0 %2515
  %2518 = vset.pattern.permute.xlu0 4
  %2519 = vperm.xlu0 %2518, %v68
  %v2520 = vpop.permute.xlu0 %2519
  %2522 = vset.pattern.permute.xlu0 4
  %2523 = vperm.xlu0 %2522, %v69
  %v2524 = vpop.permute.xlu0 %2523
  %2526 = vset.pattern.permute.xlu0 4
  %2527 = vperm.xlu0 %2526, %v70
  %v2528 = vpop.permute.xlu0 %2527
  %2530 = vset.pattern.permute.xlu0 4
  %2531 = vperm.xlu0 %2530, %v71
  %v2532 = vpop.permute.xlu0 %2531
  %2534 = vset.pattern.permute.xlu0 4
  %2535 = vperm.xlu0 %2534, %v72
  %v2536 = vpop.permute.xlu0 %2535
  %2538 = vset.pattern.permute.xlu0 4
  %2539 = vperm.xlu0 %2538, %v73
  %v2540 = vpop.permute.xlu0 %2539
  %v2542 = vadd.f32 %v2462, %v2480
  %v2543 = vadd.f32 %v2463, %v2484
  %v2544 = vadd.f32 %v2464, %v2488
  %v2545 = vadd.f32 %v2465, %v2492
  %v2546 = vadd.f32 %v2466, %v2496
  %v2547 = vadd.f32 %v2467, %v2500
  %v2548 = vadd.f32 %v2468, %v2504
  %v2549 = vadd.f32 %v2469, %v2508
  %v2550 = vadd.f32 %v2470, %v2512
  %v2551 = vadd.f32 %v2471, %v2516
  %v2552 = vadd.f32 %v2472, %v2520
  %v2553 = vadd.f32 %v2473, %v2524
  %v2554 = vadd.f32 %v2474, %v2528
  %v2555 = vadd.f32 %v2475, %v2532
  %v2556 = vadd.f32 %v2476, %v2536
  %v2557 = vadd.f32 %v2477, %v2540
  %v2558 = vxor.u32 %v2542, 2147483648
  %v2559 = vxor.u32 %v2543, 2147483648
  %v2560 = vxor.u32 %v2544, 2147483648
  %v2561 = vxor.u32 %v2545, 2147483648
  %v2562 = vxor.u32 %v2546, 2147483648
  %v2563 = vxor.u32 %v2547, 2147483648
  %v2564 = vxor.u32 %v2548, 2147483648
  %v2565 = vxor.u32 %v2549, 2147483648
  %v2566 = vxor.u32 %v2550, 2147483648
  %v2567 = vxor.u32 %v2551, 2147483648
  %v2568 = vxor.u32 %v2552, 2147483648
  %v2569 = vxor.u32 %v2553, 2147483648
  %v2570 = vxor.u32 %v2554, 2147483648
  %v2571 = vxor.u32 %v2555, 2147483648
  %v2572 = vxor.u32 %v2556, 2147483648
  %v2573 = vxor.u32 %v2557, 2147483648
  %v2574 = vmul.f32 %v2558, 1.442695
  %v2575 = vpow.pop %v2574
  %v2576 = vmul.f32 %v2559, 1.442695
  %v2577 = vpow.pop %v2576
  %v2578 = vmul.f32 %v2560, 1.442695
  %v2579 = vpow.pop %v2578
  %v2580 = vmul.f32 %v2561, 1.442695
  %v2581 = vpow.pop %v2580
  %v2582 = vmul.f32 %v2562, 1.442695
  %v2583 = vpow.pop %v2582
  %v2584 = vmul.f32 %v2563, 1.442695
  %v2585 = vpow.pop %v2584
  %v2586 = vmul.f32 %v2564, 1.442695
  %v2587 = vpow.pop %v2586
  %v2588 = vmul.f32 %v2565, 1.442695
  %v2589 = vpow.pop %v2588
  %v2590 = vmul.f32 %v2566, 1.442695
  %v2591 = vpow.pop %v2590
  %v2592 = vmul.f32 %v2567, 1.442695
  %v2593 = vpow.pop %v2592
  %v2594 = vmul.f32 %v2568, 1.442695
  %v2595 = vpow.pop %v2594
  %v2596 = vmul.f32 %v2569, 1.442695
  %v2597 = vpow.pop %v2596
  %v2598 = vmul.f32 %v2570, 1.442695
  %v2599 = vpow.pop %v2598
  %v2600 = vmul.f32 %v2571, 1.442695
  %v2601 = vpow.pop %v2600
  %v2602 = vmul.f32 %v2572, 1.442695
  %v2603 = vpow.pop %v2602
  %v2604 = vmul.f32 %v2573, 1.442695
  %v2605 = vpow.pop %v2604
  %v2606 = vadd.f32 %v2575, 1.0
  %v2607 = vadd.f32 %v2577, 1.0
  %v2608 = vadd.f32 %v2579, 1.0
  %v2609 = vadd.f32 %v2581, 1.0
  %v2610 = vadd.f32 %v2583, 1.0
  %v2611 = vadd.f32 %v2585, 1.0
  %v2612 = vadd.f32 %v2587, 1.0
  %v2613 = vadd.f32 %v2589, 1.0
  %v2614 = vadd.f32 %v2591, 1.0
  %v2615 = vadd.f32 %v2593, 1.0
  %v2616 = vadd.f32 %v2595, 1.0
  %v2617 = vadd.f32 %v2597, 1.0
  %v2618 = vadd.f32 %v2599, 1.0
  %v2619 = vadd.f32 %v2601, 1.0
  %v2620 = vadd.f32 %v2603, 1.0
  %v2621 = vadd.f32 %v2605, 1.0
  %v2622 = vrcp.pop %v2606
  %v2623 = vmul.f32 1.0, %v2622
  %v2624 = vrcp.pop %v2607
  %v2625 = vmul.f32 1.0, %v2624
  %v2626 = vrcp.pop %v2608
  %v2627 = vmul.f32 1.0, %v2626
  %v2628 = vrcp.pop %v2609
  %v2629 = vmul.f32 1.0, %v2628
  %v2630 = vrcp.pop %v2610
  %v2631 = vmul.f32 1.0, %v2630
  %v2632 = vrcp.pop %v2611
  %v2633 = vmul.f32 1.0, %v2632
  %v2634 = vrcp.pop %v2612
  %v2635 = vmul.f32 1.0, %v2634
  %v2636 = vrcp.pop %v2613
  %v2637 = vmul.f32 1.0, %v2636
  %v2638 = vrcp.pop %v2614
  %v2639 = vmul.f32 1.0, %v2638
  %v2640 = vrcp.pop %v2615
  %v2641 = vmul.f32 1.0, %v2640
  %v2642 = vrcp.pop %v2616
  %v2643 = vmul.f32 1.0, %v2642
  %v2644 = vrcp.pop %v2617
  %v2645 = vmul.f32 1.0, %v2644
  %v2646 = vrcp.pop %v2618
  %v2647 = vmul.f32 1.0, %v2646
  %v2648 = vrcp.pop %v2619
  %v2649 = vmul.f32 1.0, %v2648
  %v2650 = vrcp.pop %v2620
  %v2651 = vmul.f32 1.0, %v2650
  %v2652 = vrcp.pop %v2621
  %v2653 = vmul.f32 1.0, %v2652
  %v2654 = vmul.f32 %v2542, %v2623
  %v2655 = vmul.f32 %v2543, %v2625
  %v2656 = vmul.f32 %v2544, %v2627
  %v2657 = vmul.f32 %v2545, %v2629
  %v2658 = vmul.f32 %v2546, %v2631
  %v2659 = vmul.f32 %v2547, %v2633
  %v2660 = vmul.f32 %v2548, %v2635
  %v2661 = vmul.f32 %v2549, %v2637
  %v2662 = vmul.f32 %v2550, %v2639
  %v2663 = vmul.f32 %v2551, %v2641
  %v2664 = vmul.f32 %v2552, %v2643
  %v2665 = vmul.f32 %v2553, %v2645
  %v2666 = vmul.f32 %v2554, %v2647
  %v2667 = vmul.f32 %v2555, %v2649
  %v2668 = vmul.f32 %v2556, %v2651
  %v2669 = vmul.f32 %v2557, %v2653
  %v2670 = vlaneseq
  %v2671 = vshrl.u32 %v2670, 7
  %v2672 = vadd.s32 %v2671, 8
  %v2673 = vlaneseq
  %v2674 = vand.u32 %v2673, 127
  %v2675 = vadd.s32 %v2671, 1
  %v2676 = vadd.s32 %v2672, 1
  %vm2677 = vcmp.eq.s32.totalorder %v2675, %v2674
  %vm2678 = vcmp.eq.s32.totalorder %v2676, %v2674
  %v2679 = vsel %vm2677, 1.0, 0.0
  %v2680 = vsel %vm2678, 1.0, 0.0
  %v2681 = vsub.s32 %v2671, 1
  %v2682 = vsub.s32 %v2672, 1
  %vm2683 = vcmp.eq.s32.totalorder %v2681, %v2674
  %vm2684 = vcmp.eq.s32.totalorder %v2682, %v2674
  %v2685 = vsel %vm2683, 1.0, 0.0
  %v2686 = vsel %vm2684, 1.0, 0.0
  %v2688 = vsel %vm219, %v2654, 0
  %v2691 = vsel %vm219, %v2655, 0
  %v2694 = vsel %vm219, %v2656, 0
  %v2697 = vsel %vm219, %v2657, 0
  %v2700 = vsel %vm219, %v2658, 0
  %v2703 = vsel %vm219, %v2659, 0
  %v2706 = vsel %vm219, %v2660, 0
  %v2709 = vsel %vm219, %v2661, 0
  %v2712 = vsel %vm219, %v2662, 0
  %v2715 = vsel %vm219, %v2663, 0
  %v2718 = vsel %vm219, %v2664, 0
  %v2721 = vsel %vm219, %v2665, 0
  %v2724 = vsel %vm219, %v2666, 0
  %v2727 = vsel %vm219, %v2667, 0
  %v2730 = vsel %vm219, %v2668, 0
  %v2733 = vsel %vm219, %v2669, 0
  %2735 = vmatprep.subr.mxu0 0.0
  %2736 = vmatpush1.msra.mxu0 0.0
  %2737 = vmatprep.subr.mxu0 0.0
  %2738 = vmatpush1.msra.mxu0 0.0
  %2739 = vmatprep.subr.mxu0 0.0
  %2740 = vmatpush1.msra.mxu0 0.0
  %2741 = vmatprep.subr.mxu0 0.0
  %2742 = vmatpush1.msra.mxu0 0.0
  %2743 = vmatprep.subr.mxu0 0.0
  %2744 = vmatpush1.msra.mxu0 0.0
  %2745 = vmatprep.subr.mxu0 0.0
  %2746 = vmatpush1.msra.mxu0 0.0
  %2747 = vmatprep.subr.mxu0 0.0
  %2748 = vmatpush1.msra.mxu0 0.0
  %2749 = vmatprep.subr.mxu0 0.0
  %2750 = vmatpush1.msra.mxu0 0.0
  %2751 = vmatprep.subr.mxu0 0.0
  %2752 = vmatpush1.msra.mxu0 0.0
  %2753 = vmatprep.subr.mxu0 0.0
  %2754 = vmatpush1.msra.mxu0 0.0
  %2755 = vmatprep.subr.mxu0 0.0
  %2756 = vmatpush1.msra.mxu0 0.0
  %2757 = vmatprep.subr.mxu0 0.0
  %2758 = vmatpush1.msra.mxu0 0.0
  %2759 = vmatprep.subr.mxu0 0.0
  %2760 = vmatpush1.msra.mxu0 0.0
  %2761 = vmatprep.subr.mxu0 0.0
  %2762 = vmatpush1.msra.mxu0 0.0
  %2763 = vmatprep.subr.mxu0 0.0
  %2764 = vmatpush1.msra.mxu0 %v2680
  %2765 = vmatprep.subr.mxu0 0.0
  %2766 = vmatpush1.msra.mxu0 %v2679
  %2767 = vmatprep.subr.mxu0 0.0
  %2768 = vmatpush2.msra.mxu0 0.0
  %2769 = vmatprep.subr.mxu0 0.0
  %2770 = vmatpush2.msra.mxu0 0.0
  %2771 = vmatprep.subr.mxu0 0.0
  %2772 = vmatpush2.msra.mxu0 0.0
  %2773 = vmatprep.subr.mxu0 0.0
  %2774 = vmatpush2.msra.mxu0 0.0
  %2775 = vmatprep.subr.mxu0 0.0
  %2776 = vmatpush2.msra.mxu0 0.0
  %2777 = vmatprep.subr.mxu0 0.0
  %2778 = vmatpush2.msra.mxu0 0.0
  %2779 = vmatprep.subr.mxu0 0.0
  %2780 = vmatpush2.msra.mxu0 0.0
  %2781 = vmatprep.subr.mxu0 0.0
  %2782 = vmatpush2.msra.mxu0 0.0
  %2783 = vmatprep.subr.mxu0 0.0
  %2784 = vmatpush2.msra.mxu0 0.0
  %2785 = vmatprep.subr.mxu0 0.0
  %2786 = vmatpush2.msra.mxu0 0.0
  %2787 = vmatprep.subr.mxu0 0.0
  %2788 = vmatpush2.msra.mxu0 0.0
  %2789 = vmatprep.subr.mxu0 0.0
  %2790 = vmatpush2.msra.mxu0 0.0
  %2791 = vmatprep.subr.mxu0 0.0
  %2792 = vmatpush2.msra.mxu0 0.0
  %2793 = vmatprep.subr.mxu0 0.0
  %2794 = vmatpush2.msra.mxu0 0.0
  %2795 = vmatprep.subr.mxu0 0.0
  %2796 = vmatpush2.msra.mxu0 0.0
  %2797 = vmatprep.subr.mxu0 0.0
  %2798 = vmatpush2.msra.mxu0 0.0
  %2799 = vmatprep.mubr.f32.mxu0 0.0
  %2800 = vmatmul.mubr.f32.gmra.mxu0 %v2688
  %v2801 = vpop.f32.mrf.mxu0
  %v2802 = vadd.f32 0.0, %v2801
  %v2803 = vpop.f32.mrf.mxu0
  %2804 = vmatprep.mubr.f32.mxu0 0.0
  %2805 = vmatmul.mubr.f32.gmra.mxu0 %v2691
  %v2806 = vpop.f32.mrf.mxu0
  %v2807 = vadd.f32 0.0, %v2806
  %v2808 = vpop.f32.mrf.mxu0
  %2809 = vmatprep.mubr.f32.mxu0 0.0
  %2810 = vmatmul.mubr.f32.gmra.mxu0 %v2694
  %v2811 = vpop.f32.mrf.mxu0
  %v2812 = vadd.f32 0.0, %v2811
  %v2813 = vpop.f32.mrf.mxu0
  %2814 = vmatprep.mubr.f32.mxu0 0.0
  %2815 = vmatmul.mubr.f32.gmra.mxu0 %v2697
  %v2816 = vpop.f32.mrf.mxu0
  %v2817 = vadd.f32 0.0, %v2816
  %v2818 = vpop.f32.mrf.mxu0
  %2819 = vmatprep.mubr.f32.mxu0 0.0
  %2820 = vmatmul.mubr.f32.gmra.mxu0 %v2700
  %v2821 = vpop.f32.mrf.mxu0
  %v2822 = vadd.f32 0.0, %v2821
  %v2823 = vpop.f32.mrf.mxu0
  %2824 = vmatprep.mubr.f32.mxu0 0.0
  %2825 = vmatmul.mubr.f32.gmra.mxu0 %v2703
  %v2826 = vpop.f32.mrf.mxu0
  %v2827 = vadd.f32 0.0, %v2826
  %v2828 = vpop.f32.mrf.mxu0
  %2829 = vmatprep.mubr.f32.mxu0 0.0
  %2830 = vmatmul.mubr.f32.gmra.mxu0 %v2706
  %v2831 = vpop.f32.mrf.mxu0
  %v2832 = vadd.f32 0.0, %v2831
  %v2833 = vpop.f32.mrf.mxu0
  %2834 = vmatprep.mubr.f32.mxu0 0.0
  %2835 = vmatmul.mubr.f32.gmra.mxu0 %v2709
  %v2836 = vpop.f32.mrf.mxu0
  %v2837 = vadd.f32 0.0, %v2836
  %v2838 = vpop.f32.mrf.mxu0
  %2839 = vmatprep.mubr.f32.mxu0 0.0
  %2840 = vmatmul.mubr.f32.gmra.mxu0 %v2712
  %v2841 = vpop.f32.mrf.mxu0
  %v2842 = vadd.f32 0.0, %v2841
  %v2843 = vpop.f32.mrf.mxu0
  %2844 = vmatprep.mubr.f32.mxu0 0.0
  %2845 = vmatmul.mubr.f32.gmra.mxu0 %v2715
  %v2846 = vpop.f32.mrf.mxu0
  %v2847 = vadd.f32 0.0, %v2846
  %v2848 = vpop.f32.mrf.mxu0
  %2849 = vmatprep.mubr.f32.mxu0 0.0
  %2850 = vmatmul.mubr.f32.gmra.mxu0 %v2718
  %v2851 = vpop.f32.mrf.mxu0
  %v2852 = vadd.f32 0.0, %v2851
  %v2853 = vpop.f32.mrf.mxu0
  %2854 = vmatprep.mubr.f32.mxu0 0.0
  %2855 = vmatmul.mubr.f32.gmra.mxu0 %v2721
  %v2856 = vpop.f32.mrf.mxu0
  %v2857 = vadd.f32 0.0, %v2856
  %v2858 = vpop.f32.mrf.mxu0
  %2859 = vmatprep.mubr.f32.mxu0 0.0
  %2860 = vmatmul.mubr.f32.gmra.mxu0 %v2724
  %v2861 = vpop.f32.mrf.mxu0
  %v2862 = vadd.f32 0.0, %v2861
  %v2863 = vpop.f32.mrf.mxu0
  %2864 = vmatprep.mubr.f32.mxu0 0.0
  %2865 = vmatmul.mubr.f32.gmra.mxu0 %v2727
  %v2866 = vpop.f32.mrf.mxu0
  %v2867 = vadd.f32 0.0, %v2866
  %v2868 = vpop.f32.mrf.mxu0
  %2869 = vmatprep.mubr.f32.mxu0 0.0
  %2870 = vmatmul.mubr.f32.gmra.mxu0 %v2730
  %v2871 = vpop.f32.mrf.mxu0
  %v2872 = vadd.f32 0.0, %v2871
  %v2873 = vpop.f32.mrf.mxu0
  %2874 = vmatprep.mubr.f32.mxu0 0.0
  %2875 = vmatmul.mubr.f32.gmra.mxu0 %v2733
  %v2876 = vpop.f32.mrf.mxu0
  %v2877 = vadd.f32 0.0, %v2876
  %v2878 = vpop.f32.mrf.mxu0
  %2879 = vdwg.mxu0
  %2880 = vmatprep.subr.mxu0 0.0
  %2881 = vmatpush1.msra.mxu0 0.0
  %2882 = vmatprep.subr.mxu0 0.0
  %2883 = vmatpush1.msra.mxu0 0.0
  %2884 = vmatprep.subr.mxu0 0.0
  %2885 = vmatpush1.msra.mxu0 0.0
  %2886 = vmatprep.subr.mxu0 0.0
  %2887 = vmatpush1.msra.mxu0 0.0
  %2888 = vmatprep.subr.mxu0 0.0
  %2889 = vmatpush1.msra.mxu0 0.0
  %2890 = vmatprep.subr.mxu0 0.0
  %2891 = vmatpush1.msra.mxu0 0.0
  %2892 = vmatprep.subr.mxu0 0.0
  %2893 = vmatpush1.msra.mxu0 0.0
  %2894 = vmatprep.subr.mxu0 0.0
  %2895 = vmatpush1.msra.mxu0 0.0
  %2896 = vmatprep.subr.mxu0 0.0
  %2897 = vmatpush1.msra.mxu0 0.0
  %2898 = vmatprep.subr.mxu0 0.0
  %2899 = vmatpush1.msra.mxu0 0.0
  %2900 = vmatprep.subr.mxu0 0.0
  %2901 = vmatpush1.msra.mxu0 0.0
  %2902 = vmatprep.subr.mxu0 0.0
  %2903 = vmatpush1.msra.mxu0 0.0
  %2904 = vmatprep.subr.mxu0 0.0
  %2905 = vmatpush1.msra.mxu0 0.0
  %2906 = vmatprep.subr.mxu0 0.0
  %2907 = vmatpush1.msra.mxu0 0.0
  %2908 = vmatprep.subr.mxu0 0.0
  %2909 = vmatpush1.msra.mxu0 %v2686
  %2910 = vmatprep.subr.mxu0 0.0
  %2911 = vmatpush1.msra.mxu0 %v2685
  %2912 = vmatprep.subr.mxu0 0.0
  %2913 = vmatpush2.msra.mxu0 0.0
  %2914 = vmatprep.subr.mxu0 0.0
  %2915 = vmatpush2.msra.mxu0 0.0
  %2916 = vmatprep.subr.mxu0 0.0
  %2917 = vmatpush2.msra.mxu0 0.0
  %2918 = vmatprep.subr.mxu0 0.0
  %2919 = vmatpush2.msra.mxu0 0.0
  %2920 = vmatprep.subr.mxu0 0.0
  %2921 = vmatpush2.msra.mxu0 0.0
  %2922 = vmatprep.subr.mxu0 0.0
  %2923 = vmatpush2.msra.mxu0 0.0
  %2924 = vmatprep.subr.mxu0 0.0
  %2925 = vmatpush2.msra.mxu0 0.0
  %2926 = vmatprep.subr.mxu0 0.0
  %2927 = vmatpush2.msra.mxu0 0.0
  %2928 = vmatprep.subr.mxu0 0.0
  %2929 = vmatpush2.msra.mxu0 0.0
  %2930 = vmatprep.subr.mxu0 0.0
  %2931 = vmatpush2.msra.mxu0 0.0
  %2932 = vmatprep.subr.mxu0 0.0
  %2933 = vmatpush2.msra.mxu0 0.0
  %2934 = vmatprep.subr.mxu0 0.0
  %2935 = vmatpush2.msra.mxu0 0.0
  %2936 = vmatprep.subr.mxu0 0.0
  %2937 = vmatpush2.msra.mxu0 0.0
  %2938 = vmatprep.subr.mxu0 0.0
  %2939 = vmatpush2.msra.mxu0 0.0
  %2940 = vmatprep.subr.mxu0 0.0
  %2941 = vmatpush2.msra.mxu0 0.0
  %2942 = vmatprep.subr.mxu0 0.0
  %2943 = vmatpush2.msra.mxu0 0.0
  %2944 = vmatprep.mubr.f32.mxu0 0.0
  %2945 = vmatmul.mubr.f32.gmra.mxu0 %v2688
  %v2946 = vpop.f32.mrf.mxu0
  %v2947 = vadd.f32 0.0, %v2946
  %v2948 = vpop.f32.mrf.mxu0
  %2949 = vmatprep.mubr.f32.mxu0 0.0
  %2950 = vmatmul.mubr.f32.gmra.mxu0 %v2691
  %v2951 = vpop.f32.mrf.mxu0
  %v2952 = vadd.f32 0.0, %v2951
  %v2953 = vpop.f32.mrf.mxu0
  %2954 = vmatprep.mubr.f32.mxu0 0.0
  %2955 = vmatmul.mubr.f32.gmra.mxu0 %v2694
  %v2956 = vpop.f32.mrf.mxu0
  %v2957 = vadd.f32 0.0, %v2956
  %v2958 = vpop.f32.mrf.mxu0
  %2959 = vmatprep.mubr.f32.mxu0 0.0
  %2960 = vmatmul.mubr.f32.gmra.mxu0 %v2697
  %v2961 = vpop.f32.mrf.mxu0
  %v2962 = vadd.f32 0.0, %v2961
  %v2963 = vpop.f32.mrf.mxu0
  %2964 = vmatprep.mubr.f32.mxu0 0.0
  %2965 = vmatmul.mubr.f32.gmra.mxu0 %v2700
  %v2966 = vpop.f32.mrf.mxu0
  %v2967 = vadd.f32 0.0, %v2966
  %v2968 = vpop.f32.mrf.mxu0
  %2969 = vmatprep.mubr.f32.mxu0 0.0
  %2970 = vmatmul.mubr.f32.gmra.mxu0 %v2703
  %v2971 = vpop.f32.mrf.mxu0
  %v2972 = vadd.f32 0.0, %v2971
  %v2973 = vpop.f32.mrf.mxu0
  %2974 = vmatprep.mubr.f32.mxu0 0.0
  %2975 = vmatmul.mubr.f32.gmra.mxu0 %v2706
  %v2976 = vpop.f32.mrf.mxu0
  %v2977 = vadd.f32 0.0, %v2976
  %v2978 = vpop.f32.mrf.mxu0
  %2979 = vmatprep.mubr.f32.mxu0 0.0
  %2980 = vmatmul.mubr.f32.gmra.mxu0 %v2709
  %v2981 = vpop.f32.mrf.mxu0
  %v2982 = vadd.f32 0.0, %v2981
  %v2983 = vpop.f32.mrf.mxu0
  %2984 = vmatprep.mubr.f32.mxu0 0.0
  %2985 = vmatmul.mubr.f32.gmra.mxu0 %v2712
  %v2986 = vpop.f32.mrf.mxu0
  %v2987 = vadd.f32 0.0, %v2986
  %v2988 = vpop.f32.mrf.mxu0
  %2989 = vmatprep.mubr.f32.mxu0 0.0
  %2990 = vmatmul.mubr.f32.gmra.mxu0 %v2715
  %v2991 = vpop.f32.mrf.mxu0
  %v2992 = vadd.f32 0.0, %v2991
  %v2993 = vpop.f32.mrf.mxu0
  %2994 = vmatprep.mubr.f32.mxu0 0.0
  %2995 = vmatmul.mubr.f32.gmra.mxu0 %v2718
  %v2996 = vpop.f32.mrf.mxu0
  %v2997 = vadd.f32 0.0, %v2996
  %v2998 = vpop.f32.mrf.mxu0
  %2999 = vmatprep.mubr.f32.mxu0 0.0
  %3000 = vmatmul.mubr.f32.gmra.mxu0 %v2721
  %v3001 = vpop.f32.mrf.mxu0
  %v3002 = vadd.f32 0.0, %v3001
  %v3003 = vpop.f32.mrf.mxu0
  %3004 = vmatprep.mubr.f32.mxu0 0.0
  %3005 = vmatmul.mubr.f32.gmra.mxu0 %v2724
  %v3006 = vpop.f32.mrf.mxu0
  %v3007 = vadd.f32 0.0, %v3006
  %v3008 = vpop.f32.mrf.mxu0
  %3009 = vmatprep.mubr.f32.mxu0 0.0
  %3010 = vmatmul.mubr.f32.gmra.mxu0 %v2727
  %v3011 = vpop.f32.mrf.mxu0
  %v3012 = vadd.f32 0.0, %v3011
  %v3013 = vpop.f32.mrf.mxu0
  %3014 = vmatprep.mubr.f32.mxu0 0.0
  %3015 = vmatmul.mubr.f32.gmra.mxu0 %v2730
  %v3016 = vpop.f32.mrf.mxu0
  %v3017 = vadd.f32 0.0, %v3016
  %v3018 = vpop.f32.mrf.mxu0
  %3019 = vmatprep.mubr.f32.mxu0 0.0
  %3020 = vmatmul.mubr.f32.gmra.mxu0 %v2733
  %v3021 = vpop.f32.mrf.mxu0
  %v3022 = vadd.f32 0.0, %v3021
  %v3023 = vpop.f32.mrf.mxu0
  %3024 = vdwg.mxu0
  %v3025 = vld [vmem:[%s5] sm:$0xff]
  %v3026 = vld [vmem:[%s5 + $0x8] sm:$0xff]
  %v3027 = vld [vmem:[%s5 + $0x10] sm:$0xff]
  %v3028 = vld [vmem:[%s5 + $0x18] sm:$0xff]
  %v3029 = vld [vmem:[%s5 + $0x20] sm:$0xff]
  %v3030 = vld [vmem:[%s5 + $0x28] sm:$0xff]
  %v3031 = vld [vmem:[%s5 + $0x30] sm:$0xff]
  %v3032 = vld [vmem:[%s5 + $0x38] sm:$0xff]
  %v3033 = vld [vmem:[%s5 + $0x40] sm:$0xff]
  %v3034 = vld [vmem:[%s5 + $0x48] sm:$0xff]
  %v3035 = vld [vmem:[%s5 + $0x50] sm:$0xff]
  %v3036 = vld [vmem:[%s5 + $0x58] sm:$0xff]
  %v3037 = vld [vmem:[%s5 + $0x60] sm:$0xff]
  %v3038 = vld [vmem:[%s5 + $0x68] sm:$0xff]
  %v3039 = vld [vmem:[%s5 + $0x70] sm:$0xff]
  %v3040 = vld [vmem:[%s5 + $0x78] sm:$0xff]
  %s3041 = scalar_lea.vmem %s5, 128
  %v3042 = vld [vmem:[%s3041] sm:$0xff]
  %v3043 = vld [vmem:[%s3041 + $0x8] sm:$0xff]
  %v3044 = vld [vmem:[%s3041 + $0x10] sm:$0xff]
  %v3045 = vld [vmem:[%s3041 + $0x18] sm:$0xff]
  %v3046 = vld [vmem:[%s3041 + $0x20] sm:$0xff]
  %v3047 = vld [vmem:[%s3041 + $0x28] sm:$0xff]
  %v3048 = vld [vmem:[%s3041 + $0x30] sm:$0xff]
  %v3049 = vld [vmem:[%s3041 + $0x38] sm:$0xff]
  %v3050 = vld [vmem:[%s3041 + $0x40] sm:$0xff]
  %v3051 = vld [vmem:[%s3041 + $0x48] sm:$0xff]
  %v3052 = vld [vmem:[%s3041 + $0x50] sm:$0xff]
  %v3053 = vld [vmem:[%s3041 + $0x58] sm:$0xff]
  %v3054 = vld [vmem:[%s3041 + $0x60] sm:$0xff]
  %v3055 = vld [vmem:[%s3041 + $0x68] sm:$0xff]
  %v3056 = vld [vmem:[%s3041 + $0x70] sm:$0xff]
  %v3057 = vld [vmem:[%s3041 + $0x78] sm:$0xff]
  %3058 = vmatprep.subr.mxu0 0.0
  %3059 = vmatpush1.msra.mxu0 %v2669
  %3060 = vmatprep.subr.mxu0 0.0
  %3061 = vmatpush1.msra.mxu0 %v2668
  %3062 = vmatprep.subr.mxu0 0.0
  %3063 = vmatpush1.msra.mxu0 %v2667
  %3064 = vmatprep.subr.mxu0 0.0
  %3065 = vmatpush1.msra.mxu0 %v2666
  %3066 = vmatprep.subr.mxu0 0.0
  %3067 = vmatpush1.msra.mxu0 %v2665
  %3068 = vmatprep.subr.mxu0 0.0
  %3069 = vmatpush1.msra.mxu0 %v2664
  %3070 = vmatprep.subr.mxu0 0.0
  %3071 = vmatpush1.msra.mxu0 %v2663
  %3072 = vmatprep.subr.mxu0 0.0
  %3073 = vmatpush1.msra.mxu0 %v2662
  %3074 = vmatprep.subr.mxu0 0.0
  %3075 = vmatpush1.msra.mxu0 %v2661
  %3076 = vmatprep.subr.mxu0 0.0
  %3077 = vmatpush1.msra.mxu0 %v2660
  %3078 = vmatprep.subr.mxu0 0.0
  %3079 = vmatpush1.msra.mxu0 %v2659
  %3080 = vmatprep.subr.mxu0 0.0
  %3081 = vmatpush1.msra.mxu0 %v2658
  %3082 = vmatprep.subr.mxu0 0.0
  %3083 = vmatpush1.msra.mxu0 %v2657
  %3084 = vmatprep.subr.mxu0 0.0
  %3085 = vmatpush1.msra.mxu0 %v2656
  %3086 = vmatprep.subr.mxu0 0.0
  %3087 = vmatpush1.msra.mxu0 %v2655
  %3088 = vmatprep.subr.mxu0 0.0
  %3089 = vmatpush1.msra.mxu0 %v2654
  %3090 = vmatprep.subr.mxu0 0.0
  %3091 = vmatpush2.msra.mxu0 0.0
  %3092 = vmatprep.subr.mxu0 0.0
  %3093 = vmatpush2.msra.mxu0 0.0
  %3094 = vmatprep.subr.mxu0 0.0
  %3095 = vmatpush2.msra.mxu0 0.0
  %3096 = vmatprep.subr.mxu0 0.0
  %3097 = vmatpush2.msra.mxu0 0.0
  %3098 = vmatprep.subr.mxu0 0.0
  %3099 = vmatpush2.msra.mxu0 0.0
  %3100 = vmatprep.subr.mxu0 0.0
  %3101 = vmatpush2.msra.mxu0 0.0
  %3102 = vmatprep.subr.mxu0 0.0
  %3103 = vmatpush2.msra.mxu0 0.0
  %3104 = vmatprep.subr.mxu0 0.0
  %3105 = vmatpush2.msra.mxu0 0.0
  %3106 = vmatprep.subr.mxu0 0.0
  %3107 = vmatpush2.msra.mxu0 0.0
  %3108 = vmatprep.subr.mxu0 0.0
  %3109 = vmatpush2.msra.mxu0 0.0
  %3110 = vmatprep.subr.mxu0 0.0
  %3111 = vmatpush2.msra.mxu0 0.0
  %3112 = vmatprep.subr.mxu0 0.0
  %3113 = vmatpush2.msra.mxu0 0.0
  %3114 = vmatprep.subr.mxu0 0.0
  %3115 = vmatpush2.msra.mxu0 0.0
  %3116 = vmatprep.subr.mxu0 0.0
  %3117 = vmatpush2.msra.mxu0 0.0
  %3118 = vmatprep.subr.mxu0 0.0
  %3119 = vmatpush2.msra.mxu0 0.0
  %3120 = vmatprep.subr.mxu0 0.0
  %3121 = vmatpush2.msra.mxu0 0.0
  %3122 = vmatprep.mubr.f32.mxu0 0.0
  %3123 = vmatmul.mubr.f32.gmra.mxu0 %v3042
  %v3124 = vpop.f32.mrf.mxu0
  %v3125 = vadd.f32 0.0, %v3124
  %v3126 = vpop.f32.mrf.mxu0
  %3127 = vmatprep.mubr.f32.mxu0 0.0
  %3128 = vmatmul.mubr.f32.gmra.mxu0 %v3043
  %v3129 = vpop.f32.mrf.mxu0
  %v3130 = vadd.f32 0.0, %v3129
  %v3131 = vpop.f32.mrf.mxu0
  %3132 = vmatprep.mubr.f32.mxu0 0.0
  %3133 = vmatmul.mubr.f32.gmra.mxu0 %v3044
  %v3134 = vpop.f32.mrf.mxu0
  %v3135 = vadd.f32 0.0, %v3134
  %v3136 = vpop.f32.mrf.mxu0
  %3137 = vmatprep.mubr.f32.mxu0 0.0
  %3138 = vmatmul.mubr.f32.gmra.mxu0 %v3045
  %v3139 = vpop.f32.mrf.mxu0
  %v3140 = vadd.f32 0.0, %v3139
  %v3141 = vpop.f32.mrf.mxu0
  %3142 = vmatprep.mubr.f32.mxu0 0.0
  %3143 = vmatmul.mubr.f32.gmra.mxu0 %v3046
  %v3144 = vpop.f32.mrf.mxu0
  %v3145 = vadd.f32 0.0, %v3144
  %v3146 = vpop.f32.mrf.mxu0
  %3147 = vmatprep.mubr.f32.mxu0 0.0
  %3148 = vmatmul.mubr.f32.gmra.mxu0 %v3047
  %v3149 = vpop.f32.mrf.mxu0
  %v3150 = vadd.f32 0.0, %v3149
  %v3151 = vpop.f32.mrf.mxu0
  %3152 = vmatprep.mubr.f32.mxu0 0.0
  %3153 = vmatmul.mubr.f32.gmra.mxu0 %v3048
  %v3154 = vpop.f32.mrf.mxu0
  %v3155 = vadd.f32 0.0, %v3154
  %v3156 = vpop.f32.mrf.mxu0
  %3157 = vmatprep.mubr.f32.mxu0 0.0
  %3158 = vmatmul.mubr.f32.gmra.mxu0 %v3049
  %v3159 = vpop.f32.mrf.mxu0
  %v3160 = vadd.f32 0.0, %v3159
  %v3161 = vpop.f32.mrf.mxu0
  %3162 = vmatprep.mubr.f32.mxu0 0.0
  %3163 = vmatmul.mubr.f32.gmra.mxu0 %v3050
  %v3164 = vpop.f32.mrf.mxu0
  %v3165 = vadd.f32 0.0, %v3164
  %v3166 = vpop.f32.mrf.mxu0
  %3167 = vmatprep.mubr.f32.mxu0 0.0
  %3168 = vmatmul.mubr.f32.gmra.mxu0 %v3051
  %v3169 = vpop.f32.mrf.mxu0
  %v3170 = vadd.f32 0.0, %v3169
  %v3171 = vpop.f32.mrf.mxu0
  %3172 = vmatprep.mubr.f32.mxu0 0.0
  %3173 = vmatmul.mubr.f32.gmra.mxu0 %v3052
  %v3174 = vpop.f32.mrf.mxu0
  %v3175 = vadd.f32 0.0, %v3174
  %v3176 = vpop.f32.mrf.mxu0
  %3177 = vmatprep.mubr.f32.mxu0 0.0
  %3178 = vmatmul.mubr.f32.gmra.mxu0 %v3053
  %v3179 = vpop.f32.mrf.mxu0
  %v3180 = vadd.f32 0.0, %v3179
  %v3181 = vpop.f32.mrf.mxu0
  %3182 = vmatprep.mubr.f32.mxu0 0.0
  %3183 = vmatmul.mubr.f32.gmra.mxu0 %v3054
  %v3184 = vpop.f32.mrf.mxu0
  %v3185 = vadd.f32 0.0, %v3184
  %v3186 = vpop.f32.mrf.mxu0
  %3187 = vmatprep.mubr.f32.mxu0 0.0
  %3188 = vmatmul.mubr.f32.gmra.mxu0 %v3055
  %v3189 = vpop.f32.mrf.mxu0
  %v3190 = vadd.f32 0.0, %v3189
  %v3191 = vpop.f32.mrf.mxu0
  %3192 = vmatprep.mubr.f32.mxu0 0.0
  %3193 = vmatmul.mubr.f32.gmra.mxu0 %v3056
  %v3194 = vpop.f32.mrf.mxu0
  %v3195 = vadd.f32 0.0, %v3194
  %v3196 = vpop.f32.mrf.mxu0
  %3197 = vmatprep.mubr.f32.mxu0 0.0
  %3198 = vmatmul.mubr.f32.gmra.mxu0 %v3057
  %v3199 = vpop.f32.mrf.mxu0
  %v3200 = vadd.f32 0.0, %v3199
  %v3201 = vpop.f32.mrf.mxu0
  %3202 = vdwg.mxu0
  %3203 = vmatprep.subr.mxu0 0.0
  %3204 = vmatpush1.msra.mxu0 %v2877
  %3205 = vmatprep.subr.mxu0 0.0
  %3206 = vmatpush1.msra.mxu0 %v2872
  %3207 = vmatprep.subr.mxu0 0.0
  %3208 = vmatpush1.msra.mxu0 %v2867
  %3209 = vmatprep.subr.mxu0 0.0
  %3210 = vmatpush1.msra.mxu0 %v2862
  %3211 = vmatprep.subr.mxu0 0.0
  %3212 = vmatpush1.msra.mxu0 %v2857
  %3213 = vmatprep.subr.mxu0 0.0
  %3214 = vmatpush1.msra.mxu0 %v2852
  %3215 = vmatprep.subr.mxu0 0.0
  %3216 = vmatpush1.msra.mxu0 %v2847
  %3217 = vmatprep.subr.mxu0 0.0
  %3218 = vmatpush1.msra.mxu0 %v2842
  %3219 = vmatprep.subr.mxu0 0.0
  %3220 = vmatpush1.msra.mxu0 %v2837
  %3221 = vmatprep.subr.mxu0 0.0
  %3222 = vmatpush1.msra.mxu0 %v2832
  %3223 = vmatprep.subr.mxu0 0.0
  %3224 = vmatpush1.msra.mxu0 %v2827
  %3225 = vmatprep.subr.mxu0 0.0
  %3226 = vmatpush1.msra.mxu0 %v2822
  %3227 = vmatprep.subr.mxu0 0.0
  %3228 = vmatpush1.msra.mxu0 %v2817
  %3229 = vmatprep.subr.mxu0 0.0
  %3230 = vmatpush1.msra.mxu0 %v2812
  %3231 = vmatprep.subr.mxu0 0.0
  %3232 = vmatpush1.msra.mxu0 %v2807
  %3233 = vmatprep.subr.mxu0 0.0
  %3234 = vmatpush1.msra.mxu0 %v2802
  %3235 = vmatprep.subr.mxu0 0.0
  %3236 = vmatpush2.msra.mxu0 0.0
  %3237 = vmatprep.subr.mxu0 0.0
  %3238 = vmatpush2.msra.mxu0 0.0
  %3239 = vmatprep.subr.mxu0 0.0
  %3240 = vmatpush2.msra.mxu0 0.0
  %3241 = vmatprep.subr.mxu0 0.0
  %3242 = vmatpush2.msra.mxu0 0.0
  %3243 = vmatprep.subr.mxu0 0.0
  %3244 = vmatpush2.msra.mxu0 0.0
  %3245 = vmatprep.subr.mxu0 0.0
  %3246 = vmatpush2.msra.mxu0 0.0
  %3247 = vmatprep.subr.mxu0 0.0
  %3248 = vmatpush2.msra.mxu0 0.0
  %3249 = vmatprep.subr.mxu0 0.0
  %3250 = vmatpush2.msra.mxu0 0.0
  %3251 = vmatprep.subr.mxu0 0.0
  %3252 = vmatpush2.msra.mxu0 0.0
  %3253 = vmatprep.subr.mxu0 0.0
  %3254 = vmatpush2.msra.mxu0 0.0
  %3255 = vmatprep.subr.mxu0 0.0
  %3256 = vmatpush2.msra.mxu0 0.0
  %3257 = vmatprep.subr.mxu0 0.0
  %3258 = vmatpush2.msra.mxu0 0.0
  %3259 = vmatprep.subr.mxu0 0.0
  %3260 = vmatpush2.msra.mxu0 0.0
  %3261 = vmatprep.subr.mxu0 0.0
  %3262 = vmatpush2.msra.mxu0 0.0
  %3263 = vmatprep.subr.mxu0 0.0
  %3264 = vmatpush2.msra.mxu0 0.0
  %3265 = vmatprep.subr.mxu0 0.0
  %3266 = vmatpush2.msra.mxu0 0.0
  %3267 = vmatprep.mubr.f32.mxu0 0.0
  %3268 = vmatmul.mubr.f32.gmra.mxu0 %v3025
  %v3269 = vpop.f32.mrf.mxu0
  %v3270 = vadd.f32 %v3125, %v3269
  %v3271 = vpop.f32.mrf.mxu0
  %3272 = vmatprep.mubr.f32.mxu0 0.0
  %3273 = vmatmul.mubr.f32.gmra.mxu0 %v3026
  %v3274 = vpop.f32.mrf.mxu0
  %v3275 = vadd.f32 %v3130, %v3274
  %v3276 = vpop.f32.mrf.mxu0
  %3277 = vmatprep.mubr.f32.mxu0 0.0
  %3278 = vmatmul.mubr.f32.gmra.mxu0 %v3027
  %v3279 = vpop.f32.mrf.mxu0
  %v3280 = vadd.f32 %v3135, %v3279
  %v3281 = vpop.f32.mrf.mxu0
  %3282 = vmatprep.mubr.f32.mxu0 0.0
  %3283 = vmatmul.mubr.f32.gmra.mxu0 %v3028
  %v3284 = vpop.f32.mrf.mxu0
  %v3285 = vadd.f32 %v3140, %v3284
  %v3286 = vpop.f32.mrf.mxu0
  %3287 = vmatprep.mubr.f32.mxu0 0.0
  %3288 = vmatmul.mubr.f32.gmra.mxu0 %v3029
  %v3289 = vpop.f32.mrf.mxu0
  %v3290 = vadd.f32 %v3145, %v3289
  %v3291 = vpop.f32.mrf.mxu0
  %3292 = vmatprep.mubr.f32.mxu0 0.0
  %3293 = vmatmul.mubr.f32.gmra.mxu0 %v3030
  %v3294 = vpop.f32.mrf.mxu0
  %v3295 = vadd.f32 %v3150, %v3294
  %v3296 = vpop.f32.mrf.mxu0
  %3297 = vmatprep.mubr.f32.mxu0 0.0
  %3298 = vmatmul.mubr.f32.gmra.mxu0 %v3031
  %v3299 = vpop.f32.mrf.mxu0
  %v3300 = vadd.f32 %v3155, %v3299
  %v3301 = vpop.f32.mrf.mxu0
  %3302 = vmatprep.mubr.f32.mxu0 0.0
  %3303 = vmatmul.mubr.f32.gmra.mxu0 %v3032
  %v3304 = vpop.f32.mrf.mxu0
  %v3305 = vadd.f32 %v3160, %v3304
  %v3306 = vpop.f32.mrf.mxu0
  %3307 = vmatprep.mubr.f32.mxu0 0.0
  %3308 = vmatmul.mubr.f32.gmra.mxu0 %v3033
  %v3309 = vpop.f32.mrf.mxu0
  %v3310 = vadd.f32 %v3165, %v3309
  %v3311 = vpop.f32.mrf.mxu0
  %3312 = vmatprep.mubr.f32.mxu0 0.0
  %3313 = vmatmul.mubr.f32.gmra.mxu0 %v3034
  %v3314 = vpop.f32.mrf.mxu0
  %v3315 = vadd.f32 %v3170, %v3314
  %v3316 = vpop.f32.mrf.mxu0
  %3317 = vmatprep.mubr.f32.mxu0 0.0
  %3318 = vmatmul.mubr.f32.gmra.mxu0 %v3035
  %v3319 = vpop.f32.mrf.mxu0
  %v3320 = vadd.f32 %v3175, %v3319
  %v3321 = vpop.f32.mrf.mxu0
  %3322 = vmatprep.mubr.f32.mxu0 0.0
  %3323 = vmatmul.mubr.f32.gmra.mxu0 %v3036
  %v3324 = vpop.f32.mrf.mxu0
  %v3325 = vadd.f32 %v3180, %v3324
  %v3326 = vpop.f32.mrf.mxu0
  %3327 = vmatprep.mubr.f32.mxu0 0.0
  %3328 = vmatmul.mubr.f32.gmra.mxu0 %v3037
  %v3329 = vpop.f32.mrf.mxu0
  %v3330 = vadd.f32 %v3185, %v3329
  %v3331 = vpop.f32.mrf.mxu0
  %3332 = vmatprep.mubr.f32.mxu0 0.0
  %3333 = vmatmul.mubr.f32.gmra.mxu0 %v3038
  %v3334 = vpop.f32.mrf.mxu0
  %v3335 = vadd.f32 %v3190, %v3334
  %v3336 = vpop.f32.mrf.mxu0
  %3337 = vmatprep.mubr.f32.mxu0 0.0
  %3338 = vmatmul.mubr.f32.gmra.mxu0 %v3039
  %v3339 = vpop.f32.mrf.mxu0
  %v3340 = vadd.f32 %v3195, %v3339
  %v3341 = vpop.f32.mrf.mxu0
  %3342 = vmatprep.mubr.f32.mxu0 0.0
  %3343 = vmatmul.mubr.f32.gmra.mxu0 %v3040
  %v3344 = vpop.f32.mrf.mxu0
  %v3345 = vadd.f32 %v3200, %v3344
  %v3346 = vpop.f32.mrf.mxu0
  %3347 = vdwg.mxu0
  %s3348 = scalar_lea.vmem %s5, 256
  %v3349 = vld [vmem:[%s3348] sm:$0xff]
  %v3350 = vld [vmem:[%s3348 + $0x8] sm:$0xff]
  %v3351 = vld [vmem:[%s3348 + $0x10] sm:$0xff]
  %v3352 = vld [vmem:[%s3348 + $0x18] sm:$0xff]
  %v3353 = vld [vmem:[%s3348 + $0x20] sm:$0xff]
  %v3354 = vld [vmem:[%s3348 + $0x28] sm:$0xff]
  %v3355 = vld [vmem:[%s3348 + $0x30] sm:$0xff]
  %v3356 = vld [vmem:[%s3348 + $0x38] sm:$0xff]
  %v3357 = vld [vmem:[%s3348 + $0x40] sm:$0xff]
  %v3358 = vld [vmem:[%s3348 + $0x48] sm:$0xff]
  %v3359 = vld [vmem:[%s3348 + $0x50] sm:$0xff]
  %v3360 = vld [vmem:[%s3348 + $0x58] sm:$0xff]
  %v3361 = vld [vmem:[%s3348 + $0x60] sm:$0xff]
  %v3362 = vld [vmem:[%s3348 + $0x68] sm:$0xff]
  %v3363 = vld [vmem:[%s3348 + $0x70] sm:$0xff]
  %v3364 = vld [vmem:[%s3348 + $0x78] sm:$0xff]
  %3365 = vmatprep.subr.mxu0 0.0
  %3366 = vmatpush1.msra.mxu0 %v3022
  %3367 = vmatprep.subr.mxu0 0.0
  %3368 = vmatpush1.msra.mxu0 %v3017
  %3369 = vmatprep.subr.mxu0 0.0
  %3370 = vmatpush1.msra.mxu0 %v3012
  %3371 = vmatprep.subr.mxu0 0.0
  %3372 = vmatpush1.msra.mxu0 %v3007
  %3373 = vmatprep.subr.mxu0 0.0
  %3374 = vmatpush1.msra.mxu0 %v3002
  %3375 = vmatprep.subr.mxu0 0.0
  %3376 = vmatpush1.msra.mxu0 %v2997
  %3377 = vmatprep.subr.mxu0 0.0
  %3378 = vmatpush1.msra.mxu0 %v2992
  %3379 = vmatprep.subr.mxu0 0.0
  %3380 = vmatpush1.msra.mxu0 %v2987
  %3381 = vmatprep.subr.mxu0 0.0
  %3382 = vmatpush1.msra.mxu0 %v2982
  %3383 = vmatprep.subr.mxu0 0.0
  %3384 = vmatpush1.msra.mxu0 %v2977
  %3385 = vmatprep.subr.mxu0 0.0
  %3386 = vmatpush1.msra.mxu0 %v2972
  %3387 = vmatprep.subr.mxu0 0.0
  %3388 = vmatpush1.msra.mxu0 %v2967
  %3389 = vmatprep.subr.mxu0 0.0
  %3390 = vmatpush1.msra.mxu0 %v2962
  %3391 = vmatprep.subr.mxu0 0.0
  %3392 = vmatpush1.msra.mxu0 %v2957
  %3393 = vmatprep.subr.mxu0 0.0
  %3394 = vmatpush1.msra.mxu0 %v2952
  %3395 = vmatprep.subr.mxu0 0.0
  %3396 = vmatpush1.msra.mxu0 %v2947
  %3397 = vmatprep.subr.mxu0 0.0
  %3398 = vmatpush2.msra.mxu0 0.0
  %3399 = vmatprep.subr.mxu0 0.0
  %3400 = vmatpush2.msra.mxu0 0.0
  %3401 = vmatprep.subr.mxu0 0.0
  %3402 = vmatpush2.msra.mxu0 0.0
  %3403 = vmatprep.subr.mxu0 0.0
  %3404 = vmatpush2.msra.mxu0 0.0
  %3405 = vmatprep.subr.mxu0 0.0
  %3406 = vmatpush2.msra.mxu0 0.0
  %3407 = vmatprep.subr.mxu0 0.0
  %3408 = vmatpush2.msra.mxu0 0.0
  %3409 = vmatprep.subr.mxu0 0.0
  %3410 = vmatpush2.msra.mxu0 0.0
  %3411 = vmatprep.subr.mxu0 0.0
  %3412 = vmatpush2.msra.mxu0 0.0
  %3413 = vmatprep.subr.mxu0 0.0
  %3414 = vmatpush2.msra.mxu0 0.0
  %3415 = vmatprep.subr.mxu0 0.0
  %3416 = vmatpush2.msra.mxu0 0.0
  %3417 = vmatprep.subr.mxu0 0.0
  %3418 = vmatpush2.msra.mxu0 0.0
  %3419 = vmatprep.subr.mxu0 0.0
  %3420 = vmatpush2.msra.mxu0 0.0
  %3421 = vmatprep.subr.mxu0 0.0
  %3422 = vmatpush2.msra.mxu0 0.0
  %3423 = vmatprep.subr.mxu0 0.0
  %3424 = vmatpush2.msra.mxu0 0.0
  %3425 = vmatprep.subr.mxu0 0.0
  %3426 = vmatpush2.msra.mxu0 0.0
  %3427 = vmatprep.subr.mxu0 0.0
  %3428 = vmatpush2.msra.mxu0 0.0
  %3429 = vmatprep.mubr.f32.mxu0 0.0
  %3430 = vmatmul.mubr.f32.gmra.mxu0 %v3349
  %v3431 = vpop.f32.mrf.mxu0
  %v3432 = vadd.f32 0.0, %v3431
  %v3433 = vpop.f32.mrf.mxu0
  %3434 = vmatprep.mubr.f32.mxu0 0.0
  %3435 = vmatmul.mubr.f32.gmra.mxu0 %v3350
  %v3436 = vpop.f32.mrf.mxu0
  %v3437 = vadd.f32 0.0, %v3436
  %v3438 = vpop.f32.mrf.mxu0
  %3439 = vmatprep.mubr.f32.mxu0 0.0
  %3440 = vmatmul.mubr.f32.gmra.mxu0 %v3351
  %v3441 = vpop.f32.mrf.mxu0
  %v3442 = vadd.f32 0.0, %v3441
  %v3443 = vpop.f32.mrf.mxu0
  %3444 = vmatprep.mubr.f32.mxu0 0.0
  %3445 = vmatmul.mubr.f32.gmra.mxu0 %v3352
  %v3446 = vpop.f32.mrf.mxu0
  %v3447 = vadd.f32 0.0, %v3446
  %v3448 = vpop.f32.mrf.mxu0
  %3449 = vmatprep.mubr.f32.mxu0 0.0
  %3450 = vmatmul.mubr.f32.gmra.mxu0 %v3353
  %v3451 = vpop.f32.mrf.mxu0
  %v3452 = vadd.f32 0.0, %v3451
  %v3453 = vpop.f32.mrf.mxu0
  %3454 = vmatprep.mubr.f32.mxu0 0.0
  %3455 = vmatmul.mubr.f32.gmra.mxu0 %v3354
  %v3456 = vpop.f32.mrf.mxu0
  %v3457 = vadd.f32 0.0, %v3456
  %v3458 = vpop.f32.mrf.mxu0
  %3459 = vmatprep.mubr.f32.mxu0 0.0
  %3460 = vmatmul.mubr.f32.gmra.mxu0 %v3355
  %v3461 = vpop.f32.mrf.mxu0
  %v3462 = vadd.f32 0.0, %v3461
  %v3463 = vpop.f32.mrf.mxu0
  %3464 = vmatprep.mubr.f32.mxu0 0.0
  %3465 = vmatmul.mubr.f32.gmra.mxu0 %v3356
  %v3466 = vpop.f32.mrf.mxu0
  %v3467 = vadd.f32 0.0, %v3466
  %v3468 = vpop.f32.mrf.mxu0
  %3469 = vmatprep.mubr.f32.mxu0 0.0
  %3470 = vmatmul.mubr.f32.gmra.mxu0 %v3357
  %v3471 = vpop.f32.mrf.mxu0
  %v3472 = vadd.f32 0.0, %v3471
  %v3473 = vpop.f32.mrf.mxu0
  %3474 = vmatprep.mubr.f32.mxu0 0.0
  %3475 = vmatmul.mubr.f32.gmra.mxu0 %v3358
  %v3476 = vpop.f32.mrf.mxu0
  %v3477 = vadd.f32 0.0, %v3476
  %v3478 = vpop.f32.mrf.mxu0
  %3479 = vmatprep.mubr.f32.mxu0 0.0
  %3480 = vmatmul.mubr.f32.gmra.mxu0 %v3359
  %v3481 = vpop.f32.mrf.mxu0
  %v3482 = vadd.f32 0.0, %v3481
  %v3483 = vpop.f32.mrf.mxu0
  %3484 = vmatprep.mubr.f32.mxu0 0.0
  %3485 = vmatmul.mubr.f32.gmra.mxu0 %v3360
  %v3486 = vpop.f32.mrf.mxu0
  %v3487 = vadd.f32 0.0, %v3486
  %v3488 = vpop.f32.mrf.mxu0
  %3489 = vmatprep.mubr.f32.mxu0 0.0
  %3490 = vmatmul.mubr.f32.gmra.mxu0 %v3361
  %v3491 = vpop.f32.mrf.mxu0
  %v3492 = vadd.f32 0.0, %v3491
  %v3493 = vpop.f32.mrf.mxu0
  %3494 = vmatprep.mubr.f32.mxu0 0.0
  %3495 = vmatmul.mubr.f32.gmra.mxu0 %v3362
  %v3496 = vpop.f32.mrf.mxu0
  %v3497 = vadd.f32 0.0, %v3496
  %v3498 = vpop.f32.mrf.mxu0
  %3499 = vmatprep.mubr.f32.mxu0 0.0
  %3500 = vmatmul.mubr.f32.gmra.mxu0 %v3363
  %v3501 = vpop.f32.mrf.mxu0
  %v3502 = vadd.f32 0.0, %v3501
  %v3503 = vpop.f32.mrf.mxu0
  %3504 = vmatprep.mubr.f32.mxu0 0.0
  %3505 = vmatmul.mubr.f32.gmra.mxu0 %v3364
  %v3506 = vpop.f32.mrf.mxu0
  %v3507 = vadd.f32 0.0, %v3506
  %v3508 = vpop.f32.mrf.mxu0
  %3509 = vdwg.mxu0
  %v3510 = vadd.f32 %v3270, %v3432
  %v3511 = vadd.f32 %v3275, %v3437
  %v3512 = vadd.f32 %v3280, %v3442
  %v3513 = vadd.f32 %v3285, %v3447
  %v3514 = vadd.f32 %v3290, %v3452
  %v3515 = vadd.f32 %v3295, %v3457
  %v3516 = vadd.f32 %v3300, %v3462
  %v3517 = vadd.f32 %v3305, %v3467
  %v3518 = vadd.f32 %v3310, %v3472
  %v3519 = vadd.f32 %v3315, %v3477
  %v3520 = vadd.f32 %v3320, %v3482
  %v3521 = vadd.f32 %v3325, %v3487
  %v3522 = vadd.f32 %v3330, %v3492
  %v3523 = vadd.f32 %v3335, %v3497
  %v3524 = vadd.f32 %v3340, %v3502
  %v3525 = vadd.f32 %v3345, %v3507
  %v3526 = vadd.f32 %v26, %v3510
  %v3527 = vadd.f32 %v27, %v3511
  %v3528 = vadd.f32 %v28, %v3512
  %v3529 = vadd.f32 %v29, %v3513
  %v3530 = vadd.f32 %v30, %v3514
  %v3531 = vadd.f32 %v31, %v3515
  %v3532 = vadd.f32 %v32, %v3516
  %v3533 = vadd.f32 %v33, %v3517
  %v3534 = vadd.f32 %v34, %v3518
  %v3535 = vadd.f32 %v35, %v3519
  %v3536 = vadd.f32 %v36, %v3520
  %v3537 = vadd.f32 %v37, %v3521
  %v3538 = vadd.f32 %v38, %v3522
  %v3539 = vadd.f32 %v39, %v3523
  %v3540 = vadd.f32 %v40, %v3524
  %v3541 = vadd.f32 %v41, %v3525
  %3542 = vset.pattern.permute.xlu0 5
  %3543 = vperm.xlu0 %3542, %v58
  %v3544 = vpop.permute.xlu0 %3543
  %3546 = vset.pattern.permute.xlu0 5
  %3547 = vperm.xlu0 %3546, %v59
  %v3548 = vpop.permute.xlu0 %3547
  %3550 = vset.pattern.permute.xlu0 5
  %3551 = vperm.xlu0 %3550, %v60
  %v3552 = vpop.permute.xlu0 %3551
  %3554 = vset.pattern.permute.xlu0 5
  %3555 = vperm.xlu0 %3554, %v61
  %v3556 = vpop.permute.xlu0 %3555
  %3558 = vset.pattern.permute.xlu0 5
  %3559 = vperm.xlu0 %3558, %v62
  %v3560 = vpop.permute.xlu0 %3559
  %3562 = vset.pattern.permute.xlu0 5
  %3563 = vperm.xlu0 %3562, %v63
  %v3564 = vpop.permute.xlu0 %3563
  %3566 = vset.pattern.permute.xlu0 5
  %3567 = vperm.xlu0 %3566, %v64
  %v3568 = vpop.permute.xlu0 %3567
  %3570 = vset.pattern.permute.xlu0 5
  %3571 = vperm.xlu0 %3570, %v65
  %v3572 = vpop.permute.xlu0 %3571
  %3574 = vset.pattern.permute.xlu0 5
  %3575 = vperm.xlu0 %3574, %v66
  %v3576 = vpop.permute.xlu0 %3575
  %3578 = vset.pattern.permute.xlu0 5
  %3579 = vperm.xlu0 %3578, %v67
  %v3580 = vpop.permute.xlu0 %3579
  %3582 = vset.pattern.permute.xlu0 5
  %3583 = vperm.xlu0 %3582, %v68
  %v3584 = vpop.permute.xlu0 %3583
  %3586 = vset.pattern.permute.xlu0 5
  %3587 = vperm.xlu0 %3586, %v69
  %v3588 = vpop.permute.xlu0 %3587
  %3590 = vset.pattern.permute.xlu0 5
  %3591 = vperm.xlu0 %3590, %v70
  %v3592 = vpop.permute.xlu0 %3591
  %3594 = vset.pattern.permute.xlu0 5
  %3595 = vperm.xlu0 %3594, %v71
  %v3596 = vpop.permute.xlu0 %3595
  %3598 = vset.pattern.permute.xlu0 5
  %3599 = vperm.xlu0 %3598, %v72
  %v3600 = vpop.permute.xlu0 %3599
  %3602 = vset.pattern.permute.xlu0 5
  %3603 = vperm.xlu0 %3602, %v73
  %v3604 = vpop.permute.xlu0 %3603
  %v3606 = vadd.f32 %v3526, %v3544
  %v3607 = vadd.f32 %v3527, %v3548
  %v3608 = vadd.f32 %v3528, %v3552
  %v3609 = vadd.f32 %v3529, %v3556
  %v3610 = vadd.f32 %v3530, %v3560
  %v3611 = vadd.f32 %v3531, %v3564
  %v3612 = vadd.f32 %v3532, %v3568
  %v3613 = vadd.f32 %v3533, %v3572
  %v3614 = vadd.f32 %v3534, %v3576
  %v3615 = vadd.f32 %v3535, %v3580
  %v3616 = vadd.f32 %v3536, %v3584
  %v3617 = vadd.f32 %v3537, %v3588
  %v3618 = vadd.f32 %v3538, %v3592
  %v3619 = vadd.f32 %v3539, %v3596
  %v3620 = vadd.f32 %v3540, %v3600
  %v3621 = vadd.f32 %v3541, %v3604
  %3622 = vst.msk [vmem:[%s7] sm:$0xff] %vm219, %v3606
  %3623 = vst.msk [vmem:[%s7 + $0x8] sm:$0xff] %vm219, %v3607
  %3624 = vst.msk [vmem:[%s7 + $0x10] sm:$0xff] %vm219, %v3608
  %3625 = vst.msk [vmem:[%s7 + $0x18] sm:$0xff] %vm219, %v3609
  %3626 = vst.msk [vmem:[%s7 + $0x20] sm:$0xff] %vm219, %v3610
  %3627 = vst.msk [vmem:[%s7 + $0x28] sm:$0xff] %vm219, %v3611
  %3628 = vst.msk [vmem:[%s7 + $0x30] sm:$0xff] %vm219, %v3612
  %3629 = vst.msk [vmem:[%s7 + $0x38] sm:$0xff] %vm219, %v3613
  %3630 = vst.msk [vmem:[%s7 + $0x40] sm:$0xff] %vm219, %v3614
  %3631 = vst.msk [vmem:[%s7 + $0x48] sm:$0xff] %vm219, %v3615
  %3632 = vst.msk [vmem:[%s7 + $0x50] sm:$0xff] %vm219, %v3616
  %3633 = vst.msk [vmem:[%s7 + $0x58] sm:$0xff] %vm219, %v3617
  %3634 = vst.msk [vmem:[%s7 + $0x60] sm:$0xff] %vm219, %v3618
  %3635 = vst.msk [vmem:[%s7 + $0x68] sm:$0xff] %vm219, %v3619
  %3636 = vst.msk [vmem:[%s7 + $0x70] sm:$0xff] %vm219, %v3620
  %3637 = vst.msk [vmem:[%s7 + $0x78] sm:$0xff] %vm219, %v3621
  // Predicated region
  $region30: #{resblock_forward.1} parent=0 // pred_check
    _
  $region31: #{resblock_forward.1} parent=0 // pred_check_branch
    %3639 = sbr.rel (0) target = $region33
  $region32: #{resblock_forward.1} parent=0 // pred_region
    _
  $region33: #{resblock_forward.1} parent=0 // pred_fallthru
    _
  // Predicated region
  $region34: #{resblock_forward.1} parent=0 // pred_check
    _
  $region35: #{resblock_forward.1} parent=0 // pred_check_branch
    %3641 = sbr.rel (0) target = $region37
  $region36: #{resblock_forward.1} parent=0 // pred_region
    _
  $region37: #{resblock_forward.1} parent=0 // pred_fallthru
    _

</llo_original>
